<compile_context>
chip_gen: v5e
topology: v5e:2x2
jax: 0.10.0
libtpu: 0.0.40
codegen_flags: <defaults>
</compile_context>

<pallas_src>
import jax
import jax.numpy as jnp
from jax import lax
from jax.experimental import pallas as pl
from jax.experimental.pallas import tpu as pltpu


def residual_block_kernel(x_ref, w1_ref, b1_ref, w2_ref, b2_ref, o_ref, hp_ref):
    """Processes a block of NB images per grid step.

    x_ref  : (NB, H, W, Cin)  f32 input block
    w1_ref : (Cin, C0)        1x1 conv weight, BN scale folded in (f32 or bf16)
    b1_ref : (1, C0)          folded BN bias for conv1 (f32)
    w2_ref : (3, 3*C0, C1)    3x3 conv weight, BN scale folded in; w2_ref[di]
                              is the (3*C0, C1) matmul for vertical tap di with
                              the 3 horizontal taps concatenated along K
    b2_ref : (1, C1)          folded BN bias for conv2 (f32)
    o_ref  : (NB, H, W, C1)   f32 output block
    hp_ref : (H+2, W+2, C0)   f32 VMEM scratch: zero-padded conv1 output
    """
    NB, H, W, Cin = x_ref.shape
    C0 = w1_ref.shape[1]
    C1 = w2_ref.shape[2]
    cdt = w1_ref.dtype            # MXU compute dtype (float32 or bfloat16)
    f32 = jnp.float32

    w1 = w1_ref[...]
    b1 = b1_ref[...]
    w2 = w2_ref[...]
    b2 = b2_ref[...]

    # Zero only the 1-pixel halo of the padded scratch; the (H, W) interior is
    # fully overwritten for every image below.  (Re-zeroed each grid step
    # instead of guarding with program_id == 0 so the kernel stays correct when
    # the "parallel" batch axis is split across TensorCores, where grid step 0
    # does not run on every core.)
    hp_ref[0] = jnp.zeros((W + 2, C0), f32)
    hp_ref[H + 1] = jnp.zeros((W + 2, C0), f32)
    hp_ref[:, 0:1, :] = jnp.zeros((H + 2, 1, C0), f32)
    hp_ref[:, W + 1:W + 2, :] = jnp.zeros((H + 2, 1, C0), f32)

    for nb in range(NB):          # static unroll over the batch block
        x = x_ref[nb]             # (H, W, Cin), f32

        # ---- conv1: 1x1 conv == channel matmul (BN scale pre-folded) ----
        h = jnp.dot(x.reshape(H * W, Cin).astype(cdt), w1,
                    preferred_element_type=f32)            # (H*W, C0) f32
        h = h + b1
        h = jnp.where(h > 0, h, 0.1 * h)                    # LeakyReLU(0.1)
        hp_ref[1:H + 1, 1:W + 1, :] = h.reshape(H, W, C0)

        # ---- conv2: 3x3 conv as 3 MXU matmuls with K = 3*C0 ----
        # Single im2col along W: concatenate the three horizontal taps on the
        # channel (lane) axis once; each vertical tap di is then an aligned
        # leading-axis slice and one (H*W, 3*C0) x (3*C0, C1) matmul.
        q = jnp.concatenate(
            [hp_ref[:, 0:W, :], hp_ref[:, 1:W + 1, :], hp_ref[:, 2:W + 2, :]],
            axis=-1).astype(cdt)                            # (H+2, W, 3*C0)
        # TODO(synk): for real YOLO shapes, tile H into strips here (and pack a
        # lane-dense output when C1 < 128) so q / acc stay within vreg budgets.
        acc = jnp.dot(q[0:H].reshape(H * W, 3 * C0), w2[0],
                      preferred_element_type=f32)           # (H*W, C1) f32
        for di in range(1, 3):
            acc = acc + jnp.dot(q[di:di + H].reshape(H * W, 3 * C0), w2[di],
                                preferred_element_type=f32)

        y = acc + b2
        y = jnp.where(y > 0, y, 0.1 * y)                    # LeakyReLU(0.1)

        # ---- residual add (f32) ----
        o_ref[nb] = y.reshape(H, W, C1) + x


def _pick_block_n(n):
    for cand in (4, 2, 1):
        if n % cand == 0:
            return cand
    return 1


def residual_block_nhwc(x_nhwc, w1, b1, w2, b2, *, block_n=None):
    """x_nhwc: (N, H, W, Cin) f32; params from prep_kernel_params."""
    N, H, W, Cin = x_nhwc.shape
    C0 = w1.shape[1]
    C1 = w2.shape[2]
    assert C1 == Cin, "residual add requires channels[1] == in_channel"
    if block_n is None:
        block_n = _pick_block_n(N)
    assert N % block_n == 0

    return pl.pallas_call(
        residual_block_kernel,
        out_shape=jax.ShapeDtypeStruct((N, H, W, C1), jnp.float32),
        grid_spec=pltpu.PrefetchScalarGridSpec(
            num_scalar_prefetch=0,
            grid=(N // block_n,),
            in_specs=[
                pl.BlockSpec((block_n, H, W, Cin), lambda n: (n, 0, 0, 0)),
                pl.BlockSpec((Cin, C0), lambda n: (0, 0)),
                pl.BlockSpec((1, C0), lambda n: (0, 0)),
                pl.BlockSpec((3, 3 * C0, C1), lambda n: (0, 0, 0)),
                pl.BlockSpec((1, C1), lambda n: (0, 0)),
            ],
            out_specs=pl.BlockSpec((block_n, H, W, C1), lambda n: (n, 0, 0, 0)),
            scratch_shapes=[pltpu.VMEM((H + 2, W + 2, C0), jnp.float32)],
        ),
        compiler_params=pltpu.CompilerParams(
            dimension_semantics=("parallel",),
            vmem_limit_bytes=64 * 1024 * 1024,
        ),
    )(x_nhwc, w1, b1, w2, b2)


def residual_block_nchw(x_nchw, kernel_params, *, block_n=None):
    """PyTorch-facing wrapper: NCHW in, NCHW out."""
    # TODO(synk): keep the surrounding model in NHWC so these two full-tensor
    # HBM transposes can be dropped.
    x_nhwc = jnp.transpose(x_nchw, (0, 2, 3, 1))
    out = residual_block_nhwc(x_nhwc, *kernel_params, block_n=block_n)
    return jnp.transpose(out, (0, 3, 1, 2))


# ----------------------------- parameter prep -------------------------------

def fold_bn(gamma, beta, mean, var, eps=1e-5):
    scale = gamma / jnp.sqrt(var + eps)
    bias = beta - mean * scale
    return scale, bias


def make_params(key, in_channel, channels):
    """Deterministic synthetic parameters in PyTorch layouts (OIHW conv
    weights, inference-mode BatchNorm running stats)."""
    c0, c1 = channels
    ks = jax.random.split(key, 10)
    w1 = 0.1 * jax.random.normal(ks[0], (c0, in_channel, 1, 1), jnp.float32)
    w2 = 0.1 * jax.random.normal(ks[1], (c1, c0, 3, 3), jnp.float32)
    bn1 = (1.0 + 0.1 * jax.random.normal(ks[2], (c0,), jnp.float32),
           0.1 * jax.random.normal(ks[3], (c0,), jnp.float32),
           0.1 * jax.random.normal(ks[4], (c0,), jnp.float32),
           jax.random.uniform(ks[5], (c0,), jnp.float32, 0.5, 1.5))
    bn2 = (1.0 + 0.1 * jax.random.normal(ks[6], (c1,), jnp.float32),
           0.1 * jax.random.normal(ks[7], (c1,), jnp.float32),
           0.1 * jax.random.normal(ks[8], (c1,), jnp.float32),
           jax.random.uniform(ks[9], (c1,), jnp.float32, 0.5, 1.5))
    return dict(w1=w1, w2=w2, bn1=bn1, bn2=bn2)


def prep_kernel_params(raw, *, use_bf16=False):
    """Fold BN scales into the conv weights (host side) and lay the 3x3 weight
    out as (3, 3*C0, C1): one (3*C0, C1) matmul per vertical tap, horizontal
    taps concatenated along K to match the kernel's im2col layout."""
    w1, w2 = raw["w1"], raw["w2"]
    c0, cin = w1.shape[0], w1.shape[1]
    c1 = w2.shape[0]
    s1, b1 = fold_bn(*raw["bn1"])
    s2, b2 = fold_bn(*raw["bn2"])
    w1k = jnp.transpose(w1[:, :, 0, 0], (1, 0)) * s1[None, :]            # (Cin, C0)
    w2_hwio = jnp.transpose(w2, (2, 3, 1, 0)) * s2[None, None, None, :]  # (3,3,C0,C1)
    w2k = w2_hwio.reshape(3, 3 * c0, c1)                                 # (3,3*C0,C1)
    mm_dtype = jnp.bfloat16 if use_bf16 else jnp.float32
    return (w1k.astype(mm_dtype),
            b1.reshape(1, c0).astype(jnp.float32),
            w2k.astype(mm_dtype),
            b2.reshape(1, c1).astype(jnp.float32))


def reference_nhwc(x_nhwc, raw):
    """Pure-JAX reference of the same forward pass (inference-mode BN)."""
    s1, b1 = fold_bn(*raw["bn1"])
    s2, b2 = fold_bn(*raw["bn2"])
    w1 = raw["w1"][:, :, 0, 0]                                # (C0, Cin)
    h = jnp.einsum('nhwc,dc->nhwd', x_nhwc, w1,
                   precision=lax.Precision.HIGHEST)
    h = h * s1 + b1
    h = jnp.where(h > 0, h, 0.1 * h)
    w2_hwio = jnp.transpose(raw["w2"], (2, 3, 1, 0))
    y = lax.conv_general_dilated(h, w2_hwio, window_strides=(1, 1),
                                 padding='SAME',
                                 dimension_numbers=('NHWC', 'HWIO', 'NHWC'),
                                 precision=lax.Precision.HIGHEST)
    y = y * s2 + b2
    y = jnp.where(y > 0, y, 0.1 * y)
    return y + x_nhwc


if __name__ == "__main__":
    # Small shapes consistent with the module: in_channel=8, channels=[4, 8]
    # (channels[1] == in_channel so the residual add is valid).
    N, C_IN, H, W = 2, 8, 16, 16
    CHANNELS = (4, 8)

    key = jax.random.PRNGKey(0)
    kx, kp = jax.random.split(key)
    x_nchw = jax.random.normal(kx, (N, C_IN, H, W), jnp.float32)
    raw = make_params(kp, C_IN, CHANNELS)

    x_nhwc = jnp.transpose(x_nchw, (0, 2, 3, 1))
    ref = reference_nhwc(x_nhwc, raw)

    # f32 matmul path (exact module semantics).
    p32 = prep_kernel_params(raw, use_bf16=False)
    out32 = jax.block_until_ready(residual_block_nhwc(x_nhwc, *p32))
    if not jnp.allclose(out32, ref, atol=2e-3, rtol=2e-3):
        raise AssertionError(
            f"f32 kernel mismatch, max abs err = {jnp.max(jnp.abs(out32 - ref))}")

    # bf16 MXU path (weights / activations cast to bf16 for the matmuls,
    # f32 accumulation, bias/LeakyReLU/residual in f32).
    p16 = prep_kernel_params(raw, use_bf16=True)
    out16 = jax.block_until_ready(residual_block_nhwc(x_nhwc, *p16))
    if not jnp.allclose(out16, ref, atol=5e-2, rtol=5e-2):
        raise AssertionError(
            f"bf16 kernel mismatch, max abs err = {jnp.max(jnp.abs(out16 - ref))}")

    # PyTorch-facing NCHW wrapper.
    out_nchw = jax.block_until_ready(residual_block_nchw(x_nchw, p32))
    if not jnp.allclose(out_nchw, jnp.transpose(ref, (0, 3, 1, 2)),
                        atol=2e-3, rtol=2e-3):
        raise AssertionError("NCHW wrapper mismatch")

    print("KERNEL_OK")
</pallas_src>

<mosaic_0001>
module attributes {stable_mosaic.version = 11 : i64} {
  func.func @residual_block_kernel(%arg0: i32, %arg1: memref<2x16x16x8xf32, #tpu.memory_space<vmem>>, %arg2: memref<8x4xf32, #tpu.memory_space<vmem>>, %arg3: memref<1x4xf32, #tpu.memory_space<vmem>>, %arg4: memref<3x12x8xf32, #tpu.memory_space<vmem>>, %arg5: memref<1x8xf32, #tpu.memory_space<vmem>>, %arg6: memref<2x16x16x8xf32, #tpu.memory_space<vmem>>, %arg7: memref<18x18x4xf32, #tpu.memory_space<vmem>>) attributes {dimension_semantics = [#tpu.dimension_semantics<parallel>], iteration_bounds = array<i64: 1>, scalar_prefetch = 0 : i64, scratch_operands = 1 : i64, tpu.core_type = #tpu.core_type<tc>, window_params = [{transform_indices = @transform_0, window_bounds = array<i64: 2, 16, 16, 8>}, {pipeline_mode = #tpu.pipeline_mode<synchronous>, transform_indices = @transform_1, window_bounds = array<i64: 8, 4>}, {pipeline_mode = #tpu.pipeline_mode<synchronous>, transform_indices = @transform_2, window_bounds = array<i64: 1, 4>}, {pipeline_mode = #tpu.pipeline_mode<synchronous>, transform_indices = @transform_3, window_bounds = array<i64: 3, 12, 8>}, {pipeline_mode = #tpu.pipeline_mode<synchronous>, transform_indices = @transform_4, window_bounds = array<i64: 1, 8>}, {transform_indices = @transform_5, window_bounds = array<i64: 2, 16, 16, 8>}]} {
    %c0 = arith.constant 0 : index
    %c0_0 = arith.constant 0 : index
    %0 = vector.load %arg2[%c0, %c0_0] : memref<8x4xf32, #tpu.memory_space<vmem>>, vector<8x4xf32>
    %c0_1 = arith.constant 0 : index
    %c0_2 = arith.constant 0 : index
    %1 = vector.load %arg3[%c0_1, %c0_2] : memref<1x4xf32, #tpu.memory_space<vmem>>, vector<1x4xf32>
    %c0_3 = arith.constant 0 : index
    %c0_4 = arith.constant 0 : index
    %c0_5 = arith.constant 0 : index
    %2 = vector.load %arg4[%c0_3, %c0_4, %c0_5] : memref<3x12x8xf32, #tpu.memory_space<vmem>>, vector<3x12x8xf32>
    %c0_6 = arith.constant 0 : index
    %c0_7 = arith.constant 0 : index
    %3 = vector.load %arg5[%c0_6, %c0_7] : memref<1x8xf32, #tpu.memory_space<vmem>>, vector<1x8xf32>
    %cst = arith.constant 0.000000e+00 : f32
    %4 = vector.broadcast %cst : f32 to vector<18x4xf32>
    %c0_8 = arith.constant 0 : index
    %c0_9 = arith.constant 0 : index
    %c0_10 = arith.constant 0 : index
    %5 = vector.load %arg7[%c0_8, %c0_9, %c0_10] : memref<18x18x4xf32, #tpu.memory_space<vmem>>, vector<1x18x4xf32>
    %6 = vector.shape_cast %5 : vector<1x18x4xf32> to vector<18x4xf32>
    %7 = vector.shape_cast %4 : vector<18x4xf32> to vector<1x18x4xf32>
    tpu.vector_store %arg7[%c0_8, %c0_9, %c0_10], %7 {strides = array<i32>} : memref<18x18x4xf32, #tpu.memory_space<vmem>>, vector<1x18x4xf32>,
    %cst_11 = arith.constant 0.000000e+00 : f32
    %8 = vector.broadcast %cst_11 : f32 to vector<18x4xf32>
    %c17 = arith.constant 17 : index
    %c0_12 = arith.constant 0 : index
    %c0_13 = arith.constant 0 : index
    %9 = vector.load %arg7[%c17, %c0_12, %c0_13] : memref<18x18x4xf32, #tpu.memory_space<vmem>>, vector<1x18x4xf32>
    %10 = vector.shape_cast %9 : vector<1x18x4xf32> to vector<18x4xf32>
    %11 = vector.shape_cast %8 : vector<18x4xf32> to vector<1x18x4xf32>
    tpu.vector_store %arg7[%c17, %c0_12, %c0_13], %11 {strides = array<i32>} : memref<18x18x4xf32, #tpu.memory_space<vmem>>, vector<1x18x4xf32>,
    %cst_14 = arith.constant 0.000000e+00 : f32
    %12 = vector.broadcast %cst_14 : f32 to vector<18x1x4xf32>
    %c0_15 = arith.constant 0 : index
    %c0_16 = arith.constant 0 : index
    %c0_17 = arith.constant 0 : index
    %13 = vector.load %arg7[%c0_15, %c0_16, %c0_17] : memref<18x18x4xf32, #tpu.memory_space<vmem>>, vector<18x1x4xf32>
    tpu.vector_store %arg7[%c0_15, %c0_16, %c0_17], %12 {strides = array<i32>} : memref<18x18x4xf32, #tpu.memory_space<vmem>>, vector<18x1x4xf32>,
    %cst_18 = arith.constant 0.000000e+00 : f32
    %14 = vector.broadcast %cst_18 : f32 to vector<18x1x4xf32>
    %c0_19 = arith.constant 0 : index
    %c17_20 = arith.constant 17 : index
    %c0_21 = arith.constant 0 : index
    %15 = vector.load %arg7[%c0_19, %c17_20, %c0_21] : memref<18x18x4xf32, #tpu.memory_space<vmem>>, vector<18x1x4xf32>
    tpu.vector_store %arg7[%c0_19, %c17_20, %c0_21], %14 {strides = array<i32>} : memref<18x18x4xf32, #tpu.memory_space<vmem>>, vector<18x1x4xf32>,
    %c0_22 = arith.constant 0 : index
    %c0_23 = arith.constant 0 : index
    %c0_24 = arith.constant 0 : index
    %c0_25 = arith.constant 0 : index
    %16 = vector.load %arg1[%c0_22, %c0_23, %c0_24, %c0_25] : memref<2x16x16x8xf32, #tpu.memory_space<vmem>>, vector<1x16x16x8xf32>
    %17 = vector.shape_cast %16 : vector<1x16x16x8xf32> to vector<16x16x8xf32>
    %18 = vector.shape_cast %17 : vector<16x16x8xf32> to vector<256x8xf32>
    %cst_26 = arith.constant dense<0.000000e+00> : vector<256x4xf32>
    %19 = tpu.matmul %18, %0, %cst_26 {dimension_numbers = #tpu.dot_dimension_numbers<[1], [0], [0], [1], [0, 0, 1, 1], [], []>} : vector<256x8xf32>, vector<8x4xf32>, vector<256x4xf32> -> vector<256x4xf32>
    %20 = vector.broadcast %1 : vector<1x4xf32> to vector<256x4xf32>
    %21 = arith.addf %19, %20 : vector<256x4xf32>
    %cst_27 = arith.constant 0.000000e+00 : f32
    %22 = vector.broadcast %cst_27 : f32 to vector<256x4xf32>
    %23 = arith.cmpf ogt, %21, %22 : vector<256x4xf32>
    %cst_28 = arith.constant 1.000000e-01 : f32
    %24 = vector.broadcast %cst_28 : f32 to vector<256x4xf32>
    %25 = arith.mulf %24, %21 : vector<256x4xf32>
    %26 = arith.select %23, %21, %25 : vector<256x4xi1>, vector<256x4xf32>
    %27 = vector.shape_cast %26 : vector<256x4xf32> to vector<16x16x4xf32>
    %c1 = arith.constant 1 : index
    %c1_29 = arith.constant 1 : index
    %c0_30 = arith.constant 0 : index
    %28 = vector.load %arg7[%c1, %c1_29, %c0_30] : memref<18x18x4xf32, #tpu.memory_space<vmem>>, vector<16x16x4xf32>
    tpu.vector_store %arg7[%c1, %c1_29, %c0_30], %27 {strides = array<i32>} : memref<18x18x4xf32, #tpu.memory_space<vmem>>, vector<16x16x4xf32>,
    %c0_31 = arith.constant 0 : index
    %c0_32 = arith.constant 0 : index
    %c0_33 = arith.constant 0 : index
    %29 = vector.load %arg7[%c0_31, %c0_32, %c0_33] : memref<18x18x4xf32, #tpu.memory_space<vmem>>, vector<18x16x4xf32>
    %c0_34 = arith.constant 0 : index
    %c1_35 = arith.constant 1 : index
    %c0_36 = arith.constant 0 : index
    %30 = vector.load %arg7[%c0_34, %c1_35, %c0_36] : memref<18x18x4xf32, #tpu.memory_space<vmem>>, vector<18x16x4xf32>
    %c0_37 = arith.constant 0 : index
    %c2 = arith.constant 2 : index
    %c0_38 = arith.constant 0 : index
    %31 = vector.load %arg7[%c0_37, %c2, %c0_38] : memref<18x18x4xf32, #tpu.memory_space<vmem>>, vector<18x16x4xf32>
    %32 = tpu.concatenate %29, %30, %31 in 2 : vector<18x16x4xf32>, vector<18x16x4xf32>, vector<18x16x4xf32> -> vector<18x16x12xf32>
    %33 = vector.extract_strided_slice %32 {offsets = [0, 0, 0], sizes = [16, 16, 12], strides = [1, 1, 1]} : vector<18x16x12xf32> to vector<16x16x12xf32>
    %34 = vector.shape_cast %33 : vector<16x16x12xf32> to vector<256x12xf32>
    %35 = vector.extract_strided_slice %2 {offsets = [0, 0, 0], sizes = [1, 12, 8], strides = [1, 1, 1]} : vector<3x12x8xf32> to vector<1x12x8xf32>
    %36 = vector.shape_cast %35 : vector<1x12x8xf32> to vector<12x8xf32>
    %cst_39 = arith.constant dense<0.000000e+00> : vector<256x8xf32>
    %37 = tpu.matmul %34, %36, %cst_39 {dimension_numbers = #tpu.dot_dimension_numbers<[1], [0], [0], [1], [0, 0, 1, 1], [], []>} : vector<256x12xf32>, vector<12x8xf32>, vector<256x8xf32> -> vector<256x8xf32>
    %38 = vector.extract_strided_slice %32 {offsets = [1, 0, 0], sizes = [16, 16, 12], strides = [1, 1, 1]} : vector<18x16x12xf32> to vector<16x16x12xf32>
    %39 = vector.shape_cast %38 : vector<16x16x12xf32> to vector<256x12xf32>
    %40 = vector.extract_strided_slice %2 {offsets = [1, 0, 0], sizes = [1, 12, 8], strides = [1, 1, 1]} : vector<3x12x8xf32> to vector<1x12x8xf32>
    %41 = vector.shape_cast %40 : vector<1x12x8xf32> to vector<12x8xf32>
    %cst_40 = arith.constant dense<0.000000e+00> : vector<256x8xf32>
    %42 = tpu.matmul %39, %41, %cst_40 {dimension_numbers = #tpu.dot_dimension_numbers<[1], [0], [0], [1], [0, 0, 1, 1], [], []>} : vector<256x12xf32>, vector<12x8xf32>, vector<256x8xf32> -> vector<256x8xf32>
    %43 = arith.addf %37, %42 : vector<256x8xf32>
    %44 = vector.extract_strided_slice %32 {offsets = [2, 0, 0], sizes = [16, 16, 12], strides = [1, 1, 1]} : vector<18x16x12xf32> to vector<16x16x12xf32>
    %45 = vector.shape_cast %44 : vector<16x16x12xf32> to vector<256x12xf32>
    %46 = vector.extract_strided_slice %2 {offsets = [2, 0, 0], sizes = [1, 12, 8], strides = [1, 1, 1]} : vector<3x12x8xf32> to vector<1x12x8xf32>
    %47 = vector.shape_cast %46 : vector<1x12x8xf32> to vector<12x8xf32>
    %cst_41 = arith.constant dense<0.000000e+00> : vector<256x8xf32>
    %48 = tpu.matmul %45, %47, %cst_41 {dimension_numbers = #tpu.dot_dimension_numbers<[1], [0], [0], [1], [0, 0, 1, 1], [], []>} : vector<256x12xf32>, vector<12x8xf32>, vector<256x8xf32> -> vector<256x8xf32>
    %49 = arith.addf %43, %48 : vector<256x8xf32>
    %50 = vector.broadcast %3 : vector<1x8xf32> to vector<256x8xf32>
    %51 = arith.addf %49, %50 : vector<256x8xf32>
    %cst_42 = arith.constant 0.000000e+00 : f32
    %52 = vector.broadcast %cst_42 : f32 to vector<256x8xf32>
    %53 = arith.cmpf ogt, %51, %52 : vector<256x8xf32>
    %cst_43 = arith.constant 1.000000e-01 : f32
    %54 = vector.broadcast %cst_43 : f32 to vector<256x8xf32>
    %55 = arith.mulf %54, %51 : vector<256x8xf32>
    %56 = arith.select %53, %51, %55 : vector<256x8xi1>, vector<256x8xf32>
    %57 = vector.shape_cast %56 : vector<256x8xf32> to vector<16x16x8xf32>
    %58 = arith.addf %57, %17 : vector<16x16x8xf32>
    %c0_44 = arith.constant 0 : index
    %c0_45 = arith.constant 0 : index
    %c0_46 = arith.constant 0 : index
    %c0_47 = arith.constant 0 : index
    %59 = vector.load %arg6[%c0_44, %c0_45, %c0_46, %c0_47] : memref<2x16x16x8xf32, #tpu.memory_space<vmem>>, vector<1x16x16x8xf32>
    %60 = vector.shape_cast %59 : vector<1x16x16x8xf32> to vector<16x16x8xf32>
    %61 = vector.shape_cast %58 : vector<16x16x8xf32> to vector<1x16x16x8xf32>
    tpu.vector_store %arg6[%c0_44, %c0_45, %c0_46, %c0_47], %61 {strides = array<i32>} : memref<2x16x16x8xf32, #tpu.memory_space<vmem>>, vector<1x16x16x8xf32>,
    %c1_48 = arith.constant 1 : index
    %c0_49 = arith.constant 0 : index
    %c0_50 = arith.constant 0 : index
    %c0_51 = arith.constant 0 : index
    %62 = vector.load %arg1[%c1_48, %c0_49, %c0_50, %c0_51] : memref<2x16x16x8xf32, #tpu.memory_space<vmem>>, vector<1x16x16x8xf32>
    %63 = vector.shape_cast %62 : vector<1x16x16x8xf32> to vector<16x16x8xf32>
    %64 = vector.shape_cast %63 : vector<16x16x8xf32> to vector<256x8xf32>
    %cst_52 = arith.constant dense<0.000000e+00> : vector<256x4xf32>
    %65 = tpu.matmul %64, %0, %cst_52 {dimension_numbers = #tpu.dot_dimension_numbers<[1], [0], [0], [1], [0, 0, 1, 1], [], []>} : vector<256x8xf32>, vector<8x4xf32>, vector<256x4xf32> -> vector<256x4xf32>
    %66 = vector.broadcast %1 : vector<1x4xf32> to vector<256x4xf32>
    %67 = arith.addf %65, %66 : vector<256x4xf32>
    %cst_53 = arith.constant 0.000000e+00 : f32
    %68 = vector.broadcast %cst_53 : f32 to vector<256x4xf32>
    %69 = arith.cmpf ogt, %67, %68 : vector<256x4xf32>
    %cst_54 = arith.constant 1.000000e-01 : f32
    %70 = vector.broadcast %cst_54 : f32 to vector<256x4xf32>
    %71 = arith.mulf %70, %67 : vector<256x4xf32>
    %72 = arith.select %69, %67, %71 : vector<256x4xi1>, vector<256x4xf32>
    %73 = vector.shape_cast %72 : vector<256x4xf32> to vector<16x16x4xf32>
    %c1_55 = arith.constant 1 : index
    %c1_56 = arith.constant 1 : index
    %c0_57 = arith.constant 0 : index
    %74 = vector.load %arg7[%c1_55, %c1_56, %c0_57] : memref<18x18x4xf32, #tpu.memory_space<vmem>>, vector<16x16x4xf32>
    tpu.vector_store %arg7[%c1_55, %c1_56, %c0_57], %73 {strides = array<i32>} : memref<18x18x4xf32, #tpu.memory_space<vmem>>, vector<16x16x4xf32>,
    %c0_58 = arith.constant 0 : index
    %c0_59 = arith.constant 0 : index
    %c0_60 = arith.constant 0 : index
    %75 = vector.load %arg7[%c0_58, %c0_59, %c0_60] : memref<18x18x4xf32, #tpu.memory_space<vmem>>, vector<18x16x4xf32>
    %c0_61 = arith.constant 0 : index
    %c1_62 = arith.constant 1 : index
    %c0_63 = arith.constant 0 : index
    %76 = vector.load %arg7[%c0_61, %c1_62, %c0_63] : memref<18x18x4xf32, #tpu.memory_space<vmem>>, vector<18x16x4xf32>
    %c0_64 = arith.constant 0 : index
    %c2_65 = arith.constant 2 : index
    %c0_66 = arith.constant 0 : index
    %77 = vector.load %arg7[%c0_64, %c2_65, %c0_66] : memref<18x18x4xf32, #tpu.memory_space<vmem>>, vector<18x16x4xf32>
    %78 = tpu.concatenate %75, %76, %77 in 2 : vector<18x16x4xf32>, vector<18x16x4xf32>, vector<18x16x4xf32> -> vector<18x16x12xf32>
    %79 = vector.extract_strided_slice %78 {offsets = [0, 0, 0], sizes = [16, 16, 12], strides = [1, 1, 1]} : vector<18x16x12xf32> to vector<16x16x12xf32>
    %80 = vector.shape_cast %79 : vector<16x16x12xf32> to vector<256x12xf32>
    %81 = vector.extract_strided_slice %2 {offsets = [0, 0, 0], sizes = [1, 12, 8], strides = [1, 1, 1]} : vector<3x12x8xf32> to vector<1x12x8xf32>
    %82 = vector.shape_cast %81 : vector<1x12x8xf32> to vector<12x8xf32>
    %cst_67 = arith.constant dense<0.000000e+00> : vector<256x8xf32>
    %83 = tpu.matmul %80, %82, %cst_67 {dimension_numbers = #tpu.dot_dimension_numbers<[1], [0], [0], [1], [0, 0, 1, 1], [], []>} : vector<256x12xf32>, vector<12x8xf32>, vector<256x8xf32> -> vector<256x8xf32>
    %84 = vector.extract_strided_slice %78 {offsets = [1, 0, 0], sizes = [16, 16, 12], strides = [1, 1, 1]} : vector<18x16x12xf32> to vector<16x16x12xf32>
    %85 = vector.shape_cast %84 : vector<16x16x12xf32> to vector<256x12xf32>
    %86 = vector.extract_strided_slice %2 {offsets = [1, 0, 0], sizes = [1, 12, 8], strides = [1, 1, 1]} : vector<3x12x8xf32> to vector<1x12x8xf32>
    %87 = vector.shape_cast %86 : vector<1x12x8xf32> to vector<12x8xf32>
    %cst_68 = arith.constant dense<0.000000e+00> : vector<256x8xf32>
    %88 = tpu.matmul %85, %87, %cst_68 {dimension_numbers = #tpu.dot_dimension_numbers<[1], [0], [0], [1], [0, 0, 1, 1], [], []>} : vector<256x12xf32>, vector<12x8xf32>, vector<256x8xf32> -> vector<256x8xf32>
    %89 = arith.addf %83, %88 : vector<256x8xf32>
    %90 = vector.extract_strided_slice %78 {offsets = [2, 0, 0], sizes = [16, 16, 12], strides = [1, 1, 1]} : vector<18x16x12xf32> to vector<16x16x12xf32>
    %91 = vector.shape_cast %90 : vector<16x16x12xf32> to vector<256x12xf32>
    %92 = vector.extract_strided_slice %2 {offsets = [2, 0, 0], sizes = [1, 12, 8], strides = [1, 1, 1]} : vector<3x12x8xf32> to vector<1x12x8xf32>
    %93 = vector.shape_cast %92 : vector<1x12x8xf32> to vector<12x8xf32>
    %cst_69 = arith.constant dense<0.000000e+00> : vector<256x8xf32>
    %94 = tpu.matmul %91, %93, %cst_69 {dimension_numbers = #tpu.dot_dimension_numbers<[1], [0], [0], [1], [0, 0, 1, 1], [], []>} : vector<256x12xf32>, vector<12x8xf32>, vector<256x8xf32> -> vector<256x8xf32>
    %95 = arith.addf %89, %94 : vector<256x8xf32>
    %96 = vector.broadcast %3 : vector<1x8xf32> to vector<256x8xf32>
    %97 = arith.addf %95, %96 : vector<256x8xf32>
    %cst_70 = arith.constant 0.000000e+00 : f32
    %98 = vector.broadcast %cst_70 : f32 to vector<256x8xf32>
    %99 = arith.cmpf ogt, %97, %98 : vector<256x8xf32>
    %cst_71 = arith.constant 1.000000e-01 : f32
    %100 = vector.broadcast %cst_71 : f32 to vector<256x8xf32>
    %101 = arith.mulf %100, %97 : vector<256x8xf32>
    %102 = arith.select %99, %97, %101 : vector<256x8xi1>, vector<256x8xf32>
    %103 = vector.shape_cast %102 : vector<256x8xf32> to vector<16x16x8xf32>
    %104 = arith.addf %103, %63 : vector<16x16x8xf32>
    %c1_72 = arith.constant 1 : index
    %c0_73 = arith.constant 0 : index
    %c0_74 = arith.constant 0 : index
    %c0_75 = arith.constant 0 : index
    %105 = vector.load %arg6[%c1_72, %c0_73, %c0_74, %c0_75] : memref<2x16x16x8xf32, #tpu.memory_space<vmem>>, vector<1x16x16x8xf32>
    %106 = vector.shape_cast %105 : vector<1x16x16x8xf32> to vector<16x16x8xf32>
    %107 = vector.shape_cast %104 : vector<16x16x8xf32> to vector<1x16x16x8xf32>
    tpu.vector_store %arg6[%c1_72, %c0_73, %c0_74, %c0_75], %107 {strides = array<i32>} : memref<2x16x16x8xf32, #tpu.memory_space<vmem>>, vector<1x16x16x8xf32>,
    return
  }
  func.func @transform_0(%arg0: i32) -> (i32, i32, i32, i32) {
    %c0_i32 = arith.constant 0 : i32
    %c0_i32_0 = arith.constant 0 : i32
    %c0_i32_1 = arith.constant 0 : i32
    %c0_i32_2 = arith.constant 0 : i32
    return %arg0, %c0_i32, %c0_i32_0, %c0_i32_1 : i32, i32, i32, i32
  }
  func.func @transform_1(%arg0: i32) -> (i32, i32) {
    %c0_i32 = arith.constant 0 : i32
    %c0_i32_0 = arith.constant 0 : i32
    %c0_i32_1 = arith.constant 0 : i32
    return %c0_i32, %c0_i32_0 : i32, i32
  }
  func.func @transform_2(%arg0: i32) -> (i32, i32) {
    %c0_i32 = arith.constant 0 : i32
    %c0_i32_0 = arith.constant 0 : i32
    %c0_i32_1 = arith.constant 0 : i32
    return %c0_i32, %c0_i32_0 : i32, i32
  }
  func.func @transform_3(%arg0: i32) -> (i32, i32, i32) {
    %c0_i32 = arith.constant 0 : i32
    %c0_i32_0 = arith.constant 0 : i32
    %c0_i32_1 = arith.constant 0 : i32
    %c0_i32_2 = arith.constant 0 : i32
    return %c0_i32, %c0_i32_0, %c0_i32_1 : i32, i32, i32
  }
  func.func @transform_4(%arg0: i32) -> (i32, i32) {
    %c0_i32 = arith.constant 0 : i32
    %c0_i32_0 = arith.constant 0 : i32
    %c0_i32_1 = arith.constant 0 : i32
    return %c0_i32, %c0_i32_0 : i32, i32
  }
  func.func @transform_5(%arg0: i32) -> (i32, i32, i32, i32) {
    %c0_i32 = arith.constant 0 : i32
    %c0_i32_0 = arith.constant 0 : i32
    %c0_i32_1 = arith.constant 0 : i32
    %c0_i32_2 = arith.constant 0 : i32
    return %arg0, %c0_i32, %c0_i32_0, %c0_i32_1 : i32, i32, i32, i32
  }
}

</mosaic_0001>

<llo_original>
// kernel: tpu_custom_call.1
$region0: #{tpu_custom_call.1}
  #allocation0 [shape = 'u32[]', space=smem, size = 0x4, offset = 0x4, fixed_abs, tag = 'smem constant byte address 0x4 - core index']
  #allocation1 [shape = 'u32[72,128]{1,0:T(1,128)}', space=vmem, size = 0x9000, scoped, tag = 'internal scratch']
  #allocation2 [shape = 'f32[18,18,4]{2,1,0:T(8,128)}', space=vmem, size = 0x36000, scoped, tag = 'scratch operand']
  %s0 = inlined_call_operand.vmem [shape: f32[2,16,16,8], index: 0, kind: input, shape index: {}]
  %s1 = inlined_call_operand.vmem [shape: f32[8,4], index: 1, kind: input, shape index: {}]
  %s2 = inlined_call_operand.vmem [shape: f32[1,4], index: 2, kind: input, shape index: {}]
  %s3 = inlined_call_operand.vmem [shape: f32[3,12,8], index: 3, kind: input, shape index: {}]
  %s4 = inlined_call_operand.vmem [shape: f32[1,8], index: 4, kind: input, shape index: {}]
  %s5 = inlined_call_operand.vmem [shape: f32[2,16,16,8], index: 5, kind: output, shape index: {}]
  %s6 = sld [smem:[#allocation0]]
  $region30: #{tpu_custom_call.1} parent=0
    _
  %s8 = ssub.s32 1, %s6
  %s9 = scalar_select 0, %s8, %s6
  // Predicated region
  $region2: #{tpu_custom_call.1} parent=0 // pred_check
    _
  $region3: #{tpu_custom_call.1} parent=0 // pred_check_branch
    %11 = sbr.rel (0) target = $region5
  $region4: #{tpu_custom_call.1} parent=0 // pred_region
    _
  $region5: #{tpu_custom_call.1} parent=0 // pred_fallthru
    _
  // Predicated region
  $region6: #{tpu_custom_call.1} parent=0 // pred_check
    _
  $region7: #{tpu_custom_call.1} parent=0 // pred_check_branch
    %13 = sbr.rel (0) target = $region9
  $region8: #{tpu_custom_call.1} parent=0 // pred_region
    _
  $region9: #{tpu_custom_call.1} parent=0 // pred_fallthru
    _
  // Predicated region
  $region10: #{tpu_custom_call.1} parent=0 // pred_check
    _
  $region11: #{tpu_custom_call.1} parent=0 // pred_check_branch
    %15 = sbr.rel (0) target = $region13
  $region12: #{tpu_custom_call.1} parent=0 // pred_region
    _
  $region13: #{tpu_custom_call.1} parent=0 // pred_fallthru
    _
  // Predicated region
  $region14: #{tpu_custom_call.1} parent=0 // pred_check
    _
  $region15: #{tpu_custom_call.1} parent=0 // pred_check_branch
    %17 = sbr.rel (0) target = $region17
  $region16: #{tpu_custom_call.1} parent=0 // pred_region
    _
  $region17: #{tpu_custom_call.1} parent=0 // pred_fallthru
    _
  // Predicated region
  $region18: #{tpu_custom_call.1} parent=0 // pred_check
    _
  $region19: #{tpu_custom_call.1} parent=0 // pred_check_branch
    %19 = sbr.rel (0) target = $region21
  $region20: #{tpu_custom_call.1} parent=0 // pred_region
    _
  $region21: #{tpu_custom_call.1} parent=0 // pred_fallthru
    _
  %v20 = vld [vmem:[%s1] sm:$0xff]
  %v21 = vld [vmem:[%s2] sm:$0x1]
  %v22 = vld [vmem:[%s3] sm:$0xff]
  %v23 = vld [vmem:[%s3 + $0x8] sm:$0xf]
  %v24 = vld [vmem:[%s3 + $0x10] sm:$0xff]
  %v25 = vld [vmem:[%s3 + $0x18] sm:$0xf]
  %v26 = vld [vmem:[%s3 + $0x20] sm:$0xff]
  %v27 = vld [vmem:[%s3 + $0x28] sm:$0xf]
  %v28 = vld [vmem:[%s4] sm:$0x1]
  %vm29 = vcmask 31744
  %30 = vst.msk [vmem:[#allocation2] sm:$0xff] %vm29, 0.0
  %31 = vst.msk [vmem:[#allocation2 + $0x8] sm:$0xff] %vm29, 0.0
  %vm32 = vcmask 25600
  %33 = vst.msk [vmem:[#allocation2 + $0x10] sm:$0x3] %vm32, 0.0
  %s34 = scalar_lea.vmem [#allocation2], 408
  %35 = vst.msk [vmem:[%s34] sm:$0xff] %vm29, 0.0
  %36 = vst.msk [vmem:[%s34 + $0x8] sm:$0xff] %vm29, 0.0
  %37 = vst.msk [vmem:[%s34 + $0x10] sm:$0x3] %vm32, 0.0
  %vm38 = vcmask 24576
  %39 = vst.msk [vmem:[#allocation2] sm:$0x1] %vm38, 0.0
  %40 = vst.msk [vmem:[#allocation2 + $0x18] sm:$0x1] %vm38, 0.0
  %41 = vst.msk [vmem:[#allocation2 + $0x30] sm:$0x1] %vm38, 0.0
  %42 = vst.msk [vmem:[#allocation2 + $0x48] sm:$0x1] %vm38, 0.0
  %43 = vst.msk [vmem:[#allocation2 + $0x60] sm:$0x1] %vm38, 0.0
  %44 = vst.msk [vmem:[#allocation2 + $0x78] sm:$0x1] %vm38, 0.0
  %45 = vst.msk [vmem:[#allocation2 + $0x90] sm:$0x1] %vm38, 0.0
  %46 = vst.msk [vmem:[#allocation2 + $0xa8] sm:$0x1] %vm38, 0.0
  %47 = vst.msk [vmem:[#allocation2 + $0xc0] sm:$0x1] %vm38, 0.0
  %48 = vst.msk [vmem:[#allocation2 + $0xd8] sm:$0x1] %vm38, 0.0
  %49 = vst.msk [vmem:[#allocation2 + $0xf0] sm:$0x1] %vm38, 0.0
  %50 = vst.msk [vmem:[#allocation2 + $0x108] sm:$0x1] %vm38, 0.0
  %51 = vst.msk [vmem:[#allocation2 + $0x120] sm:$0x1] %vm38, 0.0
  %52 = vst.msk [vmem:[#allocation2 + $0x138] sm:$0x1] %vm38, 0.0
  %53 = vst.msk [vmem:[#allocation2 + $0x150] sm:$0x1] %vm38, 0.0
  %54 = vst.msk [vmem:[#allocation2 + $0x168] sm:$0x1] %vm38, 0.0
  %55 = vst.msk [vmem:[#allocation2 + $0x180] sm:$0x1] %vm38, 0.0
  %56 = vst.msk [vmem:[#allocation2 + $0x198] sm:$0x1] %vm38, 0.0
  %57 = vst.msk [vmem:[#allocation2 + $0x11] sm:$0x1] %vm38, 0.0
  %58 = vst.msk [vmem:[#allocation2 + $0x29] sm:$0x1] %vm38, 0.0
  %59 = vst.msk [vmem:[#allocation2 + $0x41] sm:$0x1] %vm38, 0.0
  %60 = vst.msk [vmem:[#allocation2 + $0x59] sm:$0x1] %vm38, 0.0
  %61 = vst.msk [vmem:[#allocation2 + $0x71] sm:$0x1] %vm38, 0.0
  %62 = vst.msk [vmem:[#allocation2 + $0x89] sm:$0x1] %vm38, 0.0
  %63 = vst.msk [vmem:[#allocation2 + $0xa1] sm:$0x1] %vm38, 0.0
  %64 = vst.msk [vmem:[#allocation2 + $0xb9] sm:$0x1] %vm38, 0.0
  %65 = vst.msk [vmem:[#allocation2 + $0xd1] sm:$0x1] %vm38, 0.0
  %66 = vst.msk [vmem:[#allocation2 + $0xe9] sm:$0x1] %vm38, 0.0
  %67 = vst.msk [vmem:[#allocation2 + $0x101] sm:$0x1] %vm38, 0.0
  %68 = vst.msk [vmem:[#allocation2 + $0x119] sm:$0x1] %vm38, 0.0
  %69 = vst.msk [vmem:[#allocation2 + $0x131] sm:$0x1] %vm38, 0.0
  %70 = vst.msk [vmem:[#allocation2 + $0x149] sm:$0x1] %vm38, 0.0
  %71 = vst.msk [vmem:[#allocation2 + $0x161] sm:$0x1] %vm38, 0.0
  %72 = vst.msk [vmem:[#allocation2 + $0x179] sm:$0x1] %vm38, 0.0
  %73 = vst.msk [vmem:[#allocation2 + $0x191] sm:$0x1] %vm38, 0.0
  %74 = vst.msk [vmem:[#allocation2 + $0x1a9] sm:$0x1] %vm38, 0.0
  %v75 = vld [vmem:[%s0] sm:$0xff]
  %v76 = vld [vmem:[%s0 + $0x8] sm:$0xff]
  %v77 = vld [vmem:[%s0 + $0x10] sm:$0xff]
  %v78 = vld [vmem:[%s0 + $0x18] sm:$0xff]
  %v79 = vld [vmem:[%s0 + $0x20] sm:$0xff]
  %v80 = vld [vmem:[%s0 + $0x28] sm:$0xff]
  %v81 = vld [vmem:[%s0 + $0x30] sm:$0xff]
  %v82 = vld [vmem:[%s0 + $0x38] sm:$0xff]
  %v83 = vld [vmem:[%s0 + $0x40] sm:$0xff]
  %v84 = vld [vmem:[%s0 + $0x48] sm:$0xff]
  %v85 = vld [vmem:[%s0 + $0x50] sm:$0xff]
  %v86 = vld [vmem:[%s0 + $0x58] sm:$0xff]
  %v87 = vld [vmem:[%s0 + $0x60] sm:$0xff]
  %v88 = vld [vmem:[%s0 + $0x68] sm:$0xff]
  %v89 = vld [vmem:[%s0 + $0x70] sm:$0xff]
  %v90 = vld [vmem:[%s0 + $0x78] sm:$0xff]
  %v91 = vld [vmem:[%s0 + $0x80] sm:$0xff]
  %v92 = vld [vmem:[%s0 + $0x88] sm:$0xff]
  %v93 = vld [vmem:[%s0 + $0x90] sm:$0xff]
  %v94 = vld [vmem:[%s0 + $0x98] sm:$0xff]
  %v95 = vld [vmem:[%s0 + $0xa0] sm:$0xff]
  %v96 = vld [vmem:[%s0 + $0xa8] sm:$0xff]
  %v97 = vld [vmem:[%s0 + $0xb0] sm:$0xff]
  %v98 = vld [vmem:[%s0 + $0xb8] sm:$0xff]
  %v99 = vld [vmem:[%s0 + $0xc0] sm:$0xff]
  %v100 = vld [vmem:[%s0 + $0xc8] sm:$0xff]
  %v101 = vld [vmem:[%s0 + $0xd0] sm:$0xff]
  %v102 = vld [vmem:[%s0 + $0xd8] sm:$0xff]
  %v103 = vld [vmem:[%s0 + $0xe0] sm:$0xff]
  %v104 = vld [vmem:[%s0 + $0xe8] sm:$0xff]
  %v105 = vld [vmem:[%s0 + $0xf0] sm:$0xff]
  %v106 = vld [vmem:[%s0 + $0xf8] sm:$0xff]
  %v108 = vperm.slane %v21, 0
  %vm110 = vcmask 64512
  %v112 = vsel %vm110, %v75, 0
  %v115 = vsel %vm110, %v76, 0
  %v118 = vsel %vm110, %v77, 0
  %v121 = vsel %vm110, %v78, 0
  %v124 = vsel %vm110, %v79, 0
  %v127 = vsel %vm110, %v80, 0
  %v130 = vsel %vm110, %v81, 0
  %v133 = vsel %vm110, %v82, 0
  %v136 = vsel %vm110, %v83, 0
  %v139 = vsel %vm110, %v84, 0
  %v142 = vsel %vm110, %v85, 0
  %v145 = vsel %vm110, %v86, 0
  %v148 = vsel %vm110, %v87, 0
  %v151 = vsel %vm110, %v88, 0
  %v154 = vsel %vm110, %v89, 0
  %v157 = vsel %vm110, %v90, 0
  %v160 = vsel %vm110, %v91, 0
  %v163 = vsel %vm110, %v92, 0
  %v166 = vsel %vm110, %v93, 0
  %v169 = vsel %vm110, %v94, 0
  %v172 = vsel %vm110, %v95, 0
  %v175 = vsel %vm110, %v96, 0
  %v178 = vsel %vm110, %v97, 0
  %v181 = vsel %vm110, %v98, 0
  %v184 = vsel %vm110, %v99, 0
  %v187 = vsel %vm110, %v100, 0
  %v190 = vsel %vm110, %v101, 0
  %v193 = vsel %vm110, %v102, 0
  %v196 = vsel %vm110, %v103, 0
  %v199 = vsel %vm110, %v104, 0
  %v202 = vsel %vm110, %v105, 0
  %v205 = vsel %vm110, %v106, 0
  %207 = vmatpush.msra.mxu0 0.0
  %208 = vmatpush.msra.mxu0 0.0
  %209 = vmatpush.msra.mxu0 0.0
  %210 = vmatpush.msra.mxu0 0.0
  %211 = vmatpush.msra.mxu0 0.0
  %212 = vmatpush.msra.mxu0 0.0
  %213 = vmatpush.msra.mxu0 0.0
  %214 = vmatpush.msra.mxu0 0.0
  %215 = vmatpush.msra.mxu0 0.0
  %216 = vmatpush.msra.mxu0 0.0
  %217 = vmatpush.msra.mxu0 0.0
  %218 = vmatpush.msra.mxu0 0.0
  %219 = vmatpush.msra.mxu0 0.0
  %220 = vmatpush.msra.mxu0 0.0
  %221 = vmatpush.msra.mxu0 0.0
  %222 = vmatpush.msra.mxu0 %v20
  %223 = vmatmul.f32.gmra.mxu0 %v112
  %v224 = vpop.f32.mrf.mxu0
  %v225 = vadd.f32 %v108, %v224
  %226 = vmatmul.f32.gmra.mxu0 %v115
  %v227 = vpop.f32.mrf.mxu0
  %v228 = vadd.f32 %v108, %v227
  %229 = vmatmul.f32.gmra.mxu0 %v118
  %v230 = vpop.f32.mrf.mxu0
  %v231 = vadd.f32 %v108, %v230
  %232 = vmatmul.f32.gmra.mxu0 %v121
  %v233 = vpop.f32.mrf.mxu0
  %v234 = vadd.f32 %v108, %v233
  %235 = vmatmul.f32.gmra.mxu0 %v124
  %v236 = vpop.f32.mrf.mxu0
  %v237 = vadd.f32 %v108, %v236
  %238 = vmatmul.f32.gmra.mxu0 %v127
  %v239 = vpop.f32.mrf.mxu0
  %v240 = vadd.f32 %v108, %v239
  %241 = vmatmul.f32.gmra.mxu0 %v130
  %v242 = vpop.f32.mrf.mxu0
  %v243 = vadd.f32 %v108, %v242
  %244 = vmatmul.f32.gmra.mxu0 %v133
  %v245 = vpop.f32.mrf.mxu0
  %v246 = vadd.f32 %v108, %v245
  %247 = vmatmul.f32.gmra.mxu0 %v136
  %v248 = vpop.f32.mrf.mxu0
  %v249 = vadd.f32 %v108, %v248
  %250 = vmatmul.f32.gmra.mxu0 %v139
  %v251 = vpop.f32.mrf.mxu0
  %v252 = vadd.f32 %v108, %v251
  %253 = vmatmul.f32.gmra.mxu0 %v142
  %v254 = vpop.f32.mrf.mxu0
  %v255 = vadd.f32 %v108, %v254
  %256 = vmatmul.f32.gmra.mxu0 %v145
  %v257 = vpop.f32.mrf.mxu0
  %v258 = vadd.f32 %v108, %v257
  %259 = vmatmul.f32.gmra.mxu0 %v148
  %v260 = vpop.f32.mrf.mxu0
  %v261 = vadd.f32 %v108, %v260
  %262 = vmatmul.f32.gmra.mxu0 %v151
  %v263 = vpop.f32.mrf.mxu0
  %v264 = vadd.f32 %v108, %v263
  %265 = vmatmul.f32.gmra.mxu0 %v154
  %v266 = vpop.f32.mrf.mxu0
  %v267 = vadd.f32 %v108, %v266
  %268 = vmatmul.f32.gmra.mxu0 %v157
  %v269 = vpop.f32.mrf.mxu0
  %v270 = vadd.f32 %v108, %v269
  %271 = vmatmul.f32.gmra.mxu0 %v160
  %v272 = vpop.f32.mrf.mxu0
  %v273 = vadd.f32 %v108, %v272
  %274 = vmatmul.f32.gmra.mxu0 %v163
  %v275 = vpop.f32.mrf.mxu0
  %v276 = vadd.f32 %v108, %v275
  %277 = vmatmul.f32.gmra.mxu0 %v166
  %v278 = vpop.f32.mrf.mxu0
  %v279 = vadd.f32 %v108, %v278
  %280 = vmatmul.f32.gmra.mxu0 %v169
  %v281 = vpop.f32.mrf.mxu0
  %v282 = vadd.f32 %v108, %v281
  %283 = vmatmul.f32.gmra.mxu0 %v172
  %v284 = vpop.f32.mrf.mxu0
  %v285 = vadd.f32 %v108, %v284
  %286 = vmatmul.f32.gmra.mxu0 %v175
  %v287 = vpop.f32.mrf.mxu0
  %v288 = vadd.f32 %v108, %v287
  %289 = vmatmul.f32.gmra.mxu0 %v178
  %v290 = vpop.f32.mrf.mxu0
  %v291 = vadd.f32 %v108, %v290
  %292 = vmatmul.f32.gmra.mxu0 %v181
  %v293 = vpop.f32.mrf.mxu0
  %v294 = vadd.f32 %v108, %v293
  %295 = vmatmul.f32.gmra.mxu0 %v184
  %v296 = vpop.f32.mrf.mxu0
  %v297 = vadd.f32 %v108, %v296
  %298 = vmatmul.f32.gmra.mxu0 %v187
  %v299 = vpop.f32.mrf.mxu0
  %v300 = vadd.f32 %v108, %v299
  %301 = vmatmul.f32.gmra.mxu0 %v190
  %v302 = vpop.f32.mrf.mxu0
  %v303 = vadd.f32 %v108, %v302
  %304 = vmatmul.f32.gmra.mxu0 %v193
  %v305 = vpop.f32.mrf.mxu0
  %v306 = vadd.f32 %v108, %v305
  %307 = vmatmul.f32.gmra.mxu0 %v196
  %v308 = vpop.f32.mrf.mxu0
  %v309 = vadd.f32 %v108, %v308
  %310 = vmatmul.f32.gmra.mxu0 %v199
  %v311 = vpop.f32.mrf.mxu0
  %v312 = vadd.f32 %v108, %v311
  %313 = vmatmul.f32.gmra.mxu0 %v202
  %v314 = vpop.f32.mrf.mxu0
  %v315 = vadd.f32 %v108, %v314
  %316 = vmatmul.f32.gmra.mxu0 %v205
  %v317 = vpop.f32.mrf.mxu0
  %v318 = vadd.f32 %v108, %v317
  %319 = vdwg.mxu0
  %vm320 = vcmp.gt.f32.partialorder %v225, 0.0
  %vm321 = vcmp.gt.f32.partialorder %v228, 0.0
  %vm322 = vcmp.gt.f32.partialorder %v231, 0.0
  %vm323 = vcmp.gt.f32.partialorder %v234, 0.0
  %vm324 = vcmp.gt.f32.partialorder %v237, 0.0
  %vm325 = vcmp.gt.f32.partialorder %v240, 0.0
  %vm326 = vcmp.gt.f32.partialorder %v243, 0.0
  %vm327 = vcmp.gt.f32.partialorder %v246, 0.0
  %vm328 = vcmp.gt.f32.partialorder %v249, 0.0
  %vm329 = vcmp.gt.f32.partialorder %v252, 0.0
  %vm330 = vcmp.gt.f32.partialorder %v255, 0.0
  %vm331 = vcmp.gt.f32.partialorder %v258, 0.0
  %vm332 = vcmp.gt.f32.partialorder %v261, 0.0
  %vm333 = vcmp.gt.f32.partialorder %v264, 0.0
  %vm334 = vcmp.gt.f32.partialorder %v267, 0.0
  %vm335 = vcmp.gt.f32.partialorder %v270, 0.0
  %vm336 = vcmp.gt.f32.partialorder %v273, 0.0
  %vm337 = vcmp.gt.f32.partialorder %v276, 0.0
  %vm338 = vcmp.gt.f32.partialorder %v279, 0.0
  %vm339 = vcmp.gt.f32.partialorder %v282, 0.0
  %vm340 = vcmp.gt.f32.partialorder %v285, 0.0
  %vm341 = vcmp.gt.f32.partialorder %v288, 0.0
  %vm342 = vcmp.gt.f32.partialorder %v291, 0.0
  %vm343 = vcmp.gt.f32.partialorder %v294, 0.0
  %vm344 = vcmp.gt.f32.partialorder %v297, 0.0
  %vm345 = vcmp.gt.f32.partialorder %v300, 0.0
  %vm346 = vcmp.gt.f32.partialorder %v303, 0.0
  %vm347 = vcmp.gt.f32.partialorder %v306, 0.0
  %vm348 = vcmp.gt.f32.partialorder %v309, 0.0
  %vm349 = vcmp.gt.f32.partialorder %v312, 0.0
  %vm350 = vcmp.gt.f32.partialorder %v315, 0.0
  %vm351 = vcmp.gt.f32.partialorder %v318, 0.0
  %v352 = vmul.f32 %v225, 0.1
  %v353 = vmul.f32 %v228, 0.1
  %v354 = vmul.f32 %v231, 0.1
  %v355 = vmul.f32 %v234, 0.1
  %v356 = vmul.f32 %v237, 0.1
  %v357 = vmul.f32 %v240, 0.1
  %v358 = vmul.f32 %v243, 0.1
  %v359 = vmul.f32 %v246, 0.1
  %v360 = vmul.f32 %v249, 0.1
  %v361 = vmul.f32 %v252, 0.1
  %v362 = vmul.f32 %v255, 0.1
  %v363 = vmul.f32 %v258, 0.1
  %v364 = vmul.f32 %v261, 0.1
  %v365 = vmul.f32 %v264, 0.1
  %v366 = vmul.f32 %v267, 0.1
  %v367 = vmul.f32 %v270, 0.1
  %v368 = vmul.f32 %v273, 0.1
  %v369 = vmul.f32 %v276, 0.1
  %v370 = vmul.f32 %v279, 0.1
  %v371 = vmul.f32 %v282, 0.1
  %v372 = vmul.f32 %v285, 0.1
  %v373 = vmul.f32 %v288, 0.1
  %v374 = vmul.f32 %v291, 0.1
  %v375 = vmul.f32 %v294, 0.1
  %v376 = vmul.f32 %v297, 0.1
  %v377 = vmul.f32 %v300, 0.1
  %v378 = vmul.f32 %v303, 0.1
  %v379 = vmul.f32 %v306, 0.1
  %v380 = vmul.f32 %v309, 0.1
  %v381 = vmul.f32 %v312, 0.1
  %v382 = vmul.f32 %v315, 0.1
  %v383 = vmul.f32 %v318, 0.1
  %v384 = vsel %vm320, %v225, %v352
  %v385 = vsel %vm321, %v228, %v353
  %v386 = vsel %vm322, %v231, %v354
  %v387 = vsel %vm323, %v234, %v355
  %v388 = vsel %vm324, %v237, %v356
  %v389 = vsel %vm325, %v240, %v357
  %v390 = vsel %vm326, %v243, %v358
  %v391 = vsel %vm327, %v246, %v359
  %v392 = vsel %vm328, %v249, %v360
  %v393 = vsel %vm329, %v252, %v361
  %v394 = vsel %vm330, %v255, %v362
  %v395 = vsel %vm331, %v258, %v363
  %v396 = vsel %vm332, %v261, %v364
  %v397 = vsel %vm333, %v264, %v365
  %v398 = vsel %vm334, %v267, %v366
  %v399 = vsel %vm335, %v270, %v367
  %v400 = vsel %vm336, %v273, %v368
  %v401 = vsel %vm337, %v276, %v369
  %v402 = vsel %vm338, %v279, %v370
  %v403 = vsel %vm339, %v282, %v371
  %v404 = vsel %vm340, %v285, %v372
  %v405 = vsel %vm341, %v288, %v373
  %v406 = vsel %vm342, %v291, %v374
  %v407 = vsel %vm343, %v294, %v375
  %v408 = vsel %vm344, %v297, %v376
  %v409 = vsel %vm345, %v300, %v377
  %v410 = vsel %vm346, %v303, %v378
  %v411 = vsel %vm347, %v306, %v379
  %v412 = vsel %vm348, %v309, %v380
  %v413 = vsel %vm349, %v312, %v381
  %v414 = vsel %vm350, %v315, %v382
  %v415 = vsel %vm351, %v318, %v383
  %s416 = scalar_lea.vmem [#allocation2], 24
  %417 = vst.msk [vmem:[%s416 + $0x1] sm:$0xff] %vm29, %v384
  %418 = vst.msk [vmem:[%s416 + $0x9] sm:$0xff] %vm29, %v385
  %419 = vst.msk [vmem:[%s416 + $0x19] sm:$0xff] %vm29, %v386
  %420 = vst.msk [vmem:[%s416 + $0x21] sm:$0xff] %vm29, %v387
  %421 = vst.msk [vmem:[%s416 + $0x31] sm:$0xff] %vm29, %v388
  %422 = vst.msk [vmem:[%s416 + $0x39] sm:$0xff] %vm29, %v389
  %423 = vst.msk [vmem:[%s416 + $0x49] sm:$0xff] %vm29, %v390
  %424 = vst.msk [vmem:[%s416 + $0x51] sm:$0xff] %vm29, %v391
  %425 = vst.msk [vmem:[%s416 + $0x61] sm:$0xff] %vm29, %v392
  %426 = vst.msk [vmem:[%s416 + $0x69] sm:$0xff] %vm29, %v393
  %427 = vst.msk [vmem:[%s416 + $0x79] sm:$0xff] %vm29, %v394
  %428 = vst.msk [vmem:[%s416 + $0x81] sm:$0xff] %vm29, %v395
  %429 = vst.msk [vmem:[%s416 + $0x91] sm:$0xff] %vm29, %v396
  %430 = vst.msk [vmem:[%s416 + $0x99] sm:$0xff] %vm29, %v397
  %431 = vst.msk [vmem:[%s416 + $0xa9] sm:$0xff] %vm29, %v398
  %432 = vst.msk [vmem:[%s416 + $0xb1] sm:$0xff] %vm29, %v399
  %433 = vst.msk [vmem:[%s416 + $0xc1] sm:$0xff] %vm29, %v400
  %434 = vst.msk [vmem:[%s416 + $0xc9] sm:$0xff] %vm29, %v401
  %435 = vst.msk [vmem:[%s416 + $0xd9] sm:$0xff] %vm29, %v402
  %436 = vst.msk [vmem:[%s416 + $0xe1] sm:$0xff] %vm29, %v403
  %437 = vst.msk [vmem:[%s416 + $0xf1] sm:$0xff] %vm29, %v404
  %438 = vst.msk [vmem:[%s416 + $0xf9] sm:$0xff] %vm29, %v405
  %439 = vst.msk [vmem:[%s416 + $0x109] sm:$0xff] %vm29, %v406
  %440 = vst.msk [vmem:[%s416 + $0x111] sm:$0xff] %vm29, %v407
  %441 = vst.msk [vmem:[%s416 + $0x121] sm:$0xff] %vm29, %v408
  %442 = vst.msk [vmem:[%s416 + $0x129] sm:$0xff] %vm29, %v409
  %443 = vst.msk [vmem:[%s416 + $0x139] sm:$0xff] %vm29, %v410
  %444 = vst.msk [vmem:[%s416 + $0x141] sm:$0xff] %vm29, %v411
  %445 = vst.msk [vmem:[%s416 + $0x151] sm:$0xff] %vm29, %v412
  %446 = vst.msk [vmem:[%s416 + $0x159] sm:$0xff] %vm29, %v413
  %447 = vst.msk [vmem:[%s416 + $0x169] sm:$0xff] %vm29, %v414
  %448 = vst.msk [vmem:[%s416 + $0x171] sm:$0xff] %vm29, %v415
  %v449 = vld [vmem:[#allocation2] sm:$0xff]
  %v450 = vld [vmem:[#allocation2 + $0x8] sm:$0xff]
  %v451 = vld [vmem:[#allocation2 + $0x18] sm:$0xff]
  %v452 = vld [vmem:[#allocation2 + $0x20] sm:$0xff]
  %v453 = vld [vmem:[#allocation2 + $0x30] sm:$0xff]
  %v454 = vld [vmem:[#allocation2 + $0x38] sm:$0xff]
  %v455 = vld [vmem:[#allocation2 + $0x48] sm:$0xff]
  %v456 = vld [vmem:[#allocation2 + $0x50] sm:$0xff]
  %v457 = vld [vmem:[#allocation2 + $0x60] sm:$0xff]
  %v458 = vld [vmem:[#allocation2 + $0x68] sm:$0xff]
  %v459 = vld [vmem:[#allocation2 + $0x78] sm:$0xff]
  %v460 = vld [vmem:[#allocation2 + $0x80] sm:$0xff]
  %v461 = vld [vmem:[#allocation2 + $0x90] sm:$0xff]
  %v462 = vld [vmem:[#allocation2 + $0x98] sm:$0xff]
  %v463 = vld [vmem:[#allocation2 + $0xa8] sm:$0xff]
  %v464 = vld [vmem:[#allocation2 + $0xb0] sm:$0xff]
  %v465 = vld [vmem:[#allocation2 + $0xc0] sm:$0xff]
  %v466 = vld [vmem:[#allocation2 + $0xc8] sm:$0xff]
  %v467 = vld [vmem:[#allocation2 + $0xd8] sm:$0xff]
  %v468 = vld [vmem:[#allocation2 + $0xe0] sm:$0xff]
  %v469 = vld [vmem:[#allocation2 + $0xf0] sm:$0xff]
  %v470 = vld [vmem:[#allocation2 + $0xf8] sm:$0xff]
  %v471 = vld [vmem:[#allocation2 + $0x108] sm:$0xff]
  %v472 = vld [vmem:[#allocation2 + $0x110] sm:$0xff]
  %v473 = vld [vmem:[#allocation2 + $0x120] sm:$0xff]
  %v474 = vld [vmem:[#allocation2 + $0x128] sm:$0xff]
  %v475 = vld [vmem:[#allocation2 + $0x138] sm:$0xff]
  %v476 = vld [vmem:[#allocation2 + $0x140] sm:$0xff]
  %v477 = vld [vmem:[#allocation2 + $0x150] sm:$0xff]
  %v478 = vld [vmem:[#allocation2 + $0x158] sm:$0xff]
  %v479 = vld [vmem:[#allocation2 + $0x168] sm:$0xff]
  %v480 = vld [vmem:[#allocation2 + $0x170] sm:$0xff]
  %v481 = vld [vmem:[#allocation2 + $0x180] sm:$0xff]
  %v482 = vld [vmem:[#allocation2 + $0x188] sm:$0xff]
  %v483 = vld [vmem:[#allocation2 + $0x198] sm:$0xff]
  %v484 = vld [vmem:[#allocation2 + $0x1a0] sm:$0xff]
  %v485 = vld [vmem:[#allocation2 + $0x1] sm:$0xff]
  %v486 = vld [vmem:[#allocation2 + $0x9] sm:$0xff]
  %v487 = vld [vmem:[#allocation2 + $0x19] sm:$0xff]
  %v488 = vld [vmem:[#allocation2 + $0x21] sm:$0xff]
  %v489 = vld [vmem:[#allocation2 + $0x31] sm:$0xff]
  %v490 = vld [vmem:[#allocation2 + $0x39] sm:$0xff]
  %v491 = vld [vmem:[#allocation2 + $0x49] sm:$0xff]
  %v492 = vld [vmem:[#allocation2 + $0x51] sm:$0xff]
  %v493 = vld [vmem:[#allocation2 + $0x61] sm:$0xff]
  %v494 = vld [vmem:[#allocation2 + $0x69] sm:$0xff]
  %v495 = vld [vmem:[#allocation2 + $0x79] sm:$0xff]
  %v496 = vld [vmem:[#allocation2 + $0x81] sm:$0xff]
  %v497 = vld [vmem:[#allocation2 + $0x91] sm:$0xff]
  %v498 = vld [vmem:[#allocation2 + $0x99] sm:$0xff]
  %v499 = vld [vmem:[#allocation2 + $0xa9] sm:$0xff]
  %v500 = vld [vmem:[#allocation2 + $0xb1] sm:$0xff]
  %v501 = vld [vmem:[#allocation2 + $0xc1] sm:$0xff]
  %v502 = vld [vmem:[#allocation2 + $0xc9] sm:$0xff]
  %v503 = vld [vmem:[#allocation2 + $0xd9] sm:$0xff]
  %v504 = vld [vmem:[#allocation2 + $0xe1] sm:$0xff]
  %v505 = vld [vmem:[#allocation2 + $0xf1] sm:$0xff]
  %v506 = vld [vmem:[#allocation2 + $0xf9] sm:$0xff]
  %v507 = vld [vmem:[#allocation2 + $0x109] sm:$0xff]
  %v508 = vld [vmem:[#allocation2 + $0x111] sm:$0xff]
  %v509 = vld [vmem:[#allocation2 + $0x121] sm:$0xff]
  %v510 = vld [vmem:[#allocation2 + $0x129] sm:$0xff]
  %v511 = vld [vmem:[#allocation2 + $0x139] sm:$0xff]
  %v512 = vld [vmem:[#allocation2 + $0x141] sm:$0xff]
  %v513 = vld [vmem:[#allocation2 + $0x151] sm:$0xff]
  %v514 = vld [vmem:[#allocation2 + $0x159] sm:$0xff]
  %v515 = vld [vmem:[#allocation2 + $0x169] sm:$0xff]
  %v516 = vld [vmem:[#allocation2 + $0x171] sm:$0xff]
  %v517 = vld [vmem:[#allocation2 + $0x181] sm:$0xff]
  %v518 = vld [vmem:[#allocation2 + $0x189] sm:$0xff]
  %v519 = vld [vmem:[#allocation2 + $0x199] sm:$0xff]
  %v520 = vld [vmem:[#allocation2 + $0x1a1] sm:$0xff]
  %v521 = vld [vmem:[#allocation2 + $0x2] sm:$0xff]
  %v522 = vld [vmem:[#allocation2 + $0xa] sm:$0xff]
  %v523 = vld [vmem:[#allocation2 + $0x1a] sm:$0xff]
  %v524 = vld [vmem:[#allocation2 + $0x22] sm:$0xff]
  %v525 = vld [vmem:[#allocation2 + $0x32] sm:$0xff]
  %v526 = vld [vmem:[#allocation2 + $0x3a] sm:$0xff]
  %v527 = vld [vmem:[#allocation2 + $0x4a] sm:$0xff]
  %v528 = vld [vmem:[#allocation2 + $0x52] sm:$0xff]
  %v529 = vld [vmem:[#allocation2 + $0x62] sm:$0xff]
  %v530 = vld [vmem:[#allocation2 + $0x6a] sm:$0xff]
  %v531 = vld [vmem:[#allocation2 + $0x7a] sm:$0xff]
  %v532 = vld [vmem:[#allocation2 + $0x82] sm:$0xff]
  %v533 = vld [vmem:[#allocation2 + $0x92] sm:$0xff]
  %v534 = vld [vmem:[#allocation2 + $0x9a] sm:$0xff]
  %v535 = vld [vmem:[#allocation2 + $0xaa] sm:$0xff]
  %v536 = vld [vmem:[#allocation2 + $0xb2] sm:$0xff]
  %v537 = vld [vmem:[#allocation2 + $0xc2] sm:$0xff]
  %v538 = vld [vmem:[#allocation2 + $0xca] sm:$0xff]
  %v539 = vld [vmem:[#allocation2 + $0xda] sm:$0xff]
  %v540 = vld [vmem:[#allocation2 + $0xe2] sm:$0xff]
  %v541 = vld [vmem:[#allocation2 + $0xf2] sm:$0xff]
  %v542 = vld [vmem:[#allocation2 + $0xfa] sm:$0xff]
  %v543 = vld [vmem:[#allocation2 + $0x10a] sm:$0xff]
  %v544 = vld [vmem:[#allocation2 + $0x112] sm:$0xff]
  %v545 = vld [vmem:[#allocation2 + $0x122] sm:$0xff]
  %v546 = vld [vmem:[#allocation2 + $0x12a] sm:$0xff]
  %v547 = vld [vmem:[#allocation2 + $0x13a] sm:$0xff]
  %v548 = vld [vmem:[#allocation2 + $0x142] sm:$0xff]
  %v549 = vld [vmem:[#allocation2 + $0x152] sm:$0xff]
  %v550 = vld [vmem:[#allocation2 + $0x15a] sm:$0xff]
  %v551 = vld [vmem:[#allocation2 + $0x16a] sm:$0xff]
  %v552 = vld [vmem:[#allocation2 + $0x172] sm:$0xff]
  %v553 = vld [vmem:[#allocation2 + $0x182] sm:$0xff]
  %v554 = vld [vmem:[#allocation2 + $0x18a] sm:$0xff]
  %v555 = vld [vmem:[#allocation2 + $0x19a] sm:$0xff]
  %v556 = vld [vmem:[#allocation2 + $0x1a2] sm:$0xff]
  %593 = vrot.lane.b32.xlu0 %v485, 4
  %v594 = vpop.permute.xlu0 %593
  %595 = vrot.lane.b32.xlu0 %v486, 4
  %v596 = vpop.permute.xlu0 %595
  %597 = vrot.lane.b32.xlu0 %v487, 4
  %v598 = vpop.permute.xlu0 %597
  %599 = vrot.lane.b32.xlu0 %v488, 4
  %v600 = vpop.permute.xlu0 %599
  %601 = vrot.lane.b32.xlu0 %v489, 4
  %v602 = vpop.permute.xlu0 %601
  %603 = vrot.lane.b32.xlu0 %v490, 4
  %v604 = vpop.permute.xlu0 %603
  %605 = vrot.lane.b32.xlu0 %v491, 4
  %v606 = vpop.permute.xlu0 %605
  %607 = vrot.lane.b32.xlu0 %v492, 4
  %v608 = vpop.permute.xlu0 %607
  %609 = vrot.lane.b32.xlu0 %v493, 4
  %v610 = vpop.permute.xlu0 %609
  %611 = vrot.lane.b32.xlu0 %v494, 4
  %v612 = vpop.permute.xlu0 %611
  %613 = vrot.lane.b32.xlu0 %v495, 4
  %v614 = vpop.permute.xlu0 %613
  %615 = vrot.lane.b32.xlu0 %v496, 4
  %v616 = vpop.permute.xlu0 %615
  %617 = vrot.lane.b32.xlu0 %v497, 4
  %v618 = vpop.permute.xlu0 %617
  %619 = vrot.lane.b32.xlu0 %v498, 4
  %v620 = vpop.permute.xlu0 %619
  %621 = vrot.lane.b32.xlu0 %v499, 4
  %v622 = vpop.permute.xlu0 %621
  %623 = vrot.lane.b32.xlu0 %v500, 4
  %v624 = vpop.permute.xlu0 %623
  %625 = vrot.lane.b32.xlu0 %v501, 4
  %v626 = vpop.permute.xlu0 %625
  %627 = vrot.lane.b32.xlu0 %v502, 4
  %v628 = vpop.permute.xlu0 %627
  %629 = vrot.lane.b32.xlu0 %v503, 4
  %v630 = vpop.permute.xlu0 %629
  %631 = vrot.lane.b32.xlu0 %v504, 4
  %v632 = vpop.permute.xlu0 %631
  %633 = vrot.lane.b32.xlu0 %v505, 4
  %v634 = vpop.permute.xlu0 %633
  %635 = vrot.lane.b32.xlu0 %v506, 4
  %v636 = vpop.permute.xlu0 %635
  %637 = vrot.lane.b32.xlu0 %v507, 4
  %v638 = vpop.permute.xlu0 %637
  %639 = vrot.lane.b32.xlu0 %v508, 4
  %v640 = vpop.permute.xlu0 %639
  %641 = vrot.lane.b32.xlu0 %v509, 4
  %v642 = vpop.permute.xlu0 %641
  %643 = vrot.lane.b32.xlu0 %v510, 4
  %v644 = vpop.permute.xlu0 %643
  %645 = vrot.lane.b32.xlu0 %v511, 4
  %v646 = vpop.permute.xlu0 %645
  %647 = vrot.lane.b32.xlu0 %v512, 4
  %v648 = vpop.permute.xlu0 %647
  %649 = vrot.lane.b32.xlu0 %v513, 4
  %v650 = vpop.permute.xlu0 %649
  %651 = vrot.lane.b32.xlu0 %v514, 4
  %v652 = vpop.permute.xlu0 %651
  %653 = vrot.lane.b32.xlu0 %v515, 4
  %v654 = vpop.permute.xlu0 %653
  %655 = vrot.lane.b32.xlu0 %v516, 4
  %v656 = vpop.permute.xlu0 %655
  %657 = vrot.lane.b32.xlu0 %v517, 4
  %v658 = vpop.permute.xlu0 %657
  %659 = vrot.lane.b32.xlu0 %v518, 4
  %v660 = vpop.permute.xlu0 %659
  %661 = vrot.lane.b32.xlu0 %v519, 4
  %v662 = vpop.permute.xlu0 %661
  %663 = vrot.lane.b32.xlu0 %v520, 4
  %v664 = vpop.permute.xlu0 %663
  %737 = vrot.lane.b32.xlu0 %v521, 8
  %v738 = vpop.permute.xlu0 %737
  %739 = vrot.lane.b32.xlu0 %v522, 8
  %v740 = vpop.permute.xlu0 %739
  %741 = vrot.lane.b32.xlu0 %v523, 8
  %v742 = vpop.permute.xlu0 %741
  %743 = vrot.lane.b32.xlu0 %v524, 8
  %v744 = vpop.permute.xlu0 %743
  %745 = vrot.lane.b32.xlu0 %v525, 8
  %v746 = vpop.permute.xlu0 %745
  %747 = vrot.lane.b32.xlu0 %v526, 8
  %v748 = vpop.permute.xlu0 %747
  %749 = vrot.lane.b32.xlu0 %v527, 8
  %v750 = vpop.permute.xlu0 %749
  %751 = vrot.lane.b32.xlu0 %v528, 8
  %v752 = vpop.permute.xlu0 %751
  %753 = vrot.lane.b32.xlu0 %v529, 8
  %v754 = vpop.permute.xlu0 %753
  %755 = vrot.lane.b32.xlu0 %v530, 8
  %v756 = vpop.permute.xlu0 %755
  %757 = vrot.lane.b32.xlu0 %v531, 8
  %v758 = vpop.permute.xlu0 %757
  %759 = vrot.lane.b32.xlu0 %v532, 8
  %v760 = vpop.permute.xlu0 %759
  %761 = vrot.lane.b32.xlu0 %v533, 8
  %v762 = vpop.permute.xlu0 %761
  %763 = vrot.lane.b32.xlu0 %v534, 8
  %v764 = vpop.permute.xlu0 %763
  %765 = vrot.lane.b32.xlu0 %v535, 8
  %v766 = vpop.permute.xlu0 %765
  %767 = vrot.lane.b32.xlu0 %v536, 8
  %v768 = vpop.permute.xlu0 %767
  %769 = vrot.lane.b32.xlu0 %v537, 8
  %v770 = vpop.permute.xlu0 %769
  %771 = vrot.lane.b32.xlu0 %v538, 8
  %v772 = vpop.permute.xlu0 %771
  %773 = vrot.lane.b32.xlu0 %v539, 8
  %v774 = vpop.permute.xlu0 %773
  %775 = vrot.lane.b32.xlu0 %v540, 8
  %v776 = vpop.permute.xlu0 %775
  %777 = vrot.lane.b32.xlu0 %v541, 8
  %v778 = vpop.permute.xlu0 %777
  %779 = vrot.lane.b32.xlu0 %v542, 8
  %v780 = vpop.permute.xlu0 %779
  %781 = vrot.lane.b32.xlu0 %v543, 8
  %v782 = vpop.permute.xlu0 %781
  %783 = vrot.lane.b32.xlu0 %v544, 8
  %v784 = vpop.permute.xlu0 %783
  %785 = vrot.lane.b32.xlu0 %v545, 8
  %v786 = vpop.permute.xlu0 %785
  %787 = vrot.lane.b32.xlu0 %v546, 8
  %v788 = vpop.permute.xlu0 %787
  %789 = vrot.lane.b32.xlu0 %v547, 8
  %v790 = vpop.permute.xlu0 %789
  %791 = vrot.lane.b32.xlu0 %v548, 8
  %v792 = vpop.permute.xlu0 %791
  %793 = vrot.lane.b32.xlu0 %v549, 8
  %v794 = vpop.permute.xlu0 %793
  %795 = vrot.lane.b32.xlu0 %v550, 8
  %v796 = vpop.permute.xlu0 %795
  %797 = vrot.lane.b32.xlu0 %v551, 8
  %v798 = vpop.permute.xlu0 %797
  %799 = vrot.lane.b32.xlu0 %v552, 8
  %v800 = vpop.permute.xlu0 %799
  %801 = vrot.lane.b32.xlu0 %v553, 8
  %v802 = vpop.permute.xlu0 %801
  %803 = vrot.lane.b32.xlu0 %v554, 8
  %v804 = vpop.permute.xlu0 %803
  %805 = vrot.lane.b32.xlu0 %v555, 8
  %v806 = vpop.permute.xlu0 %805
  %807 = vrot.lane.b32.xlu0 %v556, 8
  %v808 = vpop.permute.xlu0 %807
  %v845 = vsel %vm29, %v449, %v594
  %v846 = vsel %vm29, %v450, %v596
  %v847 = vsel %vm29, %v451, %v598
  %v848 = vsel %vm29, %v452, %v600
  %v849 = vsel %vm29, %v453, %v602
  %v850 = vsel %vm29, %v454, %v604
  %v851 = vsel %vm29, %v455, %v606
  %v852 = vsel %vm29, %v456, %v608
  %v853 = vsel %vm29, %v457, %v610
  %v854 = vsel %vm29, %v458, %v612
  %v855 = vsel %vm29, %v459, %v614
  %v856 = vsel %vm29, %v460, %v616
  %v857 = vsel %vm29, %v461, %v618
  %v858 = vsel %vm29, %v462, %v620
  %v859 = vsel %vm29, %v463, %v622
  %v860 = vsel %vm29, %v464, %v624
  %v861 = vsel %vm29, %v465, %v626
  %v862 = vsel %vm29, %v466, %v628
  %v863 = vsel %vm29, %v467, %v630
  %v864 = vsel %vm29, %v468, %v632
  %v865 = vsel %vm29, %v469, %v634
  %v866 = vsel %vm29, %v470, %v636
  %v867 = vsel %vm29, %v471, %v638
  %v868 = vsel %vm29, %v472, %v640
  %v869 = vsel %vm29, %v473, %v642
  %v870 = vsel %vm29, %v474, %v644
  %v871 = vsel %vm29, %v475, %v646
  %v872 = vsel %vm29, %v476, %v648
  %v873 = vsel %vm29, %v477, %v650
  %v874 = vsel %vm29, %v478, %v652
  %v875 = vsel %vm29, %v479, %v654
  %v876 = vsel %vm29, %v480, %v656
  %v877 = vsel %vm29, %v481, %v658
  %v878 = vsel %vm29, %v482, %v660
  %v879 = vsel %vm29, %v483, %v662
  %v880 = vsel %vm29, %v484, %v664
  %v881 = vsel %vm110, %v845, %v738
  %v882 = vsel %vm110, %v846, %v740
  %v883 = vsel %vm110, %v847, %v742
  %v884 = vsel %vm110, %v848, %v744
  %v885 = vsel %vm110, %v849, %v746
  %v886 = vsel %vm110, %v850, %v748
  %v887 = vsel %vm110, %v851, %v750
  %v888 = vsel %vm110, %v852, %v752
  %v889 = vsel %vm110, %v853, %v754
  %v890 = vsel %vm110, %v854, %v756
  %v891 = vsel %vm110, %v855, %v758
  %v892 = vsel %vm110, %v856, %v760
  %v893 = vsel %vm110, %v857, %v762
  %v894 = vsel %vm110, %v858, %v764
  %v895 = vsel %vm110, %v859, %v766
  %v896 = vsel %vm110, %v860, %v768
  %v897 = vsel %vm110, %v861, %v770
  %v898 = vsel %vm110, %v862, %v772
  %v899 = vsel %vm110, %v863, %v774
  %v900 = vsel %vm110, %v864, %v776
  %v901 = vsel %vm110, %v865, %v778
  %v902 = vsel %vm110, %v866, %v780
  %v903 = vsel %vm110, %v867, %v782
  %v904 = vsel %vm110, %v868, %v784
  %v905 = vsel %vm110, %v869, %v786
  %v906 = vsel %vm110, %v870, %v788
  %v907 = vsel %vm110, %v871, %v790
  %v908 = vsel %vm110, %v872, %v792
  %v909 = vsel %vm110, %v873, %v794
  %v910 = vsel %vm110, %v874, %v796
  %v911 = vsel %vm110, %v875, %v798
  %v912 = vsel %vm110, %v876, %v800
  %v913 = vsel %vm110, %v877, %v802
  %v914 = vsel %vm110, %v878, %v804
  %v915 = vsel %vm110, %v879, %v806
  %v916 = vsel %vm110, %v880, %v808
  %vm917 = vcmask 97280
  %v919 = vsel %vm917, %v883, 0
  %v922 = vsel %vm917, %v884, 0
  %v925 = vsel %vm917, %v885, 0
  %v928 = vsel %vm917, %v886, 0
  %v931 = vsel %vm917, %v887, 0
  %v934 = vsel %vm917, %v888, 0
  %v937 = vsel %vm917, %v889, 0
  %v940 = vsel %vm917, %v890, 0
  %v943 = vsel %vm917, %v891, 0
  %v946 = vsel %vm917, %v892, 0
  %v949 = vsel %vm917, %v893, 0
  %v952 = vsel %vm917, %v894, 0
  %v955 = vsel %vm917, %v895, 0
  %v958 = vsel %vm917, %v896, 0
  %v961 = vsel %vm917, %v897, 0
  %v964 = vsel %vm917, %v898, 0
  %v967 = vsel %vm917, %v899, 0
  %v970 = vsel %vm917, %v900, 0
  %v973 = vsel %vm917, %v901, 0
  %v976 = vsel %vm917, %v902, 0
  %v979 = vsel %vm917, %v903, 0
  %v982 = vsel %vm917, %v904, 0
  %v985 = vsel %vm917, %v905, 0
  %v988 = vsel %vm917, %v906, 0
  %v991 = vsel %vm917, %v907, 0
  %v994 = vsel %vm917, %v908, 0
  %v997 = vsel %vm917, %v909, 0
  %v1000 = vsel %vm917, %v910, 0
  %v1003 = vsel %vm917, %v911, 0
  %v1006 = vsel %vm917, %v912, 0
  %v1009 = vsel %vm917, %v913, 0
  %v1012 = vsel %vm917, %v914, 0
  %vm1014 = vcmask 1043456
  %v1016 = vsel %vm1014, %v25, 0
  %1018 = vmatpush.msra.mxu0 0.0
  %1019 = vmatpush.msra.mxu0 0.0
  %1020 = vmatpush.msra.mxu0 0.0
  %1021 = vmatpush.msra.mxu0 0.0
  %1022 = vmatpush.msra.mxu0 0.0
  %1023 = vmatpush.msra.mxu0 0.0
  %1024 = vmatpush.msra.mxu0 0.0
  %1025 = vmatpush.msra.mxu0 0.0
  %1026 = vmatpush.msra.mxu0 0.0
  %1027 = vmatpush.msra.mxu0 0.0
  %1028 = vmatpush.msra.mxu0 0.0
  %1029 = vmatpush.msra.mxu0 0.0
  %1030 = vmatpush.msra.mxu0 0.0
  %1031 = vmatpush.msra.mxu0 0.0
  %1032 = vmatpush.msra.mxu0 %v1016
  %1033 = vmatpush.msra.mxu0 %v24
  %1034 = vmatmul.f32.gmra.mxu0 %v919
  %v1035 = vpop.f32.mrf.mxu0
  %v1036 = vadd.f32 0.0, %v1035
  %1037 = vmatmul.f32.gmra.mxu0 %v922
  %v1038 = vpop.f32.mrf.mxu0
  %v1039 = vadd.f32 0.0, %v1038
  %1040 = vmatmul.f32.gmra.mxu0 %v925
  %v1041 = vpop.f32.mrf.mxu0
  %v1042 = vadd.f32 0.0, %v1041
  %1043 = vmatmul.f32.gmra.mxu0 %v928
  %v1044 = vpop.f32.mrf.mxu0
  %v1045 = vadd.f32 0.0, %v1044
  %1046 = vmatmul.f32.gmra.mxu0 %v931
  %v1047 = vpop.f32.mrf.mxu0
  %v1048 = vadd.f32 0.0, %v1047
  %1049 = vmatmul.f32.gmra.mxu0 %v934
  %v1050 = vpop.f32.mrf.mxu0
  %v1051 = vadd.f32 0.0, %v1050
  %1052 = vmatmul.f32.gmra.mxu0 %v937
  %v1053 = vpop.f32.mrf.mxu0
  %v1054 = vadd.f32 0.0, %v1053
  %1055 = vmatmul.f32.gmra.mxu0 %v940
  %v1056 = vpop.f32.mrf.mxu0
  %v1057 = vadd.f32 0.0, %v1056
  %1058 = vmatmul.f32.gmra.mxu0 %v943
  %v1059 = vpop.f32.mrf.mxu0
  %v1060 = vadd.f32 0.0, %v1059
  %1061 = vmatmul.f32.gmra.mxu0 %v946
  %v1062 = vpop.f32.mrf.mxu0
  %v1063 = vadd.f32 0.0, %v1062
  %1064 = vmatmul.f32.gmra.mxu0 %v949
  %v1065 = vpop.f32.mrf.mxu0
  %v1066 = vadd.f32 0.0, %v1065
  %1067 = vmatmul.f32.gmra.mxu0 %v952
  %v1068 = vpop.f32.mrf.mxu0
  %v1069 = vadd.f32 0.0, %v1068
  %1070 = vmatmul.f32.gmra.mxu0 %v955
  %v1071 = vpop.f32.mrf.mxu0
  %v1072 = vadd.f32 0.0, %v1071
  %1073 = vmatmul.f32.gmra.mxu0 %v958
  %v1074 = vpop.f32.mrf.mxu0
  %v1075 = vadd.f32 0.0, %v1074
  %1076 = vmatmul.f32.gmra.mxu0 %v961
  %v1077 = vpop.f32.mrf.mxu0
  %v1078 = vadd.f32 0.0, %v1077
  %1079 = vmatmul.f32.gmra.mxu0 %v964
  %v1080 = vpop.f32.mrf.mxu0
  %v1081 = vadd.f32 0.0, %v1080
  %1082 = vmatmul.f32.gmra.mxu0 %v967
  %v1083 = vpop.f32.mrf.mxu0
  %v1084 = vadd.f32 0.0, %v1083
  %1085 = vmatmul.f32.gmra.mxu0 %v970
  %v1086 = vpop.f32.mrf.mxu0
  %v1087 = vadd.f32 0.0, %v1086
  %1088 = vmatmul.f32.gmra.mxu0 %v973
  %v1089 = vpop.f32.mrf.mxu0
  %v1090 = vadd.f32 0.0, %v1089
  %1091 = vmatmul.f32.gmra.mxu0 %v976
  %v1092 = vpop.f32.mrf.mxu0
  %v1093 = vadd.f32 0.0, %v1092
  %1094 = vmatmul.f32.gmra.mxu0 %v979
  %v1095 = vpop.f32.mrf.mxu0
  %v1096 = vadd.f32 0.0, %v1095
  %1097 = vmatmul.f32.gmra.mxu0 %v982
  %v1098 = vpop.f32.mrf.mxu0
  %v1099 = vadd.f32 0.0, %v1098
  %1100 = vmatmul.f32.gmra.mxu0 %v985
  %v1101 = vpop.f32.mrf.mxu0
  %v1102 = vadd.f32 0.0, %v1101
  %1103 = vmatmul.f32.gmra.mxu0 %v988
  %v1104 = vpop.f32.mrf.mxu0
  %v1105 = vadd.f32 0.0, %v1104
  %1106 = vmatmul.f32.gmra.mxu0 %v991
  %v1107 = vpop.f32.mrf.mxu0
  %v1108 = vadd.f32 0.0, %v1107
  %1109 = vmatmul.f32.gmra.mxu0 %v994
  %v1110 = vpop.f32.mrf.mxu0
  %v1111 = vadd.f32 0.0, %v1110
  %1112 = vmatmul.f32.gmra.mxu0 %v997
  %v1113 = vpop.f32.mrf.mxu0
  %v1114 = vadd.f32 0.0, %v1113
  %1115 = vmatmul.f32.gmra.mxu0 %v1000
  %v1116 = vpop.f32.mrf.mxu0
  %v1117 = vadd.f32 0.0, %v1116
  %1118 = vmatmul.f32.gmra.mxu0 %v1003
  %v1119 = vpop.f32.mrf.mxu0
  %v1120 = vadd.f32 0.0, %v1119
  %1121 = vmatmul.f32.gmra.mxu0 %v1006
  %v1122 = vpop.f32.mrf.mxu0
  %v1123 = vadd.f32 0.0, %v1122
  %1124 = vmatmul.f32.gmra.mxu0 %v1009
  %v1125 = vpop.f32.mrf.mxu0
  %v1126 = vadd.f32 0.0, %v1125
  %1127 = vmatmul.f32.gmra.mxu0 %v1012
  %v1128 = vpop.f32.mrf.mxu0
  %v1129 = vadd.f32 0.0, %v1128
  %1130 = vdwg.mxu0
  %v1132 = vsel %vm917, %v881, 0
  %v1135 = vsel %vm917, %v882, 0
  %v1138 = vsel %vm1014, %v23, 0
  %1140 = vmatpush.msra.mxu0 0.0
  %1141 = vmatpush.msra.mxu0 0.0
  %1142 = vmatpush.msra.mxu0 0.0
  %1143 = vmatpush.msra.mxu0 0.0
  %1144 = vmatpush.msra.mxu0 0.0
  %1145 = vmatpush.msra.mxu0 0.0
  %1146 = vmatpush.msra.mxu0 0.0
  %1147 = vmatpush.msra.mxu0 0.0
  %1148 = vmatpush.msra.mxu0 0.0
  %1149 = vmatpush.msra.mxu0 0.0
  %1150 = vmatpush.msra.mxu0 0.0
  %1151 = vmatpush.msra.mxu0 0.0
  %1152 = vmatpush.msra.mxu0 0.0
  %1153 = vmatpush.msra.mxu0 0.0
  %1154 = vmatpush.msra.mxu0 %v1138
  %1155 = vmatpush.msra.mxu0 %v22
  %1156 = vmatmul.f32.gmra.mxu0 %v1132
  %v1157 = vpop.f32.mrf.mxu0
  %v1158 = vadd.f32 %v1036, %v1157
  %1159 = vmatmul.f32.gmra.mxu0 %v1135
  %v1160 = vpop.f32.mrf.mxu0
  %v1161 = vadd.f32 %v1039, %v1160
  %1162 = vmatmul.f32.gmra.mxu0 %v919
  %v1163 = vpop.f32.mrf.mxu0
  %v1164 = vadd.f32 %v1042, %v1163
  %1165 = vmatmul.f32.gmra.mxu0 %v922
  %v1166 = vpop.f32.mrf.mxu0
  %v1167 = vadd.f32 %v1045, %v1166
  %1168 = vmatmul.f32.gmra.mxu0 %v925
  %v1169 = vpop.f32.mrf.mxu0
  %v1170 = vadd.f32 %v1048, %v1169
  %1171 = vmatmul.f32.gmra.mxu0 %v928
  %v1172 = vpop.f32.mrf.mxu0
  %v1173 = vadd.f32 %v1051, %v1172
  %1174 = vmatmul.f32.gmra.mxu0 %v931
  %v1175 = vpop.f32.mrf.mxu0
  %v1176 = vadd.f32 %v1054, %v1175
  %1177 = vmatmul.f32.gmra.mxu0 %v934
  %v1178 = vpop.f32.mrf.mxu0
  %v1179 = vadd.f32 %v1057, %v1178
  %1180 = vmatmul.f32.gmra.mxu0 %v937
  %v1181 = vpop.f32.mrf.mxu0
  %v1182 = vadd.f32 %v1060, %v1181
  %1183 = vmatmul.f32.gmra.mxu0 %v940
  %v1184 = vpop.f32.mrf.mxu0
  %v1185 = vadd.f32 %v1063, %v1184
  %1186 = vmatmul.f32.gmra.mxu0 %v943
  %v1187 = vpop.f32.mrf.mxu0
  %v1188 = vadd.f32 %v1066, %v1187
  %1189 = vmatmul.f32.gmra.mxu0 %v946
  %v1190 = vpop.f32.mrf.mxu0
  %v1191 = vadd.f32 %v1069, %v1190
  %1192 = vmatmul.f32.gmra.mxu0 %v949
  %v1193 = vpop.f32.mrf.mxu0
  %v1194 = vadd.f32 %v1072, %v1193
  %1195 = vmatmul.f32.gmra.mxu0 %v952
  %v1196 = vpop.f32.mrf.mxu0
  %v1197 = vadd.f32 %v1075, %v1196
  %1198 = vmatmul.f32.gmra.mxu0 %v955
  %v1199 = vpop.f32.mrf.mxu0
  %v1200 = vadd.f32 %v1078, %v1199
  %1201 = vmatmul.f32.gmra.mxu0 %v958
  %v1202 = vpop.f32.mrf.mxu0
  %v1203 = vadd.f32 %v1081, %v1202
  %1204 = vmatmul.f32.gmra.mxu0 %v961
  %v1205 = vpop.f32.mrf.mxu0
  %v1206 = vadd.f32 %v1084, %v1205
  %1207 = vmatmul.f32.gmra.mxu0 %v964
  %v1208 = vpop.f32.mrf.mxu0
  %v1209 = vadd.f32 %v1087, %v1208
  %1210 = vmatmul.f32.gmra.mxu0 %v967
  %v1211 = vpop.f32.mrf.mxu0
  %v1212 = vadd.f32 %v1090, %v1211
  %1213 = vmatmul.f32.gmra.mxu0 %v970
  %v1214 = vpop.f32.mrf.mxu0
  %v1215 = vadd.f32 %v1093, %v1214
  %1216 = vmatmul.f32.gmra.mxu0 %v973
  %v1217 = vpop.f32.mrf.mxu0
  %v1218 = vadd.f32 %v1096, %v1217
  %1219 = vmatmul.f32.gmra.mxu0 %v976
  %v1220 = vpop.f32.mrf.mxu0
  %v1221 = vadd.f32 %v1099, %v1220
  %1222 = vmatmul.f32.gmra.mxu0 %v979
  %v1223 = vpop.f32.mrf.mxu0
  %v1224 = vadd.f32 %v1102, %v1223
  %1225 = vmatmul.f32.gmra.mxu0 %v982
  %v1226 = vpop.f32.mrf.mxu0
  %v1227 = vadd.f32 %v1105, %v1226
  %1228 = vmatmul.f32.gmra.mxu0 %v985
  %v1229 = vpop.f32.mrf.mxu0
  %v1230 = vadd.f32 %v1108, %v1229
  %1231 = vmatmul.f32.gmra.mxu0 %v988
  %v1232 = vpop.f32.mrf.mxu0
  %v1233 = vadd.f32 %v1111, %v1232
  %1234 = vmatmul.f32.gmra.mxu0 %v991
  %v1235 = vpop.f32.mrf.mxu0
  %v1236 = vadd.f32 %v1114, %v1235
  %1237 = vmatmul.f32.gmra.mxu0 %v994
  %v1238 = vpop.f32.mrf.mxu0
  %v1239 = vadd.f32 %v1117, %v1238
  %1240 = vmatmul.f32.gmra.mxu0 %v997
  %v1241 = vpop.f32.mrf.mxu0
  %v1242 = vadd.f32 %v1120, %v1241
  %1243 = vmatmul.f32.gmra.mxu0 %v1000
  %v1244 = vpop.f32.mrf.mxu0
  %v1245 = vadd.f32 %v1123, %v1244
  %1246 = vmatmul.f32.gmra.mxu0 %v1003
  %v1247 = vpop.f32.mrf.mxu0
  %v1248 = vadd.f32 %v1126, %v1247
  %1249 = vmatmul.f32.gmra.mxu0 %v1006
  %v1250 = vpop.f32.mrf.mxu0
  %v1251 = vadd.f32 %v1129, %v1250
  %1252 = vdwg.mxu0
  %v1254 = vsel %vm917, %v915, 0
  %v1257 = vsel %vm917, %v916, 0
  %v1260 = vsel %vm1014, %v27, 0
  %1262 = vmatpush.msra.mxu0 0.0
  %1263 = vmatpush.msra.mxu0 0.0
  %1264 = vmatpush.msra.mxu0 0.0
  %1265 = vmatpush.msra.mxu0 0.0
  %1266 = vmatpush.msra.mxu0 0.0
  %1267 = vmatpush.msra.mxu0 0.0
  %1268 = vmatpush.msra.mxu0 0.0
  %1269 = vmatpush.msra.mxu0 0.0
  %1270 = vmatpush.msra.mxu0 0.0
  %1271 = vmatpush.msra.mxu0 0.0
  %1272 = vmatpush.msra.mxu0 0.0
  %1273 = vmatpush.msra.mxu0 0.0
  %1274 = vmatpush.msra.mxu0 0.0
  %1275 = vmatpush.msra.mxu0 0.0
  %1276 = vmatpush.msra.mxu0 %v1260
  %1277 = vmatpush.msra.mxu0 %v26
  %1278 = vmatmul.f32.gmra.mxu0 %v925
  %v1279 = vpop.f32.mrf.mxu0
  %v1280 = vadd.f32 0.0, %v1279
  %1281 = vmatmul.f32.gmra.mxu0 %v928
  %v1282 = vpop.f32.mrf.mxu0
  %v1283 = vadd.f32 0.0, %v1282
  %1284 = vmatmul.f32.gmra.mxu0 %v931
  %v1285 = vpop.f32.mrf.mxu0
  %v1286 = vadd.f32 0.0, %v1285
  %1287 = vmatmul.f32.gmra.mxu0 %v934
  %v1288 = vpop.f32.mrf.mxu0
  %v1289 = vadd.f32 0.0, %v1288
  %1290 = vmatmul.f32.gmra.mxu0 %v937
  %v1291 = vpop.f32.mrf.mxu0
  %v1292 = vadd.f32 0.0, %v1291
  %1293 = vmatmul.f32.gmra.mxu0 %v940
  %v1294 = vpop.f32.mrf.mxu0
  %v1295 = vadd.f32 0.0, %v1294
  %1296 = vmatmul.f32.gmra.mxu0 %v943
  %v1297 = vpop.f32.mrf.mxu0
  %v1298 = vadd.f32 0.0, %v1297
  %1299 = vmatmul.f32.gmra.mxu0 %v946
  %v1300 = vpop.f32.mrf.mxu0
  %v1301 = vadd.f32 0.0, %v1300
  %1302 = vmatmul.f32.gmra.mxu0 %v949
  %v1303 = vpop.f32.mrf.mxu0
  %v1304 = vadd.f32 0.0, %v1303
  %1305 = vmatmul.f32.gmra.mxu0 %v952
  %v1306 = vpop.f32.mrf.mxu0
  %v1307 = vadd.f32 0.0, %v1306
  %1308 = vmatmul.f32.gmra.mxu0 %v955
  %v1309 = vpop.f32.mrf.mxu0
  %v1310 = vadd.f32 0.0, %v1309
  %1311 = vmatmul.f32.gmra.mxu0 %v958
  %v1312 = vpop.f32.mrf.mxu0
  %v1313 = vadd.f32 0.0, %v1312
  %1314 = vmatmul.f32.gmra.mxu0 %v961
  %v1315 = vpop.f32.mrf.mxu0
  %v1316 = vadd.f32 0.0, %v1315
  %1317 = vmatmul.f32.gmra.mxu0 %v964
  %v1318 = vpop.f32.mrf.mxu0
  %v1319 = vadd.f32 0.0, %v1318
  %1320 = vmatmul.f32.gmra.mxu0 %v967
  %v1321 = vpop.f32.mrf.mxu0
  %v1322 = vadd.f32 0.0, %v1321
  %1323 = vmatmul.f32.gmra.mxu0 %v970
  %v1324 = vpop.f32.mrf.mxu0
  %v1325 = vadd.f32 0.0, %v1324
  %1326 = vmatmul.f32.gmra.mxu0 %v973
  %v1327 = vpop.f32.mrf.mxu0
  %v1328 = vadd.f32 0.0, %v1327
  %1329 = vmatmul.f32.gmra.mxu0 %v976
  %v1330 = vpop.f32.mrf.mxu0
  %v1331 = vadd.f32 0.0, %v1330
  %1332 = vmatmul.f32.gmra.mxu0 %v979
  %v1333 = vpop.f32.mrf.mxu0
  %v1334 = vadd.f32 0.0, %v1333
  %1335 = vmatmul.f32.gmra.mxu0 %v982
  %v1336 = vpop.f32.mrf.mxu0
  %v1337 = vadd.f32 0.0, %v1336
  %1338 = vmatmul.f32.gmra.mxu0 %v985
  %v1339 = vpop.f32.mrf.mxu0
  %v1340 = vadd.f32 0.0, %v1339
  %1341 = vmatmul.f32.gmra.mxu0 %v988
  %v1342 = vpop.f32.mrf.mxu0
  %v1343 = vadd.f32 0.0, %v1342
  %1344 = vmatmul.f32.gmra.mxu0 %v991
  %v1345 = vpop.f32.mrf.mxu0
  %v1346 = vadd.f32 0.0, %v1345
  %1347 = vmatmul.f32.gmra.mxu0 %v994
  %v1348 = vpop.f32.mrf.mxu0
  %v1349 = vadd.f32 0.0, %v1348
  %1350 = vmatmul.f32.gmra.mxu0 %v997
  %v1351 = vpop.f32.mrf.mxu0
  %v1352 = vadd.f32 0.0, %v1351
  %1353 = vmatmul.f32.gmra.mxu0 %v1000
  %v1354 = vpop.f32.mrf.mxu0
  %v1355 = vadd.f32 0.0, %v1354
  %1356 = vmatmul.f32.gmra.mxu0 %v1003
  %v1357 = vpop.f32.mrf.mxu0
  %v1358 = vadd.f32 0.0, %v1357
  %1359 = vmatmul.f32.gmra.mxu0 %v1006
  %v1360 = vpop.f32.mrf.mxu0
  %v1361 = vadd.f32 0.0, %v1360
  %1362 = vmatmul.f32.gmra.mxu0 %v1009
  %v1363 = vpop.f32.mrf.mxu0
  %v1364 = vadd.f32 0.0, %v1363
  %1365 = vmatmul.f32.gmra.mxu0 %v1012
  %v1366 = vpop.f32.mrf.mxu0
  %v1367 = vadd.f32 0.0, %v1366
  %1368 = vmatmul.f32.gmra.mxu0 %v1254
  %v1369 = vpop.f32.mrf.mxu0
  %v1370 = vadd.f32 0.0, %v1369
  %1371 = vmatmul.f32.gmra.mxu0 %v1257
  %v1372 = vpop.f32.mrf.mxu0
  %v1373 = vadd.f32 0.0, %v1372
  %1374 = vdwg.mxu0
  %v1375 = vadd.f32 %v1158, %v1280
  %v1376 = vadd.f32 %v1161, %v1283
  %v1377 = vadd.f32 %v1164, %v1286
  %v1378 = vadd.f32 %v1167, %v1289
  %v1379 = vadd.f32 %v1170, %v1292
  %v1380 = vadd.f32 %v1173, %v1295
  %v1381 = vadd.f32 %v1176, %v1298
  %v1382 = vadd.f32 %v1179, %v1301
  %v1383 = vadd.f32 %v1182, %v1304
  %v1384 = vadd.f32 %v1185, %v1307
  %v1385 = vadd.f32 %v1188, %v1310
  %v1386 = vadd.f32 %v1191, %v1313
  %v1387 = vadd.f32 %v1194, %v1316
  %v1388 = vadd.f32 %v1197, %v1319
  %v1389 = vadd.f32 %v1200, %v1322
  %v1390 = vadd.f32 %v1203, %v1325
  %v1391 = vadd.f32 %v1206, %v1328
  %v1392 = vadd.f32 %v1209, %v1331
  %v1393 = vadd.f32 %v1212, %v1334
  %v1394 = vadd.f32 %v1215, %v1337
  %v1395 = vadd.f32 %v1218, %v1340
  %v1396 = vadd.f32 %v1221, %v1343
  %v1397 = vadd.f32 %v1224, %v1346
  %v1398 = vadd.f32 %v1227, %v1349
  %v1399 = vadd.f32 %v1230, %v1352
  %v1400 = vadd.f32 %v1233, %v1355
  %v1401 = vadd.f32 %v1236, %v1358
  %v1402 = vadd.f32 %v1239, %v1361
  %v1403 = vadd.f32 %v1242, %v1364
  %v1404 = vadd.f32 %v1245, %v1367
  %v1405 = vadd.f32 %v1248, %v1370
  %v1406 = vadd.f32 %v1251, %v1373
  %v1408 = vperm.slane %v28, 0
  %v1410 = vadd.f32 %v1375, %v1408
  %v1411 = vadd.f32 %v1376, %v1408
  %v1412 = vadd.f32 %v1377, %v1408
  %v1413 = vadd.f32 %v1378, %v1408
  %v1414 = vadd.f32 %v1379, %v1408
  %v1415 = vadd.f32 %v1380, %v1408
  %v1416 = vadd.f32 %v1381, %v1408
  %v1417 = vadd.f32 %v1382, %v1408
  %v1418 = vadd.f32 %v1383, %v1408
  %v1419 = vadd.f32 %v1384, %v1408
  %v1420 = vadd.f32 %v1385, %v1408
  %v1421 = vadd.f32 %v1386, %v1408
  %v1422 = vadd.f32 %v1387, %v1408
  %v1423 = vadd.f32 %v1388, %v1408
  %v1424 = vadd.f32 %v1389, %v1408
  %v1425 = vadd.f32 %v1390, %v1408
  %v1426 = vadd.f32 %v1391, %v1408
  %v1427 = vadd.f32 %v1392, %v1408
  %v1428 = vadd.f32 %v1393, %v1408
  %v1429 = vadd.f32 %v1394, %v1408
  %v1430 = vadd.f32 %v1395, %v1408
  %v1431 = vadd.f32 %v1396, %v1408
  %v1432 = vadd.f32 %v1397, %v1408
  %v1433 = vadd.f32 %v1398, %v1408
  %v1434 = vadd.f32 %v1399, %v1408
  %v1435 = vadd.f32 %v1400, %v1408
  %v1436 = vadd.f32 %v1401, %v1408
  %v1437 = vadd.f32 %v1402, %v1408
  %v1438 = vadd.f32 %v1403, %v1408
  %v1439 = vadd.f32 %v1404, %v1408
  %v1440 = vadd.f32 %v1405, %v1408
  %v1441 = vadd.f32 %v1406, %v1408
  %vm1442 = vcmp.gt.f32.partialorder %v1410, 0.0
  %vm1443 = vcmp.gt.f32.partialorder %v1411, 0.0
  %vm1444 = vcmp.gt.f32.partialorder %v1412, 0.0
  %vm1445 = vcmp.gt.f32.partialorder %v1413, 0.0
  %vm1446 = vcmp.gt.f32.partialorder %v1414, 0.0
  %vm1447 = vcmp.gt.f32.partialorder %v1415, 0.0
  %vm1448 = vcmp.gt.f32.partialorder %v1416, 0.0
  %vm1449 = vcmp.gt.f32.partialorder %v1417, 0.0
  %vm1450 = vcmp.gt.f32.partialorder %v1418, 0.0
  %vm1451 = vcmp.gt.f32.partialorder %v1419, 0.0
  %vm1452 = vcmp.gt.f32.partialorder %v1420, 0.0
  %vm1453 = vcmp.gt.f32.partialorder %v1421, 0.0
  %vm1454 = vcmp.gt.f32.partialorder %v1422, 0.0
  %vm1455 = vcmp.gt.f32.partialorder %v1423, 0.0
  %vm1456 = vcmp.gt.f32.partialorder %v1424, 0.0
  %vm1457 = vcmp.gt.f32.partialorder %v1425, 0.0
  %vm1458 = vcmp.gt.f32.partialorder %v1426, 0.0
  %vm1459 = vcmp.gt.f32.partialorder %v1427, 0.0
  %vm1460 = vcmp.gt.f32.partialorder %v1428, 0.0
  %vm1461 = vcmp.gt.f32.partialorder %v1429, 0.0
  %vm1462 = vcmp.gt.f32.partialorder %v1430, 0.0
  %vm1463 = vcmp.gt.f32.partialorder %v1431, 0.0
  %vm1464 = vcmp.gt.f32.partialorder %v1432, 0.0
  %vm1465 = vcmp.gt.f32.partialorder %v1433, 0.0
  %vm1466 = vcmp.gt.f32.partialorder %v1434, 0.0
  %vm1467 = vcmp.gt.f32.partialorder %v1435, 0.0
  %vm1468 = vcmp.gt.f32.partialorder %v1436, 0.0
  %vm1469 = vcmp.gt.f32.partialorder %v1437, 0.0
  %vm1470 = vcmp.gt.f32.partialorder %v1438, 0.0
  %vm1471 = vcmp.gt.f32.partialorder %v1439, 0.0
  %vm1472 = vcmp.gt.f32.partialorder %v1440, 0.0
  %vm1473 = vcmp.gt.f32.partialorder %v1441, 0.0
  %v1474 = vmul.f32 %v1410, 0.1
  %v1475 = vmul.f32 %v1411, 0.1
  %v1476 = vmul.f32 %v1412, 0.1
  %v1477 = vmul.f32 %v1413, 0.1
  %v1478 = vmul.f32 %v1414, 0.1
  %v1479 = vmul.f32 %v1415, 0.1
  %v1480 = vmul.f32 %v1416, 0.1
  %v1481 = vmul.f32 %v1417, 0.1
  %v1482 = vmul.f32 %v1418, 0.1
  %v1483 = vmul.f32 %v1419, 0.1
  %v1484 = vmul.f32 %v1420, 0.1
  %v1485 = vmul.f32 %v1421, 0.1
  %v1486 = vmul.f32 %v1422, 0.1
  %v1487 = vmul.f32 %v1423, 0.1
  %v1488 = vmul.f32 %v1424, 0.1
  %v1489 = vmul.f32 %v1425, 0.1
  %v1490 = vmul.f32 %v1426, 0.1
  %v1491 = vmul.f32 %v1427, 0.1
  %v1492 = vmul.f32 %v1428, 0.1
  %v1493 = vmul.f32 %v1429, 0.1
  %v1494 = vmul.f32 %v1430, 0.1
  %v1495 = vmul.f32 %v1431, 0.1
  %v1496 = vmul.f32 %v1432, 0.1
  %v1497 = vmul.f32 %v1433, 0.1
  %v1498 = vmul.f32 %v1434, 0.1
  %v1499 = vmul.f32 %v1435, 0.1
  %v1500 = vmul.f32 %v1436, 0.1
  %v1501 = vmul.f32 %v1437, 0.1
  %v1502 = vmul.f32 %v1438, 0.1
  %v1503 = vmul.f32 %v1439, 0.1
  %v1504 = vmul.f32 %v1440, 0.1
  %v1505 = vmul.f32 %v1441, 0.1
  %v1506 = vsel %vm1442, %v1410, %v1474
  %v1507 = vsel %vm1443, %v1411, %v1475
  %v1508 = vsel %vm1444, %v1412, %v1476
  %v1509 = vsel %vm1445, %v1413, %v1477
  %v1510 = vsel %vm1446, %v1414, %v1478
  %v1511 = vsel %vm1447, %v1415, %v1479
  %v1512 = vsel %vm1448, %v1416, %v1480
  %v1513 = vsel %vm1449, %v1417, %v1481
  %v1514 = vsel %vm1450, %v1418, %v1482
  %v1515 = vsel %vm1451, %v1419, %v1483
  %v1516 = vsel %vm1452, %v1420, %v1484
  %v1517 = vsel %vm1453, %v1421, %v1485
  %v1518 = vsel %vm1454, %v1422, %v1486
  %v1519 = vsel %vm1455, %v1423, %v1487
  %v1520 = vsel %vm1456, %v1424, %v1488
  %v1521 = vsel %vm1457, %v1425, %v1489
  %v1522 = vsel %vm1458, %v1426, %v1490
  %v1523 = vsel %vm1459, %v1427, %v1491
  %v1524 = vsel %vm1460, %v1428, %v1492
  %v1525 = vsel %vm1461, %v1429, %v1493
  %v1526 = vsel %vm1462, %v1430, %v1494
  %v1527 = vsel %vm1463, %v1431, %v1495
  %v1528 = vsel %vm1464, %v1432, %v1496
  %v1529 = vsel %vm1465, %v1433, %v1497
  %v1530 = vsel %vm1466, %v1434, %v1498
  %v1531 = vsel %vm1467, %v1435, %v1499
  %v1532 = vsel %vm1468, %v1436, %v1500
  %v1533 = vsel %vm1469, %v1437, %v1501
  %v1534 = vsel %vm1470, %v1438, %v1502
  %v1535 = vsel %vm1471, %v1439, %v1503
  %v1536 = vsel %vm1472, %v1440, %v1504
  %v1537 = vsel %vm1473, %v1441, %v1505
  %v1538 = vadd.f32 %v1506, %v75
  %v1539 = vadd.f32 %v1507, %v76
  %v1540 = vadd.f32 %v1508, %v77
  %v1541 = vadd.f32 %v1509, %v78
  %v1542 = vadd.f32 %v1510, %v79
  %v1543 = vadd.f32 %v1511, %v80
  %v1544 = vadd.f32 %v1512, %v81
  %v1545 = vadd.f32 %v1513, %v82
  %v1546 = vadd.f32 %v1514, %v83
  %v1547 = vadd.f32 %v1515, %v84
  %v1548 = vadd.f32 %v1516, %v85
  %v1549 = vadd.f32 %v1517, %v86
  %v1550 = vadd.f32 %v1518, %v87
  %v1551 = vadd.f32 %v1519, %v88
  %v1552 = vadd.f32 %v1520, %v89
  %v1553 = vadd.f32 %v1521, %v90
  %v1554 = vadd.f32 %v1522, %v91
  %v1555 = vadd.f32 %v1523, %v92
  %v1556 = vadd.f32 %v1524, %v93
  %v1557 = vadd.f32 %v1525, %v94
  %v1558 = vadd.f32 %v1526, %v95
  %v1559 = vadd.f32 %v1527, %v96
  %v1560 = vadd.f32 %v1528, %v97
  %v1561 = vadd.f32 %v1529, %v98
  %v1562 = vadd.f32 %v1530, %v99
  %v1563 = vadd.f32 %v1531, %v100
  %v1564 = vadd.f32 %v1532, %v101
  %v1565 = vadd.f32 %v1533, %v102
  %v1566 = vadd.f32 %v1534, %v103
  %v1567 = vadd.f32 %v1535, %v104
  %v1568 = vadd.f32 %v1536, %v105
  %v1569 = vadd.f32 %v1537, %v106
  %1570 = vst.msk [vmem:[%s5] sm:$0xff] %vm110, %v1538
  %1571 = vst.msk [vmem:[%s5 + $0x8] sm:$0xff] %vm110, %v1539
  %1572 = vst.msk [vmem:[%s5 + $0x10] sm:$0xff] %vm110, %v1540
  %1573 = vst.msk [vmem:[%s5 + $0x18] sm:$0xff] %vm110, %v1541
  %1574 = vst.msk [vmem:[%s5 + $0x20] sm:$0xff] %vm110, %v1542
  %1575 = vst.msk [vmem:[%s5 + $0x28] sm:$0xff] %vm110, %v1543
  %1576 = vst.msk [vmem:[%s5 + $0x30] sm:$0xff] %vm110, %v1544
  %1577 = vst.msk [vmem:[%s5 + $0x38] sm:$0xff] %vm110, %v1545
  %1578 = vst.msk [vmem:[%s5 + $0x40] sm:$0xff] %vm110, %v1546
  %1579 = vst.msk [vmem:[%s5 + $0x48] sm:$0xff] %vm110, %v1547
  %1580 = vst.msk [vmem:[%s5 + $0x50] sm:$0xff] %vm110, %v1548
  %1581 = vst.msk [vmem:[%s5 + $0x58] sm:$0xff] %vm110, %v1549
  %1582 = vst.msk [vmem:[%s5 + $0x60] sm:$0xff] %vm110, %v1550
  %1583 = vst.msk [vmem:[%s5 + $0x68] sm:$0xff] %vm110, %v1551
  %1584 = vst.msk [vmem:[%s5 + $0x70] sm:$0xff] %vm110, %v1552
  %1585 = vst.msk [vmem:[%s5 + $0x78] sm:$0xff] %vm110, %v1553
  %1586 = vst.msk [vmem:[%s5 + $0x80] sm:$0xff] %vm110, %v1554
  %1587 = vst.msk [vmem:[%s5 + $0x88] sm:$0xff] %vm110, %v1555
  %1588 = vst.msk [vmem:[%s5 + $0x90] sm:$0xff] %vm110, %v1556
  %1589 = vst.msk [vmem:[%s5 + $0x98] sm:$0xff] %vm110, %v1557
  %1590 = vst.msk [vmem:[%s5 + $0xa0] sm:$0xff] %vm110, %v1558
  %1591 = vst.msk [vmem:[%s5 + $0xa8] sm:$0xff] %vm110, %v1559
  %1592 = vst.msk [vmem:[%s5 + $0xb0] sm:$0xff] %vm110, %v1560
  %1593 = vst.msk [vmem:[%s5 + $0xb8] sm:$0xff] %vm110, %v1561
  %1594 = vst.msk [vmem:[%s5 + $0xc0] sm:$0xff] %vm110, %v1562
  %1595 = vst.msk [vmem:[%s5 + $0xc8] sm:$0xff] %vm110, %v1563
  %1596 = vst.msk [vmem:[%s5 + $0xd0] sm:$0xff] %vm110, %v1564
  %1597 = vst.msk [vmem:[%s5 + $0xd8] sm:$0xff] %vm110, %v1565
  %1598 = vst.msk [vmem:[%s5 + $0xe0] sm:$0xff] %vm110, %v1566
  %1599 = vst.msk [vmem:[%s5 + $0xe8] sm:$0xff] %vm110, %v1567
  %1600 = vst.msk [vmem:[%s5 + $0xf0] sm:$0xff] %vm110, %v1568
  %1601 = vst.msk [vmem:[%s5 + $0xf8] sm:$0xff] %vm110, %v1569
  %s1602 = scalar_lea.vmem %s0, 256
  %v1603 = vld [vmem:[%s1602] sm:$0xff]
  %v1604 = vld [vmem:[%s1602 + $0x8] sm:$0xff]
  %v1605 = vld [vmem:[%s1602 + $0x10] sm:$0xff]
  %v1606 = vld [vmem:[%s1602 + $0x18] sm:$0xff]
  %v1607 = vld [vmem:[%s1602 + $0x20] sm:$0xff]
  %v1608 = vld [vmem:[%s1602 + $0x28] sm:$0xff]
  %v1609 = vld [vmem:[%s1602 + $0x30] sm:$0xff]
  %v1610 = vld [vmem:[%s1602 + $0x38] sm:$0xff]
  %v1611 = vld [vmem:[%s1602 + $0x40] sm:$0xff]
  %v1612 = vld [vmem:[%s1602 + $0x48] sm:$0xff]
  %v1613 = vld [vmem:[%s1602 + $0x50] sm:$0xff]
  %v1614 = vld [vmem:[%s1602 + $0x58] sm:$0xff]
  %v1615 = vld [vmem:[%s1602 + $0x60] sm:$0xff]
  %v1616 = vld [vmem:[%s1602 + $0x68] sm:$0xff]
  %v1617 = vld [vmem:[%s1602 + $0x70] sm:$0xff]
  %v1618 = vld [vmem:[%s1602 + $0x78] sm:$0xff]
  %v1619 = vld [vmem:[%s1602 + $0x80] sm:$0xff]
  %v1620 = vld [vmem:[%s1602 + $0x88] sm:$0xff]
  %v1621 = vld [vmem:[%s1602 + $0x90] sm:$0xff]
  %v1622 = vld [vmem:[%s1602 + $0x98] sm:$0xff]
  %v1623 = vld [vmem:[%s1602 + $0xa0] sm:$0xff]
  %v1624 = vld [vmem:[%s1602 + $0xa8] sm:$0xff]
  %v1625 = vld [vmem:[%s1602 + $0xb0] sm:$0xff]
  %v1626 = vld [vmem:[%s1602 + $0xb8] sm:$0xff]
  %v1627 = vld [vmem:[%s1602 + $0xc0] sm:$0xff]
  %v1628 = vld [vmem:[%s1602 + $0xc8] sm:$0xff]
  %v1629 = vld [vmem:[%s1602 + $0xd0] sm:$0xff]
  %v1630 = vld [vmem:[%s1602 + $0xd8] sm:$0xff]
  %v1631 = vld [vmem:[%s1602 + $0xe0] sm:$0xff]
  %v1632 = vld [vmem:[%s1602 + $0xe8] sm:$0xff]
  %v1633 = vld [vmem:[%s1602 + $0xf0] sm:$0xff]
  %v1634 = vld [vmem:[%s1602 + $0xf8] sm:$0xff]
  %v1636 = vsel %vm110, %v1603, 0
  %v1639 = vsel %vm110, %v1604, 0
  %v1642 = vsel %vm110, %v1605, 0
  %v1645 = vsel %vm110, %v1606, 0
  %v1648 = vsel %vm110, %v1607, 0
  %v1651 = vsel %vm110, %v1608, 0
  %v1654 = vsel %vm110, %v1609, 0
  %v1657 = vsel %vm110, %v1610, 0
  %v1660 = vsel %vm110, %v1611, 0
  %v1663 = vsel %vm110, %v1612, 0
  %v1666 = vsel %vm110, %v1613, 0
  %v1669 = vsel %vm110, %v1614, 0
  %v1672 = vsel %vm110, %v1615, 0
  %v1675 = vsel %vm110, %v1616, 0
  %v1678 = vsel %vm110, %v1617, 0
  %v1681 = vsel %vm110, %v1618, 0
  %v1684 = vsel %vm110, %v1619, 0
  %v1687 = vsel %vm110, %v1620, 0
  %v1690 = vsel %vm110, %v1621, 0
  %v1693 = vsel %vm110, %v1622, 0
  %v1696 = vsel %vm110, %v1623, 0
  %v1699 = vsel %vm110, %v1624, 0
  %v1702 = vsel %vm110, %v1625, 0
  %v1705 = vsel %vm110, %v1626, 0
  %v1708 = vsel %vm110, %v1627, 0
  %v1711 = vsel %vm110, %v1628, 0
  %v1714 = vsel %vm110, %v1629, 0
  %v1717 = vsel %vm110, %v1630, 0
  %v1720 = vsel %vm110, %v1631, 0
  %v1723 = vsel %vm110, %v1632, 0
  %v1726 = vsel %vm110, %v1633, 0
  %v1729 = vsel %vm110, %v1634, 0
  %1731 = vmatpush.msra.mxu0 0.0
  %1732 = vmatpush.msra.mxu0 0.0
  %1733 = vmatpush.msra.mxu0 0.0
  %1734 = vmatpush.msra.mxu0 0.0
  %1735 = vmatpush.msra.mxu0 0.0
  %1736 = vmatpush.msra.mxu0 0.0
  %1737 = vmatpush.msra.mxu0 0.0
  %1738 = vmatpush.msra.mxu0 0.0
  %1739 = vmatpush.msra.mxu0 0.0
  %1740 = vmatpush.msra.mxu0 0.0
  %1741 = vmatpush.msra.mxu0 0.0
  %1742 = vmatpush.msra.mxu0 0.0
  %1743 = vmatpush.msra.mxu0 0.0
  %1744 = vmatpush.msra.mxu0 0.0
  %1745 = vmatpush.msra.mxu0 0.0
  %1746 = vmatpush.msra.mxu0 %v20
  %1747 = vmatmul.f32.gmra.mxu0 %v1636
  %v1748 = vpop.f32.mrf.mxu0
  %v1749 = vadd.f32 %v108, %v1748
  %1750 = vmatmul.f32.gmra.mxu0 %v1639
  %v1751 = vpop.f32.mrf.mxu0
  %v1752 = vadd.f32 %v108, %v1751
  %1753 = vmatmul.f32.gmra.mxu0 %v1642
  %v1754 = vpop.f32.mrf.mxu0
  %v1755 = vadd.f32 %v108, %v1754
  %1756 = vmatmul.f32.gmra.mxu0 %v1645
  %v1757 = vpop.f32.mrf.mxu0
  %v1758 = vadd.f32 %v108, %v1757
  %1759 = vmatmul.f32.gmra.mxu0 %v1648
  %v1760 = vpop.f32.mrf.mxu0
  %v1761 = vadd.f32 %v108, %v1760
  %1762 = vmatmul.f32.gmra.mxu0 %v1651
  %v1763 = vpop.f32.mrf.mxu0
  %v1764 = vadd.f32 %v108, %v1763
  %1765 = vmatmul.f32.gmra.mxu0 %v1654
  %v1766 = vpop.f32.mrf.mxu0
  %v1767 = vadd.f32 %v108, %v1766
  %1768 = vmatmul.f32.gmra.mxu0 %v1657
  %v1769 = vpop.f32.mrf.mxu0
  %v1770 = vadd.f32 %v108, %v1769
  %1771 = vmatmul.f32.gmra.mxu0 %v1660
  %v1772 = vpop.f32.mrf.mxu0
  %v1773 = vadd.f32 %v108, %v1772
  %1774 = vmatmul.f32.gmra.mxu0 %v1663
  %v1775 = vpop.f32.mrf.mxu0
  %v1776 = vadd.f32 %v108, %v1775
  %1777 = vmatmul.f32.gmra.mxu0 %v1666
  %v1778 = vpop.f32.mrf.mxu0
  %v1779 = vadd.f32 %v108, %v1778
  %1780 = vmatmul.f32.gmra.mxu0 %v1669
  %v1781 = vpop.f32.mrf.mxu0
  %v1782 = vadd.f32 %v108, %v1781
  %1783 = vmatmul.f32.gmra.mxu0 %v1672
  %v1784 = vpop.f32.mrf.mxu0
  %v1785 = vadd.f32 %v108, %v1784
  %1786 = vmatmul.f32.gmra.mxu0 %v1675
  %v1787 = vpop.f32.mrf.mxu0
  %v1788 = vadd.f32 %v108, %v1787
  %1789 = vmatmul.f32.gmra.mxu0 %v1678
  %v1790 = vpop.f32.mrf.mxu0
  %v1791 = vadd.f32 %v108, %v1790
  %1792 = vmatmul.f32.gmra.mxu0 %v1681
  %v1793 = vpop.f32.mrf.mxu0
  %v1794 = vadd.f32 %v108, %v1793
  %1795 = vmatmul.f32.gmra.mxu0 %v1684
  %v1796 = vpop.f32.mrf.mxu0
  %v1797 = vadd.f32 %v108, %v1796
  %1798 = vmatmul.f32.gmra.mxu0 %v1687
  %v1799 = vpop.f32.mrf.mxu0
  %v1800 = vadd.f32 %v108, %v1799
  %1801 = vmatmul.f32.gmra.mxu0 %v1690
  %v1802 = vpop.f32.mrf.mxu0
  %v1803 = vadd.f32 %v108, %v1802
  %1804 = vmatmul.f32.gmra.mxu0 %v1693
  %v1805 = vpop.f32.mrf.mxu0
  %v1806 = vadd.f32 %v108, %v1805
  %1807 = vmatmul.f32.gmra.mxu0 %v1696
  %v1808 = vpop.f32.mrf.mxu0
  %v1809 = vadd.f32 %v108, %v1808
  %1810 = vmatmul.f32.gmra.mxu0 %v1699
  %v1811 = vpop.f32.mrf.mxu0
  %v1812 = vadd.f32 %v108, %v1811
  %1813 = vmatmul.f32.gmra.mxu0 %v1702
  %v1814 = vpop.f32.mrf.mxu0
  %v1815 = vadd.f32 %v108, %v1814
  %1816 = vmatmul.f32.gmra.mxu0 %v1705
  %v1817 = vpop.f32.mrf.mxu0
  %v1818 = vadd.f32 %v108, %v1817
  %1819 = vmatmul.f32.gmra.mxu0 %v1708
  %v1820 = vpop.f32.mrf.mxu0
  %v1821 = vadd.f32 %v108, %v1820
  %1822 = vmatmul.f32.gmra.mxu0 %v1711
  %v1823 = vpop.f32.mrf.mxu0
  %v1824 = vadd.f32 %v108, %v1823
  %1825 = vmatmul.f32.gmra.mxu0 %v1714
  %v1826 = vpop.f32.mrf.mxu0
  %v1827 = vadd.f32 %v108, %v1826
  %1828 = vmatmul.f32.gmra.mxu0 %v1717
  %v1829 = vpop.f32.mrf.mxu0
  %v1830 = vadd.f32 %v108, %v1829
  %1831 = vmatmul.f32.gmra.mxu0 %v1720
  %v1832 = vpop.f32.mrf.mxu0
  %v1833 = vadd.f32 %v108, %v1832
  %1834 = vmatmul.f32.gmra.mxu0 %v1723
  %v1835 = vpop.f32.mrf.mxu0
  %v1836 = vadd.f32 %v108, %v1835
  %1837 = vmatmul.f32.gmra.mxu0 %v1726
  %v1838 = vpop.f32.mrf.mxu0
  %v1839 = vadd.f32 %v108, %v1838
  %1840 = vmatmul.f32.gmra.mxu0 %v1729
  %v1841 = vpop.f32.mrf.mxu0
  %v1842 = vadd.f32 %v108, %v1841
  %1843 = vdwg.mxu0
  %vm1844 = vcmp.gt.f32.partialorder %v1749, 0.0
  %vm1845 = vcmp.gt.f32.partialorder %v1752, 0.0
  %vm1846 = vcmp.gt.f32.partialorder %v1755, 0.0
  %vm1847 = vcmp.gt.f32.partialorder %v1758, 0.0
  %vm1848 = vcmp.gt.f32.partialorder %v1761, 0.0
  %vm1849 = vcmp.gt.f32.partialorder %v1764, 0.0
  %vm1850 = vcmp.gt.f32.partialorder %v1767, 0.0
  %vm1851 = vcmp.gt.f32.partialorder %v1770, 0.0
  %vm1852 = vcmp.gt.f32.partialorder %v1773, 0.0
  %vm1853 = vcmp.gt.f32.partialorder %v1776, 0.0
  %vm1854 = vcmp.gt.f32.partialorder %v1779, 0.0
  %vm1855 = vcmp.gt.f32.partialorder %v1782, 0.0
  %vm1856 = vcmp.gt.f32.partialorder %v1785, 0.0
  %vm1857 = vcmp.gt.f32.partialorder %v1788, 0.0
  %vm1858 = vcmp.gt.f32.partialorder %v1791, 0.0
  %vm1859 = vcmp.gt.f32.partialorder %v1794, 0.0
  %vm1860 = vcmp.gt.f32.partialorder %v1797, 0.0
  %vm1861 = vcmp.gt.f32.partialorder %v1800, 0.0
  %vm1862 = vcmp.gt.f32.partialorder %v1803, 0.0
  %vm1863 = vcmp.gt.f32.partialorder %v1806, 0.0
  %vm1864 = vcmp.gt.f32.partialorder %v1809, 0.0
  %vm1865 = vcmp.gt.f32.partialorder %v1812, 0.0
  %vm1866 = vcmp.gt.f32.partialorder %v1815, 0.0
  %vm1867 = vcmp.gt.f32.partialorder %v1818, 0.0
  %vm1868 = vcmp.gt.f32.partialorder %v1821, 0.0
  %vm1869 = vcmp.gt.f32.partialorder %v1824, 0.0
  %vm1870 = vcmp.gt.f32.partialorder %v1827, 0.0
  %vm1871 = vcmp.gt.f32.partialorder %v1830, 0.0
  %vm1872 = vcmp.gt.f32.partialorder %v1833, 0.0
  %vm1873 = vcmp.gt.f32.partialorder %v1836, 0.0
  %vm1874 = vcmp.gt.f32.partialorder %v1839, 0.0
  %vm1875 = vcmp.gt.f32.partialorder %v1842, 0.0
  %v1876 = vmul.f32 %v1749, 0.1
  %v1877 = vmul.f32 %v1752, 0.1
  %v1878 = vmul.f32 %v1755, 0.1
  %v1879 = vmul.f32 %v1758, 0.1
  %v1880 = vmul.f32 %v1761, 0.1
  %v1881 = vmul.f32 %v1764, 0.1
  %v1882 = vmul.f32 %v1767, 0.1
  %v1883 = vmul.f32 %v1770, 0.1
  %v1884 = vmul.f32 %v1773, 0.1
  %v1885 = vmul.f32 %v1776, 0.1
  %v1886 = vmul.f32 %v1779, 0.1
  %v1887 = vmul.f32 %v1782, 0.1
  %v1888 = vmul.f32 %v1785, 0.1
  %v1889 = vmul.f32 %v1788, 0.1
  %v1890 = vmul.f32 %v1791, 0.1
  %v1891 = vmul.f32 %v1794, 0.1
  %v1892 = vmul.f32 %v1797, 0.1
  %v1893 = vmul.f32 %v1800, 0.1
  %v1894 = vmul.f32 %v1803, 0.1
  %v1895 = vmul.f32 %v1806, 0.1
  %v1896 = vmul.f32 %v1809, 0.1
  %v1897 = vmul.f32 %v1812, 0.1
  %v1898 = vmul.f32 %v1815, 0.1
  %v1899 = vmul.f32 %v1818, 0.1
  %v1900 = vmul.f32 %v1821, 0.1
  %v1901 = vmul.f32 %v1824, 0.1
  %v1902 = vmul.f32 %v1827, 0.1
  %v1903 = vmul.f32 %v1830, 0.1
  %v1904 = vmul.f32 %v1833, 0.1
  %v1905 = vmul.f32 %v1836, 0.1
  %v1906 = vmul.f32 %v1839, 0.1
  %v1907 = vmul.f32 %v1842, 0.1
  %v1908 = vsel %vm1844, %v1749, %v1876
  %v1909 = vsel %vm1845, %v1752, %v1877
  %v1910 = vsel %vm1846, %v1755, %v1878
  %v1911 = vsel %vm1847, %v1758, %v1879
  %v1912 = vsel %vm1848, %v1761, %v1880
  %v1913 = vsel %vm1849, %v1764, %v1881
  %v1914 = vsel %vm1850, %v1767, %v1882
  %v1915 = vsel %vm1851, %v1770, %v1883
  %v1916 = vsel %vm1852, %v1773, %v1884
  %v1917 = vsel %vm1853, %v1776, %v1885
  %v1918 = vsel %vm1854, %v1779, %v1886
  %v1919 = vsel %vm1855, %v1782, %v1887
  %v1920 = vsel %vm1856, %v1785, %v1888
  %v1921 = vsel %vm1857, %v1788, %v1889
  %v1922 = vsel %vm1858, %v1791, %v1890
  %v1923 = vsel %vm1859, %v1794, %v1891
  %v1924 = vsel %vm1860, %v1797, %v1892
  %v1925 = vsel %vm1861, %v1800, %v1893
  %v1926 = vsel %vm1862, %v1803, %v1894
  %v1927 = vsel %vm1863, %v1806, %v1895
  %v1928 = vsel %vm1864, %v1809, %v1896
  %v1929 = vsel %vm1865, %v1812, %v1897
  %v1930 = vsel %vm1866, %v1815, %v1898
  %v1931 = vsel %vm1867, %v1818, %v1899
  %v1932 = vsel %vm1868, %v1821, %v1900
  %v1933 = vsel %vm1869, %v1824, %v1901
  %v1934 = vsel %vm1870, %v1827, %v1902
  %v1935 = vsel %vm1871, %v1830, %v1903
  %v1936 = vsel %vm1872, %v1833, %v1904
  %v1937 = vsel %vm1873, %v1836, %v1905
  %v1938 = vsel %vm1874, %v1839, %v1906
  %v1939 = vsel %vm1875, %v1842, %v1907
  %1940 = vst.msk [vmem:[%s416 + $0x1] sm:$0xff] %vm29, %v1908
  %1941 = vst.msk [vmem:[%s416 + $0x9] sm:$0xff] %vm29, %v1909
  %1942 = vst.msk [vmem:[%s416 + $0x19] sm:$0xff] %vm29, %v1910
  %1943 = vst.msk [vmem:[%s416 + $0x21] sm:$0xff] %vm29, %v1911
  %1944 = vst.msk [vmem:[%s416 + $0x31] sm:$0xff] %vm29, %v1912
  %1945 = vst.msk [vmem:[%s416 + $0x39] sm:$0xff] %vm29, %v1913
  %1946 = vst.msk [vmem:[%s416 + $0x49] sm:$0xff] %vm29, %v1914
  %1947 = vst.msk [vmem:[%s416 + $0x51] sm:$0xff] %vm29, %v1915
  %1948 = vst.msk [vmem:[%s416 + $0x61] sm:$0xff] %vm29, %v1916
  %1949 = vst.msk [vmem:[%s416 + $0x69] sm:$0xff] %vm29, %v1917
  %1950 = vst.msk [vmem:[%s416 + $0x79] sm:$0xff] %vm29, %v1918
  %1951 = vst.msk [vmem:[%s416 + $0x81] sm:$0xff] %vm29, %v1919
  %1952 = vst.msk [vmem:[%s416 + $0x91] sm:$0xff] %vm29, %v1920
  %1953 = vst.msk [vmem:[%s416 + $0x99] sm:$0xff] %vm29, %v1921
  %1954 = vst.msk [vmem:[%s416 + $0xa9] sm:$0xff] %vm29, %v1922
  %1955 = vst.msk [vmem:[%s416 + $0xb1] sm:$0xff] %vm29, %v1923
  %1956 = vst.msk [vmem:[%s416 + $0xc1] sm:$0xff] %vm29, %v1924
  %1957 = vst.msk [vmem:[%s416 + $0xc9] sm:$0xff] %vm29, %v1925
  %1958 = vst.msk [vmem:[%s416 + $0xd9] sm:$0xff] %vm29, %v1926
  %1959 = vst.msk [vmem:[%s416 + $0xe1] sm:$0xff] %vm29, %v1927
  %1960 = vst.msk [vmem:[%s416 + $0xf1] sm:$0xff] %vm29, %v1928
  %1961 = vst.msk [vmem:[%s416 + $0xf9] sm:$0xff] %vm29, %v1929
  %1962 = vst.msk [vmem:[%s416 + $0x109] sm:$0xff] %vm29, %v1930
  %1963 = vst.msk [vmem:[%s416 + $0x111] sm:$0xff] %vm29, %v1931
  %1964 = vst.msk [vmem:[%s416 + $0x121] sm:$0xff] %vm29, %v1932
  %1965 = vst.msk [vmem:[%s416 + $0x129] sm:$0xff] %vm29, %v1933
  %1966 = vst.msk [vmem:[%s416 + $0x139] sm:$0xff] %vm29, %v1934
  %1967 = vst.msk [vmem:[%s416 + $0x141] sm:$0xff] %vm29, %v1935
  %1968 = vst.msk [vmem:[%s416 + $0x151] sm:$0xff] %vm29, %v1936
  %1969 = vst.msk [vmem:[%s416 + $0x159] sm:$0xff] %vm29, %v1937
  %1970 = vst.msk [vmem:[%s416 + $0x169] sm:$0xff] %vm29, %v1938
  %1971 = vst.msk [vmem:[%s416 + $0x171] sm:$0xff] %vm29, %v1939
  %v1972 = vld [vmem:[#allocation2] sm:$0xff]
  %v1973 = vld [vmem:[#allocation2 + $0x8] sm:$0xff]
  %v1974 = vld [vmem:[#allocation2 + $0x18] sm:$0xff]
  %v1975 = vld [vmem:[#allocation2 + $0x20] sm:$0xff]
  %v1976 = vld [vmem:[#allocation2 + $0x30] sm:$0xff]
  %v1977 = vld [vmem:[#allocation2 + $0x38] sm:$0xff]
  %v1978 = vld [vmem:[#allocation2 + $0x48] sm:$0xff]
  %v1979 = vld [vmem:[#allocation2 + $0x50] sm:$0xff]
  %v1980 = vld [vmem:[#allocation2 + $0x60] sm:$0xff]
  %v1981 = vld [vmem:[#allocation2 + $0x68] sm:$0xff]
  %v1982 = vld [vmem:[#allocation2 + $0x78] sm:$0xff]
  %v1983 = vld [vmem:[#allocation2 + $0x80] sm:$0xff]
  %v1984 = vld [vmem:[#allocation2 + $0x90] sm:$0xff]
  %v1985 = vld [vmem:[#allocation2 + $0x98] sm:$0xff]
  %v1986 = vld [vmem:[#allocation2 + $0xa8] sm:$0xff]
  %v1987 = vld [vmem:[#allocation2 + $0xb0] sm:$0xff]
  %v1988 = vld [vmem:[#allocation2 + $0xc0] sm:$0xff]
  %v1989 = vld [vmem:[#allocation2 + $0xc8] sm:$0xff]
  %v1990 = vld [vmem:[#allocation2 + $0xd8] sm:$0xff]
  %v1991 = vld [vmem:[#allocation2 + $0xe0] sm:$0xff]
  %v1992 = vld [vmem:[#allocation2 + $0xf0] sm:$0xff]
  %v1993 = vld [vmem:[#allocation2 + $0xf8] sm:$0xff]
  %v1994 = vld [vmem:[#allocation2 + $0x108] sm:$0xff]
  %v1995 = vld [vmem:[#allocation2 + $0x110] sm:$0xff]
  %v1996 = vld [vmem:[#allocation2 + $0x120] sm:$0xff]
  %v1997 = vld [vmem:[#allocation2 + $0x128] sm:$0xff]
  %v1998 = vld [vmem:[#allocation2 + $0x138] sm:$0xff]
  %v1999 = vld [vmem:[#allocation2 + $0x140] sm:$0xff]
  %v2000 = vld [vmem:[#allocation2 + $0x150] sm:$0xff]
  %v2001 = vld [vmem:[#allocation2 + $0x158] sm:$0xff]
  %v2002 = vld [vmem:[#allocation2 + $0x168] sm:$0xff]
  %v2003 = vld [vmem:[#allocation2 + $0x170] sm:$0xff]
  %v2004 = vld [vmem:[#allocation2 + $0x180] sm:$0xff]
  %v2005 = vld [vmem:[#allocation2 + $0x188] sm:$0xff]
  %v2006 = vld [vmem:[#allocation2 + $0x198] sm:$0xff]
  %v2007 = vld [vmem:[#allocation2 + $0x1a0] sm:$0xff]
  %v2008 = vld [vmem:[#allocation2 + $0x1] sm:$0xff]
  %v2009 = vld [vmem:[#allocation2 + $0x9] sm:$0xff]
  %v2010 = vld [vmem:[#allocation2 + $0x19] sm:$0xff]
  %v2011 = vld [vmem:[#allocation2 + $0x21] sm:$0xff]
  %v2012 = vld [vmem:[#allocation2 + $0x31] sm:$0xff]
  %v2013 = vld [vmem:[#allocation2 + $0x39] sm:$0xff]
  %v2014 = vld [vmem:[#allocation2 + $0x49] sm:$0xff]
  %v2015 = vld [vmem:[#allocation2 + $0x51] sm:$0xff]
  %v2016 = vld [vmem:[#allocation2 + $0x61] sm:$0xff]
  %v2017 = vld [vmem:[#allocation2 + $0x69] sm:$0xff]
  %v2018 = vld [vmem:[#allocation2 + $0x79] sm:$0xff]
  %v2019 = vld [vmem:[#allocation2 + $0x81] sm:$0xff]
  %v2020 = vld [vmem:[#allocation2 + $0x91] sm:$0xff]
  %v2021 = vld [vmem:[#allocation2 + $0x99] sm:$0xff]
  %v2022 = vld [vmem:[#allocation2 + $0xa9] sm:$0xff]
  %v2023 = vld [vmem:[#allocation2 + $0xb1] sm:$0xff]
  %v2024 = vld [vmem:[#allocation2 + $0xc1] sm:$0xff]
  %v2025 = vld [vmem:[#allocation2 + $0xc9] sm:$0xff]
  %v2026 = vld [vmem:[#allocation2 + $0xd9] sm:$0xff]
  %v2027 = vld [vmem:[#allocation2 + $0xe1] sm:$0xff]
  %v2028 = vld [vmem:[#allocation2 + $0xf1] sm:$0xff]
  %v2029 = vld [vmem:[#allocation2 + $0xf9] sm:$0xff]
  %v2030 = vld [vmem:[#allocation2 + $0x109] sm:$0xff]
  %v2031 = vld [vmem:[#allocation2 + $0x111] sm:$0xff]
  %v2032 = vld [vmem:[#allocation2 + $0x121] sm:$0xff]
  %v2033 = vld [vmem:[#allocation2 + $0x129] sm:$0xff]
  %v2034 = vld [vmem:[#allocation2 + $0x139] sm:$0xff]
  %v2035 = vld [vmem:[#allocation2 + $0x141] sm:$0xff]
  %v2036 = vld [vmem:[#allocation2 + $0x151] sm:$0xff]
  %v2037 = vld [vmem:[#allocation2 + $0x159] sm:$0xff]
  %v2038 = vld [vmem:[#allocation2 + $0x169] sm:$0xff]
  %v2039 = vld [vmem:[#allocation2 + $0x171] sm:$0xff]
  %v2040 = vld [vmem:[#allocation2 + $0x181] sm:$0xff]
  %v2041 = vld [vmem:[#allocation2 + $0x189] sm:$0xff]
  %v2042 = vld [vmem:[#allocation2 + $0x199] sm:$0xff]
  %v2043 = vld [vmem:[#allocation2 + $0x1a1] sm:$0xff]
  %v2044 = vld [vmem:[#allocation2 + $0x2] sm:$0xff]
  %v2045 = vld [vmem:[#allocation2 + $0xa] sm:$0xff]
  %v2046 = vld [vmem:[#allocation2 + $0x1a] sm:$0xff]
  %v2047 = vld [vmem:[#allocation2 + $0x22] sm:$0xff]
  %v2048 = vld [vmem:[#allocation2 + $0x32] sm:$0xff]
  %v2049 = vld [vmem:[#allocation2 + $0x3a] sm:$0xff]
  %v2050 = vld [vmem:[#allocation2 + $0x4a] sm:$0xff]
  %v2051 = vld [vmem:[#allocation2 + $0x52] sm:$0xff]
  %v2052 = vld [vmem:[#allocation2 + $0x62] sm:$0xff]
  %v2053 = vld [vmem:[#allocation2 + $0x6a] sm:$0xff]
  %v2054 = vld [vmem:[#allocation2 + $0x7a] sm:$0xff]
  %v2055 = vld [vmem:[#allocation2 + $0x82] sm:$0xff]
  %v2056 = vld [vmem:[#allocation2 + $0x92] sm:$0xff]
  %v2057 = vld [vmem:[#allocation2 + $0x9a] sm:$0xff]
  %v2058 = vld [vmem:[#allocation2 + $0xaa] sm:$0xff]
  %v2059 = vld [vmem:[#allocation2 + $0xb2] sm:$0xff]
  %v2060 = vld [vmem:[#allocation2 + $0xc2] sm:$0xff]
  %v2061 = vld [vmem:[#allocation2 + $0xca] sm:$0xff]
  %v2062 = vld [vmem:[#allocation2 + $0xda] sm:$0xff]
  %v2063 = vld [vmem:[#allocation2 + $0xe2] sm:$0xff]
  %v2064 = vld [vmem:[#allocation2 + $0xf2] sm:$0xff]
  %v2065 = vld [vmem:[#allocation2 + $0xfa] sm:$0xff]
  %v2066 = vld [vmem:[#allocation2 + $0x10a] sm:$0xff]
  %v2067 = vld [vmem:[#allocation2 + $0x112] sm:$0xff]
  %v2068 = vld [vmem:[#allocation2 + $0x122] sm:$0xff]
  %v2069 = vld [vmem:[#allocation2 + $0x12a] sm:$0xff]
  %v2070 = vld [vmem:[#allocation2 + $0x13a] sm:$0xff]
  %v2071 = vld [vmem:[#allocation2 + $0x142] sm:$0xff]
  %v2072 = vld [vmem:[#allocation2 + $0x152] sm:$0xff]
  %v2073 = vld [vmem:[#allocation2 + $0x15a] sm:$0xff]
  %v2074 = vld [vmem:[#allocation2 + $0x16a] sm:$0xff]
  %v2075 = vld [vmem:[#allocation2 + $0x172] sm:$0xff]
  %v2076 = vld [vmem:[#allocation2 + $0x182] sm:$0xff]
  %v2077 = vld [vmem:[#allocation2 + $0x18a] sm:$0xff]
  %v2078 = vld [vmem:[#allocation2 + $0x19a] sm:$0xff]
  %v2079 = vld [vmem:[#allocation2 + $0x1a2] sm:$0xff]
  %2116 = vrot.lane.b32.xlu0 %v2008, 4
  %v2117 = vpop.permute.xlu0 %2116
  %2118 = vrot.lane.b32.xlu0 %v2009, 4
  %v2119 = vpop.permute.xlu0 %2118
  %2120 = vrot.lane.b32.xlu0 %v2010, 4
  %v2121 = vpop.permute.xlu0 %2120
  %2122 = vrot.lane.b32.xlu0 %v2011, 4
  %v2123 = vpop.permute.xlu0 %2122
  %2124 = vrot.lane.b32.xlu0 %v2012, 4
  %v2125 = vpop.permute.xlu0 %2124
  %2126 = vrot.lane.b32.xlu0 %v2013, 4
  %v2127 = vpop.permute.xlu0 %2126
  %2128 = vrot.lane.b32.xlu0 %v2014, 4
  %v2129 = vpop.permute.xlu0 %2128
  %2130 = vrot.lane.b32.xlu0 %v2015, 4
  %v2131 = vpop.permute.xlu0 %2130
  %2132 = vrot.lane.b32.xlu0 %v2016, 4
  %v2133 = vpop.permute.xlu0 %2132
  %2134 = vrot.lane.b32.xlu0 %v2017, 4
  %v2135 = vpop.permute.xlu0 %2134
  %2136 = vrot.lane.b32.xlu0 %v2018, 4
  %v2137 = vpop.permute.xlu0 %2136
  %2138 = vrot.lane.b32.xlu0 %v2019, 4
  %v2139 = vpop.permute.xlu0 %2138
  %2140 = vrot.lane.b32.xlu0 %v2020, 4
  %v2141 = vpop.permute.xlu0 %2140
  %2142 = vrot.lane.b32.xlu0 %v2021, 4
  %v2143 = vpop.permute.xlu0 %2142
  %2144 = vrot.lane.b32.xlu0 %v2022, 4
  %v2145 = vpop.permute.xlu0 %2144
  %2146 = vrot.lane.b32.xlu0 %v2023, 4
  %v2147 = vpop.permute.xlu0 %2146
  %2148 = vrot.lane.b32.xlu0 %v2024, 4
  %v2149 = vpop.permute.xlu0 %2148
  %2150 = vrot.lane.b32.xlu0 %v2025, 4
  %v2151 = vpop.permute.xlu0 %2150
  %2152 = vrot.lane.b32.xlu0 %v2026, 4
  %v2153 = vpop.permute.xlu0 %2152
  %2154 = vrot.lane.b32.xlu0 %v2027, 4
  %v2155 = vpop.permute.xlu0 %2154
  %2156 = vrot.lane.b32.xlu0 %v2028, 4
  %v2157 = vpop.permute.xlu0 %2156
  %2158 = vrot.lane.b32.xlu0 %v2029, 4
  %v2159 = vpop.permute.xlu0 %2158
  %2160 = vrot.lane.b32.xlu0 %v2030, 4
  %v2161 = vpop.permute.xlu0 %2160
  %2162 = vrot.lane.b32.xlu0 %v2031, 4
  %v2163 = vpop.permute.xlu0 %2162
  %2164 = vrot.lane.b32.xlu0 %v2032, 4
  %v2165 = vpop.permute.xlu0 %2164
  %2166 = vrot.lane.b32.xlu0 %v2033, 4
  %v2167 = vpop.permute.xlu0 %2166
  %2168 = vrot.lane.b32.xlu0 %v2034, 4
  %v2169 = vpop.permute.xlu0 %2168
  %2170 = vrot.lane.b32.xlu0 %v2035, 4
  %v2171 = vpop.permute.xlu0 %2170
  %2172 = vrot.lane.b32.xlu0 %v2036, 4
  %v2173 = vpop.permute.xlu0 %2172
  %2174 = vrot.lane.b32.xlu0 %v2037, 4
  %v2175 = vpop.permute.xlu0 %2174
  %2176 = vrot.lane.b32.xlu0 %v2038, 4
  %v2177 = vpop.permute.xlu0 %2176
  %2178 = vrot.lane.b32.xlu0 %v2039, 4
  %v2179 = vpop.permute.xlu0 %2178
  %2180 = vrot.lane.b32.xlu0 %v2040, 4
  %v2181 = vpop.permute.xlu0 %2180
  %2182 = vrot.lane.b32.xlu0 %v2041, 4
  %v2183 = vpop.permute.xlu0 %2182
  %2184 = vrot.lane.b32.xlu0 %v2042, 4
  %v2185 = vpop.permute.xlu0 %2184
  %2186 = vrot.lane.b32.xlu0 %v2043, 4
  %v2187 = vpop.permute.xlu0 %2186
  %2260 = vrot.lane.b32.xlu0 %v2044, 8
  %v2261 = vpop.permute.xlu0 %2260
  %2262 = vrot.lane.b32.xlu0 %v2045, 8
  %v2263 = vpop.permute.xlu0 %2262
  %2264 = vrot.lane.b32.xlu0 %v2046, 8
  %v2265 = vpop.permute.xlu0 %2264
  %2266 = vrot.lane.b32.xlu0 %v2047, 8
  %v2267 = vpop.permute.xlu0 %2266
  %2268 = vrot.lane.b32.xlu0 %v2048, 8
  %v2269 = vpop.permute.xlu0 %2268
  %2270 = vrot.lane.b32.xlu0 %v2049, 8
  %v2271 = vpop.permute.xlu0 %2270
  %2272 = vrot.lane.b32.xlu0 %v2050, 8
  %v2273 = vpop.permute.xlu0 %2272
  %2274 = vrot.lane.b32.xlu0 %v2051, 8
  %v2275 = vpop.permute.xlu0 %2274
  %2276 = vrot.lane.b32.xlu0 %v2052, 8
  %v2277 = vpop.permute.xlu0 %2276
  %2278 = vrot.lane.b32.xlu0 %v2053, 8
  %v2279 = vpop.permute.xlu0 %2278
  %2280 = vrot.lane.b32.xlu0 %v2054, 8
  %v2281 = vpop.permute.xlu0 %2280
  %2282 = vrot.lane.b32.xlu0 %v2055, 8
  %v2283 = vpop.permute.xlu0 %2282
  %2284 = vrot.lane.b32.xlu0 %v2056, 8
  %v2285 = vpop.permute.xlu0 %2284
  %2286 = vrot.lane.b32.xlu0 %v2057, 8
  %v2287 = vpop.permute.xlu0 %2286
  %2288 = vrot.lane.b32.xlu0 %v2058, 8
  %v2289 = vpop.permute.xlu0 %2288
  %2290 = vrot.lane.b32.xlu0 %v2059, 8
  %v2291 = vpop.permute.xlu0 %2290
  %2292 = vrot.lane.b32.xlu0 %v2060, 8
  %v2293 = vpop.permute.xlu0 %2292
  %2294 = vrot.lane.b32.xlu0 %v2061, 8
  %v2295 = vpop.permute.xlu0 %2294
  %2296 = vrot.lane.b32.xlu0 %v2062, 8
  %v2297 = vpop.permute.xlu0 %2296
  %2298 = vrot.lane.b32.xlu0 %v2063, 8
  %v2299 = vpop.permute.xlu0 %2298
  %2300 = vrot.lane.b32.xlu0 %v2064, 8
  %v2301 = vpop.permute.xlu0 %2300
  %2302 = vrot.lane.b32.xlu0 %v2065, 8
  %v2303 = vpop.permute.xlu0 %2302
  %2304 = vrot.lane.b32.xlu0 %v2066, 8
  %v2305 = vpop.permute.xlu0 %2304
  %2306 = vrot.lane.b32.xlu0 %v2067, 8
  %v2307 = vpop.permute.xlu0 %2306
  %2308 = vrot.lane.b32.xlu0 %v2068, 8
  %v2309 = vpop.permute.xlu0 %2308
  %2310 = vrot.lane.b32.xlu0 %v2069, 8
  %v2311 = vpop.permute.xlu0 %2310
  %2312 = vrot.lane.b32.xlu0 %v2070, 8
  %v2313 = vpop.permute.xlu0 %2312
  %2314 = vrot.lane.b32.xlu0 %v2071, 8
  %v2315 = vpop.permute.xlu0 %2314
  %2316 = vrot.lane.b32.xlu0 %v2072, 8
  %v2317 = vpop.permute.xlu0 %2316
  %2318 = vrot.lane.b32.xlu0 %v2073, 8
  %v2319 = vpop.permute.xlu0 %2318
  %2320 = vrot.lane.b32.xlu0 %v2074, 8
  %v2321 = vpop.permute.xlu0 %2320
  %2322 = vrot.lane.b32.xlu0 %v2075, 8
  %v2323 = vpop.permute.xlu0 %2322
  %2324 = vrot.lane.b32.xlu0 %v2076, 8
  %v2325 = vpop.permute.xlu0 %2324
  %2326 = vrot.lane.b32.xlu0 %v2077, 8
  %v2327 = vpop.permute.xlu0 %2326
  %2328 = vrot.lane.b32.xlu0 %v2078, 8
  %v2329 = vpop.permute.xlu0 %2328
  %2330 = vrot.lane.b32.xlu0 %v2079, 8
  %v2331 = vpop.permute.xlu0 %2330
  %v2368 = vsel %vm29, %v1972, %v2117
  %v2369 = vsel %vm29, %v1973, %v2119
  %v2370 = vsel %vm29, %v1974, %v2121
  %v2371 = vsel %vm29, %v1975, %v2123
  %v2372 = vsel %vm29, %v1976, %v2125
  %v2373 = vsel %vm29, %v1977, %v2127
  %v2374 = vsel %vm29, %v1978, %v2129
  %v2375 = vsel %vm29, %v1979, %v2131
  %v2376 = vsel %vm29, %v1980, %v2133
  %v2377 = vsel %vm29, %v1981, %v2135
  %v2378 = vsel %vm29, %v1982, %v2137
  %v2379 = vsel %vm29, %v1983, %v2139
  %v2380 = vsel %vm29, %v1984, %v2141
  %v2381 = vsel %vm29, %v1985, %v2143
  %v2382 = vsel %vm29, %v1986, %v2145
  %v2383 = vsel %vm29, %v1987, %v2147
  %v2384 = vsel %vm29, %v1988, %v2149
  %v2385 = vsel %vm29, %v1989, %v2151
  %v2386 = vsel %vm29, %v1990, %v2153
  %v2387 = vsel %vm29, %v1991, %v2155
  %v2388 = vsel %vm29, %v1992, %v2157
  %v2389 = vsel %vm29, %v1993, %v2159
  %v2390 = vsel %vm29, %v1994, %v2161
  %v2391 = vsel %vm29, %v1995, %v2163
  %v2392 = vsel %vm29, %v1996, %v2165
  %v2393 = vsel %vm29, %v1997, %v2167
  %v2394 = vsel %vm29, %v1998, %v2169
  %v2395 = vsel %vm29, %v1999, %v2171
  %v2396 = vsel %vm29, %v2000, %v2173
  %v2397 = vsel %vm29, %v2001, %v2175
  %v2398 = vsel %vm29, %v2002, %v2177
  %v2399 = vsel %vm29, %v2003, %v2179
  %v2400 = vsel %vm29, %v2004, %v2181
  %v2401 = vsel %vm29, %v2005, %v2183
  %v2402 = vsel %vm29, %v2006, %v2185
  %v2403 = vsel %vm29, %v2007, %v2187
  %v2404 = vsel %vm110, %v2368, %v2261
  %v2405 = vsel %vm110, %v2369, %v2263
  %v2406 = vsel %vm110, %v2370, %v2265
  %v2407 = vsel %vm110, %v2371, %v2267
  %v2408 = vsel %vm110, %v2372, %v2269
  %v2409 = vsel %vm110, %v2373, %v2271
  %v2410 = vsel %vm110, %v2374, %v2273
  %v2411 = vsel %vm110, %v2375, %v2275
  %v2412 = vsel %vm110, %v2376, %v2277
  %v2413 = vsel %vm110, %v2377, %v2279
  %v2414 = vsel %vm110, %v2378, %v2281
  %v2415 = vsel %vm110, %v2379, %v2283
  %v2416 = vsel %vm110, %v2380, %v2285
  %v2417 = vsel %vm110, %v2381, %v2287
  %v2418 = vsel %vm110, %v2382, %v2289
  %v2419 = vsel %vm110, %v2383, %v2291
  %v2420 = vsel %vm110, %v2384, %v2293
  %v2421 = vsel %vm110, %v2385, %v2295
  %v2422 = vsel %vm110, %v2386, %v2297
  %v2423 = vsel %vm110, %v2387, %v2299
  %v2424 = vsel %vm110, %v2388, %v2301
  %v2425 = vsel %vm110, %v2389, %v2303
  %v2426 = vsel %vm110, %v2390, %v2305
  %v2427 = vsel %vm110, %v2391, %v2307
  %v2428 = vsel %vm110, %v2392, %v2309
  %v2429 = vsel %vm110, %v2393, %v2311
  %v2430 = vsel %vm110, %v2394, %v2313
  %v2431 = vsel %vm110, %v2395, %v2315
  %v2432 = vsel %vm110, %v2396, %v2317
  %v2433 = vsel %vm110, %v2397, %v2319
  %v2434 = vsel %vm110, %v2398, %v2321
  %v2435 = vsel %vm110, %v2399, %v2323
  %v2436 = vsel %vm110, %v2400, %v2325
  %v2437 = vsel %vm110, %v2401, %v2327
  %v2438 = vsel %vm110, %v2402, %v2329
  %v2439 = vsel %vm110, %v2403, %v2331
  %v2441 = vsel %vm917, %v2406, 0
  %v2444 = vsel %vm917, %v2407, 0
  %v2447 = vsel %vm917, %v2408, 0
  %v2450 = vsel %vm917, %v2409, 0
  %v2453 = vsel %vm917, %v2410, 0
  %v2456 = vsel %vm917, %v2411, 0
  %v2459 = vsel %vm917, %v2412, 0
  %v2462 = vsel %vm917, %v2413, 0
  %v2465 = vsel %vm917, %v2414, 0
  %v2468 = vsel %vm917, %v2415, 0
  %v2471 = vsel %vm917, %v2416, 0
  %v2474 = vsel %vm917, %v2417, 0
  %v2477 = vsel %vm917, %v2418, 0
  %v2480 = vsel %vm917, %v2419, 0
  %v2483 = vsel %vm917, %v2420, 0
  %v2486 = vsel %vm917, %v2421, 0
  %v2489 = vsel %vm917, %v2422, 0
  %v2492 = vsel %vm917, %v2423, 0
  %v2495 = vsel %vm917, %v2424, 0
  %v2498 = vsel %vm917, %v2425, 0
  %v2501 = vsel %vm917, %v2426, 0
  %v2504 = vsel %vm917, %v2427, 0
  %v2507 = vsel %vm917, %v2428, 0
  %v2510 = vsel %vm917, %v2429, 0
  %v2513 = vsel %vm917, %v2430, 0
  %v2516 = vsel %vm917, %v2431, 0
  %v2519 = vsel %vm917, %v2432, 0
  %v2522 = vsel %vm917, %v2433, 0
  %v2525 = vsel %vm917, %v2434, 0
  %v2528 = vsel %vm917, %v2435, 0
  %v2531 = vsel %vm917, %v2436, 0
  %v2534 = vsel %vm917, %v2437, 0
  %2536 = vmatpush.msra.mxu0 0.0
  %2537 = vmatpush.msra.mxu0 0.0
  %2538 = vmatpush.msra.mxu0 0.0
  %2539 = vmatpush.msra.mxu0 0.0
  %2540 = vmatpush.msra.mxu0 0.0
  %2541 = vmatpush.msra.mxu0 0.0
  %2542 = vmatpush.msra.mxu0 0.0
  %2543 = vmatpush.msra.mxu0 0.0
  %2544 = vmatpush.msra.mxu0 0.0
  %2545 = vmatpush.msra.mxu0 0.0
  %2546 = vmatpush.msra.mxu0 0.0
  %2547 = vmatpush.msra.mxu0 0.0
  %2548 = vmatpush.msra.mxu0 0.0
  %2549 = vmatpush.msra.mxu0 0.0
  %2550 = vmatpush.msra.mxu0 %v1016
  %2551 = vmatpush.msra.mxu0 %v24
  %2552 = vmatmul.f32.gmra.mxu0 %v2441
  %v2553 = vpop.f32.mrf.mxu0
  %v2554 = vadd.f32 0.0, %v2553
  %2555 = vmatmul.f32.gmra.mxu0 %v2444
  %v2556 = vpop.f32.mrf.mxu0
  %v2557 = vadd.f32 0.0, %v2556
  %2558 = vmatmul.f32.gmra.mxu0 %v2447
  %v2559 = vpop.f32.mrf.mxu0
  %v2560 = vadd.f32 0.0, %v2559
  %2561 = vmatmul.f32.gmra.mxu0 %v2450
  %v2562 = vpop.f32.mrf.mxu0
  %v2563 = vadd.f32 0.0, %v2562
  %2564 = vmatmul.f32.gmra.mxu0 %v2453
  %v2565 = vpop.f32.mrf.mxu0
  %v2566 = vadd.f32 0.0, %v2565
  %2567 = vmatmul.f32.gmra.mxu0 %v2456
  %v2568 = vpop.f32.mrf.mxu0
  %v2569 = vadd.f32 0.0, %v2568
  %2570 = vmatmul.f32.gmra.mxu0 %v2459
  %v2571 = vpop.f32.mrf.mxu0
  %v2572 = vadd.f32 0.0, %v2571
  %2573 = vmatmul.f32.gmra.mxu0 %v2462
  %v2574 = vpop.f32.mrf.mxu0
  %v2575 = vadd.f32 0.0, %v2574
  %2576 = vmatmul.f32.gmra.mxu0 %v2465
  %v2577 = vpop.f32.mrf.mxu0
  %v2578 = vadd.f32 0.0, %v2577
  %2579 = vmatmul.f32.gmra.mxu0 %v2468
  %v2580 = vpop.f32.mrf.mxu0
  %v2581 = vadd.f32 0.0, %v2580
  %2582 = vmatmul.f32.gmra.mxu0 %v2471
  %v2583 = vpop.f32.mrf.mxu0
  %v2584 = vadd.f32 0.0, %v2583
  %2585 = vmatmul.f32.gmra.mxu0 %v2474
  %v2586 = vpop.f32.mrf.mxu0
  %v2587 = vadd.f32 0.0, %v2586
  %2588 = vmatmul.f32.gmra.mxu0 %v2477
  %v2589 = vpop.f32.mrf.mxu0
  %v2590 = vadd.f32 0.0, %v2589
  %2591 = vmatmul.f32.gmra.mxu0 %v2480
  %v2592 = vpop.f32.mrf.mxu0
  %v2593 = vadd.f32 0.0, %v2592
  %2594 = vmatmul.f32.gmra.mxu0 %v2483
  %v2595 = vpop.f32.mrf.mxu0
  %v2596 = vadd.f32 0.0, %v2595
  %2597 = vmatmul.f32.gmra.mxu0 %v2486
  %v2598 = vpop.f32.mrf.mxu0
  %v2599 = vadd.f32 0.0, %v2598
  %2600 = vmatmul.f32.gmra.mxu0 %v2489
  %v2601 = vpop.f32.mrf.mxu0
  %v2602 = vadd.f32 0.0, %v2601
  %2603 = vmatmul.f32.gmra.mxu0 %v2492
  %v2604 = vpop.f32.mrf.mxu0
  %v2605 = vadd.f32 0.0, %v2604
  %2606 = vmatmul.f32.gmra.mxu0 %v2495
  %v2607 = vpop.f32.mrf.mxu0
  %v2608 = vadd.f32 0.0, %v2607
  %2609 = vmatmul.f32.gmra.mxu0 %v2498
  %v2610 = vpop.f32.mrf.mxu0
  %v2611 = vadd.f32 0.0, %v2610
  %2612 = vmatmul.f32.gmra.mxu0 %v2501
  %v2613 = vpop.f32.mrf.mxu0
  %v2614 = vadd.f32 0.0, %v2613
  %2615 = vmatmul.f32.gmra.mxu0 %v2504
  %v2616 = vpop.f32.mrf.mxu0
  %v2617 = vadd.f32 0.0, %v2616
  %2618 = vmatmul.f32.gmra.mxu0 %v2507
  %v2619 = vpop.f32.mrf.mxu0
  %v2620 = vadd.f32 0.0, %v2619
  %2621 = vmatmul.f32.gmra.mxu0 %v2510
  %v2622 = vpop.f32.mrf.mxu0
  %v2623 = vadd.f32 0.0, %v2622
  %2624 = vmatmul.f32.gmra.mxu0 %v2513
  %v2625 = vpop.f32.mrf.mxu0
  %v2626 = vadd.f32 0.0, %v2625
  %2627 = vmatmul.f32.gmra.mxu0 %v2516
  %v2628 = vpop.f32.mrf.mxu0
  %v2629 = vadd.f32 0.0, %v2628
  %2630 = vmatmul.f32.gmra.mxu0 %v2519
  %v2631 = vpop.f32.mrf.mxu0
  %v2632 = vadd.f32 0.0, %v2631
  %2633 = vmatmul.f32.gmra.mxu0 %v2522
  %v2634 = vpop.f32.mrf.mxu0
  %v2635 = vadd.f32 0.0, %v2634
  %2636 = vmatmul.f32.gmra.mxu0 %v2525
  %v2637 = vpop.f32.mrf.mxu0
  %v2638 = vadd.f32 0.0, %v2637
  %2639 = vmatmul.f32.gmra.mxu0 %v2528
  %v2640 = vpop.f32.mrf.mxu0
  %v2641 = vadd.f32 0.0, %v2640
  %2642 = vmatmul.f32.gmra.mxu0 %v2531
  %v2643 = vpop.f32.mrf.mxu0
  %v2644 = vadd.f32 0.0, %v2643
  %2645 = vmatmul.f32.gmra.mxu0 %v2534
  %v2646 = vpop.f32.mrf.mxu0
  %v2647 = vadd.f32 0.0, %v2646
  %2648 = vdwg.mxu0
  %v2650 = vsel %vm917, %v2404, 0
  %v2653 = vsel %vm917, %v2405, 0
  %2655 = vmatpush.msra.mxu0 0.0
  %2656 = vmatpush.msra.mxu0 0.0
  %2657 = vmatpush.msra.mxu0 0.0
  %2658 = vmatpush.msra.mxu0 0.0
  %2659 = vmatpush.msra.mxu0 0.0
  %2660 = vmatpush.msra.mxu0 0.0
  %2661 = vmatpush.msra.mxu0 0.0
  %2662 = vmatpush.msra.mxu0 0.0
  %2663 = vmatpush.msra.mxu0 0.0
  %2664 = vmatpush.msra.mxu0 0.0
  %2665 = vmatpush.msra.mxu0 0.0
  %2666 = vmatpush.msra.mxu0 0.0
  %2667 = vmatpush.msra.mxu0 0.0
  %2668 = vmatpush.msra.mxu0 0.0
  %2669 = vmatpush.msra.mxu0 %v1138
  %2670 = vmatpush.msra.mxu0 %v22
  %2671 = vmatmul.f32.gmra.mxu0 %v2650
  %v2672 = vpop.f32.mrf.mxu0
  %v2673 = vadd.f32 %v2554, %v2672
  %2674 = vmatmul.f32.gmra.mxu0 %v2653
  %v2675 = vpop.f32.mrf.mxu0
  %v2676 = vadd.f32 %v2557, %v2675
  %2677 = vmatmul.f32.gmra.mxu0 %v2441
  %v2678 = vpop.f32.mrf.mxu0
  %v2679 = vadd.f32 %v2560, %v2678
  %2680 = vmatmul.f32.gmra.mxu0 %v2444
  %v2681 = vpop.f32.mrf.mxu0
  %v2682 = vadd.f32 %v2563, %v2681
  %2683 = vmatmul.f32.gmra.mxu0 %v2447
  %v2684 = vpop.f32.mrf.mxu0
  %v2685 = vadd.f32 %v2566, %v2684
  %2686 = vmatmul.f32.gmra.mxu0 %v2450
  %v2687 = vpop.f32.mrf.mxu0
  %v2688 = vadd.f32 %v2569, %v2687
  %2689 = vmatmul.f32.gmra.mxu0 %v2453
  %v2690 = vpop.f32.mrf.mxu0
  %v2691 = vadd.f32 %v2572, %v2690
  %2692 = vmatmul.f32.gmra.mxu0 %v2456
  %v2693 = vpop.f32.mrf.mxu0
  %v2694 = vadd.f32 %v2575, %v2693
  %2695 = vmatmul.f32.gmra.mxu0 %v2459
  %v2696 = vpop.f32.mrf.mxu0
  %v2697 = vadd.f32 %v2578, %v2696
  %2698 = vmatmul.f32.gmra.mxu0 %v2462
  %v2699 = vpop.f32.mrf.mxu0
  %v2700 = vadd.f32 %v2581, %v2699
  %2701 = vmatmul.f32.gmra.mxu0 %v2465
  %v2702 = vpop.f32.mrf.mxu0
  %v2703 = vadd.f32 %v2584, %v2702
  %2704 = vmatmul.f32.gmra.mxu0 %v2468
  %v2705 = vpop.f32.mrf.mxu0
  %v2706 = vadd.f32 %v2587, %v2705
  %2707 = vmatmul.f32.gmra.mxu0 %v2471
  %v2708 = vpop.f32.mrf.mxu0
  %v2709 = vadd.f32 %v2590, %v2708
  %2710 = vmatmul.f32.gmra.mxu0 %v2474
  %v2711 = vpop.f32.mrf.mxu0
  %v2712 = vadd.f32 %v2593, %v2711
  %2713 = vmatmul.f32.gmra.mxu0 %v2477
  %v2714 = vpop.f32.mrf.mxu0
  %v2715 = vadd.f32 %v2596, %v2714
  %2716 = vmatmul.f32.gmra.mxu0 %v2480
  %v2717 = vpop.f32.mrf.mxu0
  %v2718 = vadd.f32 %v2599, %v2717
  %2719 = vmatmul.f32.gmra.mxu0 %v2483
  %v2720 = vpop.f32.mrf.mxu0
  %v2721 = vadd.f32 %v2602, %v2720
  %2722 = vmatmul.f32.gmra.mxu0 %v2486
  %v2723 = vpop.f32.mrf.mxu0
  %v2724 = vadd.f32 %v2605, %v2723
  %2725 = vmatmul.f32.gmra.mxu0 %v2489
  %v2726 = vpop.f32.mrf.mxu0
  %v2727 = vadd.f32 %v2608, %v2726
  %2728 = vmatmul.f32.gmra.mxu0 %v2492
  %v2729 = vpop.f32.mrf.mxu0
  %v2730 = vadd.f32 %v2611, %v2729
  %2731 = vmatmul.f32.gmra.mxu0 %v2495
  %v2732 = vpop.f32.mrf.mxu0
  %v2733 = vadd.f32 %v2614, %v2732
  %2734 = vmatmul.f32.gmra.mxu0 %v2498
  %v2735 = vpop.f32.mrf.mxu0
  %v2736 = vadd.f32 %v2617, %v2735
  %2737 = vmatmul.f32.gmra.mxu0 %v2501
  %v2738 = vpop.f32.mrf.mxu0
  %v2739 = vadd.f32 %v2620, %v2738
  %2740 = vmatmul.f32.gmra.mxu0 %v2504
  %v2741 = vpop.f32.mrf.mxu0
  %v2742 = vadd.f32 %v2623, %v2741
  %2743 = vmatmul.f32.gmra.mxu0 %v2507
  %v2744 = vpop.f32.mrf.mxu0
  %v2745 = vadd.f32 %v2626, %v2744
  %2746 = vmatmul.f32.gmra.mxu0 %v2510
  %v2747 = vpop.f32.mrf.mxu0
  %v2748 = vadd.f32 %v2629, %v2747
  %2749 = vmatmul.f32.gmra.mxu0 %v2513
  %v2750 = vpop.f32.mrf.mxu0
  %v2751 = vadd.f32 %v2632, %v2750
  %2752 = vmatmul.f32.gmra.mxu0 %v2516
  %v2753 = vpop.f32.mrf.mxu0
  %v2754 = vadd.f32 %v2635, %v2753
  %2755 = vmatmul.f32.gmra.mxu0 %v2519
  %v2756 = vpop.f32.mrf.mxu0
  %v2757 = vadd.f32 %v2638, %v2756
  %2758 = vmatmul.f32.gmra.mxu0 %v2522
  %v2759 = vpop.f32.mrf.mxu0
  %v2760 = vadd.f32 %v2641, %v2759
  %2761 = vmatmul.f32.gmra.mxu0 %v2525
  %v2762 = vpop.f32.mrf.mxu0
  %v2763 = vadd.f32 %v2644, %v2762
  %2764 = vmatmul.f32.gmra.mxu0 %v2528
  %v2765 = vpop.f32.mrf.mxu0
  %v2766 = vadd.f32 %v2647, %v2765
  %2767 = vdwg.mxu0
  %v2769 = vsel %vm917, %v2438, 0
  %v2772 = vsel %vm917, %v2439, 0
  %2774 = vmatpush.msra.mxu0 0.0
  %2775 = vmatpush.msra.mxu0 0.0
  %2776 = vmatpush.msra.mxu0 0.0
  %2777 = vmatpush.msra.mxu0 0.0
  %2778 = vmatpush.msra.mxu0 0.0
  %2779 = vmatpush.msra.mxu0 0.0
  %2780 = vmatpush.msra.mxu0 0.0
  %2781 = vmatpush.msra.mxu0 0.0
  %2782 = vmatpush.msra.mxu0 0.0
  %2783 = vmatpush.msra.mxu0 0.0
  %2784 = vmatpush.msra.mxu0 0.0
  %2785 = vmatpush.msra.mxu0 0.0
  %2786 = vmatpush.msra.mxu0 0.0
  %2787 = vmatpush.msra.mxu0 0.0
  %2788 = vmatpush.msra.mxu0 %v1260
  %2789 = vmatpush.msra.mxu0 %v26
  %2790 = vmatmul.f32.gmra.mxu0 %v2447
  %v2791 = vpop.f32.mrf.mxu0
  %v2792 = vadd.f32 0.0, %v2791
  %2793 = vmatmul.f32.gmra.mxu0 %v2450
  %v2794 = vpop.f32.mrf.mxu0
  %v2795 = vadd.f32 0.0, %v2794
  %2796 = vmatmul.f32.gmra.mxu0 %v2453
  %v2797 = vpop.f32.mrf.mxu0
  %v2798 = vadd.f32 0.0, %v2797
  %2799 = vmatmul.f32.gmra.mxu0 %v2456
  %v2800 = vpop.f32.mrf.mxu0
  %v2801 = vadd.f32 0.0, %v2800
  %2802 = vmatmul.f32.gmra.mxu0 %v2459
  %v2803 = vpop.f32.mrf.mxu0
  %v2804 = vadd.f32 0.0, %v2803
  %2805 = vmatmul.f32.gmra.mxu0 %v2462
  %v2806 = vpop.f32.mrf.mxu0
  %v2807 = vadd.f32 0.0, %v2806
  %2808 = vmatmul.f32.gmra.mxu0 %v2465
  %v2809 = vpop.f32.mrf.mxu0
  %v2810 = vadd.f32 0.0, %v2809
  %2811 = vmatmul.f32.gmra.mxu0 %v2468
  %v2812 = vpop.f32.mrf.mxu0
  %v2813 = vadd.f32 0.0, %v2812
  %2814 = vmatmul.f32.gmra.mxu0 %v2471
  %v2815 = vpop.f32.mrf.mxu0
  %v2816 = vadd.f32 0.0, %v2815
  %2817 = vmatmul.f32.gmra.mxu0 %v2474
  %v2818 = vpop.f32.mrf.mxu0
  %v2819 = vadd.f32 0.0, %v2818
  %2820 = vmatmul.f32.gmra.mxu0 %v2477
  %v2821 = vpop.f32.mrf.mxu0
  %v2822 = vadd.f32 0.0, %v2821
  %2823 = vmatmul.f32.gmra.mxu0 %v2480
  %v2824 = vpop.f32.mrf.mxu0
  %v2825 = vadd.f32 0.0, %v2824
  %2826 = vmatmul.f32.gmra.mxu0 %v2483
  %v2827 = vpop.f32.mrf.mxu0
  %v2828 = vadd.f32 0.0, %v2827
  %2829 = vmatmul.f32.gmra.mxu0 %v2486
  %v2830 = vpop.f32.mrf.mxu0
  %v2831 = vadd.f32 0.0, %v2830
  %2832 = vmatmul.f32.gmra.mxu0 %v2489
  %v2833 = vpop.f32.mrf.mxu0
  %v2834 = vadd.f32 0.0, %v2833
  %2835 = vmatmul.f32.gmra.mxu0 %v2492
  %v2836 = vpop.f32.mrf.mxu0
  %v2837 = vadd.f32 0.0, %v2836
  %2838 = vmatmul.f32.gmra.mxu0 %v2495
  %v2839 = vpop.f32.mrf.mxu0
  %v2840 = vadd.f32 0.0, %v2839
  %2841 = vmatmul.f32.gmra.mxu0 %v2498
  %v2842 = vpop.f32.mrf.mxu0
  %v2843 = vadd.f32 0.0, %v2842
  %2844 = vmatmul.f32.gmra.mxu0 %v2501
  %v2845 = vpop.f32.mrf.mxu0
  %v2846 = vadd.f32 0.0, %v2845
  %2847 = vmatmul.f32.gmra.mxu0 %v2504
  %v2848 = vpop.f32.mrf.mxu0
  %v2849 = vadd.f32 0.0, %v2848
  %2850 = vmatmul.f32.gmra.mxu0 %v2507
  %v2851 = vpop.f32.mrf.mxu0
  %v2852 = vadd.f32 0.0, %v2851
  %2853 = vmatmul.f32.gmra.mxu0 %v2510
  %v2854 = vpop.f32.mrf.mxu0
  %v2855 = vadd.f32 0.0, %v2854
  %2856 = vmatmul.f32.gmra.mxu0 %v2513
  %v2857 = vpop.f32.mrf.mxu0
  %v2858 = vadd.f32 0.0, %v2857
  %2859 = vmatmul.f32.gmra.mxu0 %v2516
  %v2860 = vpop.f32.mrf.mxu0
  %v2861 = vadd.f32 0.0, %v2860
  %2862 = vmatmul.f32.gmra.mxu0 %v2519
  %v2863 = vpop.f32.mrf.mxu0
  %v2864 = vadd.f32 0.0, %v2863
  %2865 = vmatmul.f32.gmra.mxu0 %v2522
  %v2866 = vpop.f32.mrf.mxu0
  %v2867 = vadd.f32 0.0, %v2866
  %2868 = vmatmul.f32.gmra.mxu0 %v2525
  %v2869 = vpop.f32.mrf.mxu0
  %v2870 = vadd.f32 0.0, %v2869
  %2871 = vmatmul.f32.gmra.mxu0 %v2528
  %v2872 = vpop.f32.mrf.mxu0
  %v2873 = vadd.f32 0.0, %v2872
  %2874 = vmatmul.f32.gmra.mxu0 %v2531
  %v2875 = vpop.f32.mrf.mxu0
  %v2876 = vadd.f32 0.0, %v2875
  %2877 = vmatmul.f32.gmra.mxu0 %v2534
  %v2878 = vpop.f32.mrf.mxu0
  %v2879 = vadd.f32 0.0, %v2878
  %2880 = vmatmul.f32.gmra.mxu0 %v2769
  %v2881 = vpop.f32.mrf.mxu0
  %v2882 = vadd.f32 0.0, %v2881
  %2883 = vmatmul.f32.gmra.mxu0 %v2772
  %v2884 = vpop.f32.mrf.mxu0
  %v2885 = vadd.f32 0.0, %v2884
  %2886 = vdwg.mxu0
  %v2887 = vadd.f32 %v2673, %v2792
  %v2888 = vadd.f32 %v2676, %v2795
  %v2889 = vadd.f32 %v2679, %v2798
  %v2890 = vadd.f32 %v2682, %v2801
  %v2891 = vadd.f32 %v2685, %v2804
  %v2892 = vadd.f32 %v2688, %v2807
  %v2893 = vadd.f32 %v2691, %v2810
  %v2894 = vadd.f32 %v2694, %v2813
  %v2895 = vadd.f32 %v2697, %v2816
  %v2896 = vadd.f32 %v2700, %v2819
  %v2897 = vadd.f32 %v2703, %v2822
  %v2898 = vadd.f32 %v2706, %v2825
  %v2899 = vadd.f32 %v2709, %v2828
  %v2900 = vadd.f32 %v2712, %v2831
  %v2901 = vadd.f32 %v2715, %v2834
  %v2902 = vadd.f32 %v2718, %v2837
  %v2903 = vadd.f32 %v2721, %v2840
  %v2904 = vadd.f32 %v2724, %v2843
  %v2905 = vadd.f32 %v2727, %v2846
  %v2906 = vadd.f32 %v2730, %v2849
  %v2907 = vadd.f32 %v2733, %v2852
  %v2908 = vadd.f32 %v2736, %v2855
  %v2909 = vadd.f32 %v2739, %v2858
  %v2910 = vadd.f32 %v2742, %v2861
  %v2911 = vadd.f32 %v2745, %v2864
  %v2912 = vadd.f32 %v2748, %v2867
  %v2913 = vadd.f32 %v2751, %v2870
  %v2914 = vadd.f32 %v2754, %v2873
  %v2915 = vadd.f32 %v2757, %v2876
  %v2916 = vadd.f32 %v2760, %v2879
  %v2917 = vadd.f32 %v2763, %v2882
  %v2918 = vadd.f32 %v2766, %v2885
  %v2919 = vadd.f32 %v2887, %v1408
  %v2920 = vadd.f32 %v2888, %v1408
  %v2921 = vadd.f32 %v2889, %v1408
  %v2922 = vadd.f32 %v2890, %v1408
  %v2923 = vadd.f32 %v2891, %v1408
  %v2924 = vadd.f32 %v2892, %v1408
  %v2925 = vadd.f32 %v2893, %v1408
  %v2926 = vadd.f32 %v2894, %v1408
  %v2927 = vadd.f32 %v2895, %v1408
  %v2928 = vadd.f32 %v2896, %v1408
  %v2929 = vadd.f32 %v2897, %v1408
  %v2930 = vadd.f32 %v2898, %v1408
  %v2931 = vadd.f32 %v2899, %v1408
  %v2932 = vadd.f32 %v2900, %v1408
  %v2933 = vadd.f32 %v2901, %v1408
  %v2934 = vadd.f32 %v2902, %v1408
  %v2935 = vadd.f32 %v2903, %v1408
  %v2936 = vadd.f32 %v2904, %v1408
  %v2937 = vadd.f32 %v2905, %v1408
  %v2938 = vadd.f32 %v2906, %v1408
  %v2939 = vadd.f32 %v2907, %v1408
  %v2940 = vadd.f32 %v2908, %v1408
  %v2941 = vadd.f32 %v2909, %v1408
  %v2942 = vadd.f32 %v2910, %v1408
  %v2943 = vadd.f32 %v2911, %v1408
  %v2944 = vadd.f32 %v2912, %v1408
  %v2945 = vadd.f32 %v2913, %v1408
  %v2946 = vadd.f32 %v2914, %v1408
  %v2947 = vadd.f32 %v2915, %v1408
  %v2948 = vadd.f32 %v2916, %v1408
  %v2949 = vadd.f32 %v2917, %v1408
  %v2950 = vadd.f32 %v2918, %v1408
  %vm2951 = vcmp.gt.f32.partialorder %v2919, 0.0
  %vm2952 = vcmp.gt.f32.partialorder %v2920, 0.0
  %vm2953 = vcmp.gt.f32.partialorder %v2921, 0.0
  %vm2954 = vcmp.gt.f32.partialorder %v2922, 0.0
  %vm2955 = vcmp.gt.f32.partialorder %v2923, 0.0
  %vm2956 = vcmp.gt.f32.partialorder %v2924, 0.0
  %vm2957 = vcmp.gt.f32.partialorder %v2925, 0.0
  %vm2958 = vcmp.gt.f32.partialorder %v2926, 0.0
  %vm2959 = vcmp.gt.f32.partialorder %v2927, 0.0
  %vm2960 = vcmp.gt.f32.partialorder %v2928, 0.0
  %vm2961 = vcmp.gt.f32.partialorder %v2929, 0.0
  %vm2962 = vcmp.gt.f32.partialorder %v2930, 0.0
  %vm2963 = vcmp.gt.f32.partialorder %v2931, 0.0
  %vm2964 = vcmp.gt.f32.partialorder %v2932, 0.0
  %vm2965 = vcmp.gt.f32.partialorder %v2933, 0.0
  %vm2966 = vcmp.gt.f32.partialorder %v2934, 0.0
  %vm2967 = vcmp.gt.f32.partialorder %v2935, 0.0
  %vm2968 = vcmp.gt.f32.partialorder %v2936, 0.0
  %vm2969 = vcmp.gt.f32.partialorder %v2937, 0.0
  %vm2970 = vcmp.gt.f32.partialorder %v2938, 0.0
  %vm2971 = vcmp.gt.f32.partialorder %v2939, 0.0
  %vm2972 = vcmp.gt.f32.partialorder %v2940, 0.0
  %vm2973 = vcmp.gt.f32.partialorder %v2941, 0.0
  %vm2974 = vcmp.gt.f32.partialorder %v2942, 0.0
  %vm2975 = vcmp.gt.f32.partialorder %v2943, 0.0
  %vm2976 = vcmp.gt.f32.partialorder %v2944, 0.0
  %vm2977 = vcmp.gt.f32.partialorder %v2945, 0.0
  %vm2978 = vcmp.gt.f32.partialorder %v2946, 0.0
  %vm2979 = vcmp.gt.f32.partialorder %v2947, 0.0
  %vm2980 = vcmp.gt.f32.partialorder %v2948, 0.0
  %vm2981 = vcmp.gt.f32.partialorder %v2949, 0.0
  %vm2982 = vcmp.gt.f32.partialorder %v2950, 0.0
  %v2983 = vmul.f32 %v2919, 0.1
  %v2984 = vmul.f32 %v2920, 0.1
  %v2985 = vmul.f32 %v2921, 0.1
  %v2986 = vmul.f32 %v2922, 0.1
  %v2987 = vmul.f32 %v2923, 0.1
  %v2988 = vmul.f32 %v2924, 0.1
  %v2989 = vmul.f32 %v2925, 0.1
  %v2990 = vmul.f32 %v2926, 0.1
  %v2991 = vmul.f32 %v2927, 0.1
  %v2992 = vmul.f32 %v2928, 0.1
  %v2993 = vmul.f32 %v2929, 0.1
  %v2994 = vmul.f32 %v2930, 0.1
  %v2995 = vmul.f32 %v2931, 0.1
  %v2996 = vmul.f32 %v2932, 0.1
  %v2997 = vmul.f32 %v2933, 0.1
  %v2998 = vmul.f32 %v2934, 0.1
  %v2999 = vmul.f32 %v2935, 0.1
  %v3000 = vmul.f32 %v2936, 0.1
  %v3001 = vmul.f32 %v2937, 0.1
  %v3002 = vmul.f32 %v2938, 0.1
  %v3003 = vmul.f32 %v2939, 0.1
  %v3004 = vmul.f32 %v2940, 0.1
  %v3005 = vmul.f32 %v2941, 0.1
  %v3006 = vmul.f32 %v2942, 0.1
  %v3007 = vmul.f32 %v2943, 0.1
  %v3008 = vmul.f32 %v2944, 0.1
  %v3009 = vmul.f32 %v2945, 0.1
  %v3010 = vmul.f32 %v2946, 0.1
  %v3011 = vmul.f32 %v2947, 0.1
  %v3012 = vmul.f32 %v2948, 0.1
  %v3013 = vmul.f32 %v2949, 0.1
  %v3014 = vmul.f32 %v2950, 0.1
  %v3015 = vsel %vm2951, %v2919, %v2983
  %v3016 = vsel %vm2952, %v2920, %v2984
  %v3017 = vsel %vm2953, %v2921, %v2985
  %v3018 = vsel %vm2954, %v2922, %v2986
  %v3019 = vsel %vm2955, %v2923, %v2987
  %v3020 = vsel %vm2956, %v2924, %v2988
  %v3021 = vsel %vm2957, %v2925, %v2989
  %v3022 = vsel %vm2958, %v2926, %v2990
  %v3023 = vsel %vm2959, %v2927, %v2991
  %v3024 = vsel %vm2960, %v2928, %v2992
  %v3025 = vsel %vm2961, %v2929, %v2993
  %v3026 = vsel %vm2962, %v2930, %v2994
  %v3027 = vsel %vm2963, %v2931, %v2995
  %v3028 = vsel %vm2964, %v2932, %v2996
  %v3029 = vsel %vm2965, %v2933, %v2997
  %v3030 = vsel %vm2966, %v2934, %v2998
  %v3031 = vsel %vm2967, %v2935, %v2999
  %v3032 = vsel %vm2968, %v2936, %v3000
  %v3033 = vsel %vm2969, %v2937, %v3001
  %v3034 = vsel %vm2970, %v2938, %v3002
  %v3035 = vsel %vm2971, %v2939, %v3003
  %v3036 = vsel %vm2972, %v2940, %v3004
  %v3037 = vsel %vm2973, %v2941, %v3005
  %v3038 = vsel %vm2974, %v2942, %v3006
  %v3039 = vsel %vm2975, %v2943, %v3007
  %v3040 = vsel %vm2976, %v2944, %v3008
  %v3041 = vsel %vm2977, %v2945, %v3009
  %v3042 = vsel %vm2978, %v2946, %v3010
  %v3043 = vsel %vm2979, %v2947, %v3011
  %v3044 = vsel %vm2980, %v2948, %v3012
  %v3045 = vsel %vm2981, %v2949, %v3013
  %v3046 = vsel %vm2982, %v2950, %v3014
  %v3047 = vadd.f32 %v3015, %v1603
  %v3048 = vadd.f32 %v3016, %v1604
  %v3049 = vadd.f32 %v3017, %v1605
  %v3050 = vadd.f32 %v3018, %v1606
  %v3051 = vadd.f32 %v3019, %v1607
  %v3052 = vadd.f32 %v3020, %v1608
  %v3053 = vadd.f32 %v3021, %v1609
  %v3054 = vadd.f32 %v3022, %v1610
  %v3055 = vadd.f32 %v3023, %v1611
  %v3056 = vadd.f32 %v3024, %v1612
  %v3057 = vadd.f32 %v3025, %v1613
  %v3058 = vadd.f32 %v3026, %v1614
  %v3059 = vadd.f32 %v3027, %v1615
  %v3060 = vadd.f32 %v3028, %v1616
  %v3061 = vadd.f32 %v3029, %v1617
  %v3062 = vadd.f32 %v3030, %v1618
  %v3063 = vadd.f32 %v3031, %v1619
  %v3064 = vadd.f32 %v3032, %v1620
  %v3065 = vadd.f32 %v3033, %v1621
  %v3066 = vadd.f32 %v3034, %v1622
  %v3067 = vadd.f32 %v3035, %v1623
  %v3068 = vadd.f32 %v3036, %v1624
  %v3069 = vadd.f32 %v3037, %v1625
  %v3070 = vadd.f32 %v3038, %v1626
  %v3071 = vadd.f32 %v3039, %v1627
  %v3072 = vadd.f32 %v3040, %v1628
  %v3073 = vadd.f32 %v3041, %v1629
  %v3074 = vadd.f32 %v3042, %v1630
  %v3075 = vadd.f32 %v3043, %v1631
  %v3076 = vadd.f32 %v3044, %v1632
  %v3077 = vadd.f32 %v3045, %v1633
  %v3078 = vadd.f32 %v3046, %v1634
  %s3079 = scalar_lea.vmem %s5, 256
  %3080 = vst.msk [vmem:[%s3079] sm:$0xff] %vm110, %v3047
  %3081 = vst.msk [vmem:[%s3079 + $0x8] sm:$0xff] %vm110, %v3048
  %3082 = vst.msk [vmem:[%s3079 + $0x10] sm:$0xff] %vm110, %v3049
  %3083 = vst.msk [vmem:[%s3079 + $0x18] sm:$0xff] %vm110, %v3050
  %3084 = vst.msk [vmem:[%s3079 + $0x20] sm:$0xff] %vm110, %v3051
  %3085 = vst.msk [vmem:[%s3079 + $0x28] sm:$0xff] %vm110, %v3052
  %3086 = vst.msk [vmem:[%s3079 + $0x30] sm:$0xff] %vm110, %v3053
  %3087 = vst.msk [vmem:[%s3079 + $0x38] sm:$0xff] %vm110, %v3054
  %3088 = vst.msk [vmem:[%s3079 + $0x40] sm:$0xff] %vm110, %v3055
  %3089 = vst.msk [vmem:[%s3079 + $0x48] sm:$0xff] %vm110, %v3056
  %3090 = vst.msk [vmem:[%s3079 + $0x50] sm:$0xff] %vm110, %v3057
  %3091 = vst.msk [vmem:[%s3079 + $0x58] sm:$0xff] %vm110, %v3058
  %3092 = vst.msk [vmem:[%s3079 + $0x60] sm:$0xff] %vm110, %v3059
  %3093 = vst.msk [vmem:[%s3079 + $0x68] sm:$0xff] %vm110, %v3060
  %3094 = vst.msk [vmem:[%s3079 + $0x70] sm:$0xff] %vm110, %v3061
  %3095 = vst.msk [vmem:[%s3079 + $0x78] sm:$0xff] %vm110, %v3062
  %3096 = vst.msk [vmem:[%s3079 + $0x80] sm:$0xff] %vm110, %v3063
  %3097 = vst.msk [vmem:[%s3079 + $0x88] sm:$0xff] %vm110, %v3064
  %3098 = vst.msk [vmem:[%s3079 + $0x90] sm:$0xff] %vm110, %v3065
  %3099 = vst.msk [vmem:[%s3079 + $0x98] sm:$0xff] %vm110, %v3066
  %3100 = vst.msk [vmem:[%s3079 + $0xa0] sm:$0xff] %vm110, %v3067
  %3101 = vst.msk [vmem:[%s3079 + $0xa8] sm:$0xff] %vm110, %v3068
  %3102 = vst.msk [vmem:[%s3079 + $0xb0] sm:$0xff] %vm110, %v3069
  %3103 = vst.msk [vmem:[%s3079 + $0xb8] sm:$0xff] %vm110, %v3070
  %3104 = vst.msk [vmem:[%s3079 + $0xc0] sm:$0xff] %vm110, %v3071
  %3105 = vst.msk [vmem:[%s3079 + $0xc8] sm:$0xff] %vm110, %v3072
  %3106 = vst.msk [vmem:[%s3079 + $0xd0] sm:$0xff] %vm110, %v3073
  %3107 = vst.msk [vmem:[%s3079 + $0xd8] sm:$0xff] %vm110, %v3074
  %3108 = vst.msk [vmem:[%s3079 + $0xe0] sm:$0xff] %vm110, %v3075
  %3109 = vst.msk [vmem:[%s3079 + $0xe8] sm:$0xff] %vm110, %v3076
  %3110 = vst.msk [vmem:[%s3079 + $0xf0] sm:$0xff] %vm110, %v3077
  %3111 = vst.msk [vmem:[%s3079 + $0xf8] sm:$0xff] %vm110, %v3078
  // Predicated region
  $region22: #{tpu_custom_call.1} parent=0 // pred_check
    _
  $region23: #{tpu_custom_call.1} parent=0 // pred_check_branch
    %3113 = sbr.rel (0) target = $region25
  $region24: #{tpu_custom_call.1} parent=0 // pred_region
    _
  $region25: #{tpu_custom_call.1} parent=0 // pred_fallthru
    _
  // Predicated region
  $region26: #{tpu_custom_call.1} parent=0 // pred_check
    _
  $region27: #{tpu_custom_call.1} parent=0 // pred_check_branch
    %3115 = sbr.rel (0) target = $region29
  $region28: #{tpu_custom_call.1} parent=0 // pred_region
    _
  $region29: #{tpu_custom_call.1} parent=0 // pred_fallthru
    _

</llo_original>
